<compile_context>
chip_gen: v6e
topology: v6e:2x2x1
jax: 0.10.0
libtpu: 0.0.40
codegen_flags: <defaults>
</compile_context>

<pallas_src>
import functools
import math

import jax
import jax.numpy as jnp
from jax.experimental import pallas as pl
from jax.experimental.pallas import tpu as pltpu


# -----------------------------------------------------------------------------
# Per-generation VMEM budget
# -----------------------------------------------------------------------------
def _vmem_limit_bytes():
    """~48 MiB on v7x (64 MiB physical VMEM), ~96 MiB on v5e/v6e (128 MiB)."""
    try:
        cap = int(pltpu.get_tpu_info().vmem_capacity_bytes)
    except Exception:
        return 48 << 20          # conservative default that fits every generation
    return int(min(3 * cap // 4, 96 << 20))


_VMEM_LIMIT = _vmem_limit_bytes()


# -----------------------------------------------------------------------------
# Kernels
# -----------------------------------------------------------------------------
def linear_kernel(x_ref, w_ref, b_ref, o_ref):
    """o = x @ W + b. x tile (tm, d_in); W resident (d_in, d_out) bf16; b (1, d_out) f32."""
    x = x_ref[...].astype(jnp.bfloat16)                      # no-op when x is already bf16
    acc = jnp.dot(x, w_ref[...], preferred_element_type=jnp.float32)
    o_ref[...] = (acc + b_ref[...]).astype(o_ref.dtype)


def attention_kernel(q_ref, k_ref, v_ref, mask_ref, o_ref, *, group, d_k):
    """One (batch, head-group) step.

    q/k/v blocks are (1, seq, group*d_k) bf16 slabs sliced straight out of the
    projection output (heads are adjacent along d_model), so no XLA transposes are
    needed for the head split/merge.  The 1/sqrt(d_k) scale is folded into Wq.
    """
    mask = mask_ref[0]                                       # (seq, seq) bf16 0/1
    outs = []
    for h in range(group):                                   # static unroll over heads
        lo, hi = h * d_k, (h + 1) * d_k
        qh = q_ref[0, :, lo:hi]                              # (seq, d_k) bf16
        kh = k_ref[0, :, lo:hi]
        vh = v_ref[0, :, lo:hi]
        # q @ k^T on the MXU (contract last dims, no explicit transpose).
        s = jax.lax.dot_general(qh, kh, (((1,), (1,)), ((), ())),
                                preferred_element_type=jnp.float32)      # (seq, seq) f32
        # Faithful masked_fill(mask == 0, -1e9): keeps the fully-masked-row
        # (uniform softmax) behaviour of the torch reference, unlike an additive mask.
        s = jnp.where(mask == 0, jnp.float32(-1e9), s)
        s = s - jnp.max(s, axis=-1, keepdims=True)           # stable softmax
        p = jnp.exp(s)
        l = jnp.sum(p, axis=-1, keepdims=True)
        # TODO(synk): training-mode dropout on p (pltpu.prng_seed + stateful_bernoulli
        # + 1/(1-p) rescale) not emitted; this kernel is eval-mode (dropout == identity).
        o = jnp.dot(p.astype(vh.dtype), vh, preferred_element_type=jnp.float32)
        o = o * pl.reciprocal(l, approx=True)                # normalize after PV (EUP slot)
        outs.append(o)
    # Single lane-dense (group*d_k >= 128 lanes) store of the whole head-group.
    o_ref[0] = jnp.concatenate(outs, axis=-1).astype(o_ref.dtype)


# -----------------------------------------------------------------------------
# Tiling heuristics
# -----------------------------------------------------------------------------
def _pick_block_m(tokens):
    """Largest token tile (<=1024) that still leaves a >=2-step grid."""
    for tm in (1024, 512, 256, 128, 64, 32, 16, 8):
        if tokens % tm == 0 and tokens // tm >= 2:
            return tm
    return tokens


def _pick_head_group(heads, d_k, bs):
    """Heads per attention grid step: >=128-lane blocks and a >=2-step grid."""
    for g in (4, 2):
        if heads % g == 0 and (g * d_k) % 128 == 0 and bs * (heads // g) >= 2:
            return g
    for g in (8, 4, 2, 1):
        if heads % g == 0 and (g * d_k) % 128 == 0:
            return g
    return heads          # block spans the full d_model axis (always layout-legal)


# -----------------------------------------------------------------------------
# pallas_call wrappers
# -----------------------------------------------------------------------------
def _linear(x2d, w_bf16, b_f32, out_dtype):
    tokens, d_in = x2d.shape
    d_out = w_bf16.shape[1]
    tm = _pick_block_m(tokens)
    cost = pl.CostEstimate(
        flops=2 * tokens * d_in * d_out,
        transcendentals=0,
        bytes_accessed=(x2d.size * x2d.dtype.itemsize + w_bf16.size * 2
                        + b_f32.size * 4
                        + tokens * d_out * jnp.dtype(out_dtype).itemsize),
    )
    return pl.pallas_call(
        linear_kernel,
        out_shape=jax.ShapeDtypeStruct((tokens, d_out), out_dtype),
        grid_spec=pltpu.PrefetchScalarGridSpec(
            num_scalar_prefetch=0,
            grid=(tokens // tm,),
            in_specs=[
                pl.BlockSpec((tm, d_in), lambda i: (i, 0)),      # x tile (pipelined)
                pl.BlockSpec((d_in, d_out), lambda i: (0, 0)),   # W resident (bf16)
                pl.BlockSpec((1, d_out), lambda i: (0, 0)),      # b resident (f32)
            ],
            out_specs=pl.BlockSpec((tm, d_out), lambda i: (i, 0)),
        ),
        compiler_params=pltpu.CompilerParams(
            dimension_semantics=("parallel",),
            vmem_limit_bytes=_VMEM_LIMIT),
        cost_estimate=cost,
    )(x2d, w_bf16, b_f32)


def _attention(q_src, k_src, v_src, q_off, k_off, v_off, mask3, *, heads, d_k, group):
    """Attention over (bs, heads//group) grid; q/k/v head-groups are column slabs
    (block-index offsets q_off/k_off/v_off) of the given source tensors."""
    bs, seq, _ = q_src.shape
    hg = heads // group
    gw = group * d_k
    mb = mask3.shape[0]                                      # 1 (shared) or bs (per-batch)
    cost = pl.CostEstimate(
        flops=4 * bs * heads * seq * seq * d_k,
        transcendentals=bs * heads * seq * seq,
        bytes_accessed=4 * bs * seq * heads * d_k * 2 + mask3.size * 2,
    )
    return pl.pallas_call(
        functools.partial(attention_kernel, group=group, d_k=d_k),
        out_shape=jax.ShapeDtypeStruct((bs, seq, heads * d_k), jnp.bfloat16),
        grid_spec=pltpu.PrefetchScalarGridSpec(
            num_scalar_prefetch=0,
            grid=(bs, hg),
            in_specs=[
                pl.BlockSpec((1, seq, gw), lambda b, h: (b, 0, q_off + h)),
                pl.BlockSpec((1, seq, gw), lambda b, h: (b, 0, k_off + h)),
                pl.BlockSpec((1, seq, gw), lambda b, h: (b, 0, v_off + h)),
                pl.BlockSpec((1, seq, seq), lambda b, h: (b if mb > 1 else 0, 0, 0)),
            ],
            out_specs=pl.BlockSpec((1, seq, gw), lambda b, h: (b, 0, h)),
        ),
        compiler_params=pltpu.CompilerParams(
            dimension_semantics=("parallel", "parallel"),
            vmem_limit_bytes=_VMEM_LIMIT),
        cost_estimate=cost,
    )(q_src, k_src, v_src, mask3)


# -----------------------------------------------------------------------------
# Forward passes
# -----------------------------------------------------------------------------
@functools.partial(jax.jit, static_argnames=("heads",))
def _mha_self_forward(x, mask3, wq, bq, wk, bk, wv, bv, wo, bo, *, heads):
    """Self-attention path (q is k is v): fused QKV projection reads x once."""
    bs, seq, d_model = x.shape
    d_k = d_model // heads
    scale = 1.0 / math.sqrt(d_k)
    tok = bs * seq
    group = _pick_head_group(heads, d_k, bs)
    hg = heads // group

    # Fold 1/sqrt(d_k) into Wq/bq (exact: power-of-two scale) and fuse Q|K|V weights
    # into a single lane-dense (d_model, 3*d_model) matmul.
    w_qkv = jnp.concatenate([wq * scale, wk, wv], axis=1).astype(jnp.bfloat16)
    b_qkv = jnp.concatenate([bq * scale, bk, bv], axis=1)
    qkv = _linear(x.reshape(tok, d_model), w_qkv, b_qkv, jnp.bfloat16)
    qkv = qkv.reshape(bs, seq, 3 * d_model)

    # Head split/merge happens inside the attention BlockSpecs: q/k/v head-groups are
    # contiguous (1, seq, group*d_k) column slabs of the fused projection output.
    ctx = _attention(qkv, qkv, qkv, 0, hg, 2 * hg, mask3,
                     heads=heads, d_k=d_k, group=group)          # (bs, seq, d_model) bf16
    out = _linear(ctx.reshape(tok, d_model), wo.astype(jnp.bfloat16), bo, x.dtype)
    return out.reshape(bs, seq, d_model)


@functools.partial(jax.jit, static_argnames=("heads",))
def _mha_general_forward(q_in, k_in, v_in, mask3,
                         wq, bq, wk, bk, wv, bv, wo, bo, *, heads):
    """General path (distinct q/k/v sources): three separate projections."""
    bs, seq, d_model = q_in.shape
    d_k = d_model // heads
    scale = 1.0 / math.sqrt(d_k)
    tok = bs * seq
    group = _pick_head_group(heads, d_k, bs)

    def proj(src, w, b):
        y = _linear(src.reshape(tok, d_model), w.astype(jnp.bfloat16), b, jnp.bfloat16)
        return y.reshape(bs, seq, d_model)

    qp = proj(q_in, wq * scale, bq * scale)      # scale folded into the q projection
    kp = proj(k_in, wk, bk)
    vp = proj(v_in, wv, bv)

    ctx = _attention(qp, kp, vp, 0, 0, 0, mask3, heads=heads, d_k=d_k, group=group)
    out = _linear(ctx.reshape(tok, d_model), wo.astype(jnp.bfloat16), bo, q_in.dtype)
    return out.reshape(bs, seq, d_model)


def multi_head_attention(q_in, k_in, v_in, params, mask=None, *, heads):
    """Eval-mode forward of the PyTorch MultiHeadAttention module."""
    bs, seq, _ = q_in.shape
    if mask is None:
        # Faithful to the reference default: torch.zeros(scores.size()).tril() is all
        # zeros, so every score is masked to -1e9 and attention is uniform over keys.
        mask = jnp.zeros((seq, seq), jnp.float32)
    mask = jnp.asarray(mask)
    # bf16 mask halves DMA / resident VMEM vs f32; 0/1 values are exact in bf16.
    if mask.ndim == 2:
        mask3 = mask.astype(jnp.bfloat16).reshape(1, seq, seq)       # shared across batch
    elif mask.ndim == 3:
        mask3 = mask.astype(jnp.bfloat16)                            # per-batch (bs, seq, seq)
    else:
        raise ValueError("mask must be (seq, seq) or (bs, seq, seq)")
    wq, bq, wk, bk, wv, bv, wo, bo = params
    if (q_in is k_in) and (k_in is v_in):
        return _mha_self_forward(q_in, mask3, wq, bq, wk, bk, wv, bv, wo, bo, heads=heads)
    return _mha_general_forward(q_in, k_in, v_in, mask3,
                                wq, bq, wk, bk, wv, bv, wo, bo, heads=heads)


# -----------------------------------------------------------------------------
# Params + pure-jnp reference (mirrors kernel precision: bf16 operands, f32 acc)
# -----------------------------------------------------------------------------
def init_params(key, d_model):
    """nn.Linear default init (uniform +/- 1/sqrt(fan_in)); weights stored (in, out)."""
    keys = jax.random.split(key, 8)
    lim = 1.0 / math.sqrt(d_model)

    def lin(kw, kb):
        w = jax.random.uniform(kw, (d_model, d_model), jnp.float32, -lim, lim)
        b = jax.random.uniform(kb, (1, d_model), jnp.float32, -lim, lim)
        return w, b

    wq, bq = lin(keys[0], keys[1])
    wk, bk = lin(keys[2], keys[3])
    wv, bv = lin(keys[4], keys[5])
    wo, bo = lin(keys[6], keys[7])
    return (wq, bq, wk, bk, wv, bv, wo, bo)


def reference_mha(q_in, k_in, v_in, params, mask, heads):
    wq, bq, wk, bk, wv, bv, wo, bo = params
    bs, seq, d_model = q_in.shape
    d_k = d_model // heads
    bf = jnp.bfloat16

    def lin(x, w, b):
        y = jnp.dot(x.reshape(-1, d_model).astype(bf), w.astype(bf),
                    preferred_element_type=jnp.float32) + b
        return y.astype(bf).reshape(bs, seq, d_model)

    def split(t):                    # (bs, seq, d_model) -> (bs, heads, seq, d_k)
        return t.reshape(bs, seq, heads, d_k).transpose(0, 2, 1, 3)

    q = split(lin(q_in, wq, bq))
    k = split(lin(k_in, wk, bk))
    v = split(lin(v_in, wv, bv))
    s = jnp.einsum("bhqd,bhkd->bhqk", q, k,
                   preferred_element_type=jnp.float32) / math.sqrt(d_k)
    m = mask[None, None] if mask.ndim == 2 else mask[:, None]
    s = jnp.where(m == 0, -1e9, s)
    p = jax.nn.softmax(s, axis=-1)
    ctx = jnp.einsum("bhqk,bhkd->bhqd", p.astype(bf), v,
                     preferred_element_type=jnp.float32)
    concat = ctx.transpose(0, 2, 1, 3).reshape(bs * seq, d_model).astype(bf)
    out = jnp.dot(concat, wo.astype(bf), preferred_element_type=jnp.float32) + bo
    return out.reshape(bs, seq, d_model)


# -----------------------------------------------------------------------------
if __name__ == "__main__":
    d_model, heads = 512, 8          # module-spec constants
    batch, seq = 2, 16               # small, layout-friendly demo shapes

    key = jax.random.PRNGKey(0)
    kx, kq, kk, kv, kp = jax.random.split(key, 5)
    x   = jax.random.normal(kx, (batch, seq, d_model), jnp.float32)
    q_x = jax.random.normal(kq, (batch, seq, d_model), jnp.float32)
    k_x = jax.random.normal(kk, (batch, seq, d_model), jnp.float32)
    v_x = jax.random.normal(kv, (batch, seq, d_model), jnp.float32)
    params = init_params(kp, d_model)

    # 1) Self-attention (fused QKV path), mask=None (faithful all-zeros default).
    out = multi_head_attention(x, x, x, params, mask=None, heads=heads)
    jax.block_until_ready(out)
    assert out.shape == (batch, seq, d_model)
    ref = reference_mha(x, x, x, params, jnp.zeros((seq, seq), jnp.float32), heads)
    assert jnp.allclose(out, ref, atol=2e-2, rtol=2e-2), "mask=None path mismatch"

    # 2) Self-attention (fused QKV path) with an explicit causal mask.
    causal = jnp.tril(jnp.ones((seq, seq), jnp.float32))
    out_c = multi_head_attention(x, x, x, params, mask=causal, heads=heads)
    jax.block_until_ready(out_c)
    ref_c = reference_mha(x, x, x, params, causal, heads)
    assert jnp.allclose(out_c, ref_c, atol=2e-2, rtol=2e-2), "causal mask path mismatch"

    # 3) Distinct q/k/v (separate-projection path) with a per-batch (bs, seq, seq) mask.
    mask_b = jnp.tril(jnp.ones((batch, seq, seq), jnp.float32))
    out_g = multi_head_attention(q_x, k_x, v_x, params, mask=mask_b, heads=heads)
    jax.block_until_ready(out_g)
    ref_g = reference_mha(q_x, k_x, v_x, params, mask_b, heads)
    assert jnp.allclose(out_g, ref_g, atol=2e-2, rtol=2e-2), "per-batch mask path mismatch"

    print("KERNEL_OK")
</pallas_src>

<mosaic_0001>
module attributes {stable_mosaic.version = 11 : i64} {
  func.func @linear_kernel(%arg0: i32, %arg1: memref<16x512xbf16, #tpu.memory_space<vmem>>, %arg2: memref<512x512xbf16, #tpu.memory_space<vmem>>, %arg3: memref<1x512xf32, #tpu.memory_space<vmem>>, %arg4: memref<16x512xf32, #tpu.memory_space<vmem>>) attributes {dimension_semantics = [#tpu.dimension_semantics<parallel>], iteration_bounds = array<i64: 2>, scalar_prefetch = 0 : i64, scratch_operands = 0 : i64, tpu.core_type = #tpu.core_type<tc>, window_params = [{transform_indices = @transform_0, window_bounds = array<i64: 16, 512>}, {pipeline_mode = #tpu.pipeline_mode<synchronous>, transform_indices = @transform_1, window_bounds = array<i64: 512, 512>}, {pipeline_mode = #tpu.pipeline_mode<synchronous>, transform_indices = @transform_2, window_bounds = array<i64: 1, 512>}, {transform_indices = @transform_3, window_bounds = array<i64: 16, 512>}]} {
    %c0 = arith.constant 0 : index
    %c0_0 = arith.constant 0 : index
    %0 = vector.load %arg1[%c0, %c0_0] : memref<16x512xbf16, #tpu.memory_space<vmem>>, vector<16x512xbf16>
    %c0_1 = arith.constant 0 : index
    %c0_2 = arith.constant 0 : index
    %1 = vector.load %arg2[%c0_1, %c0_2] : memref<512x512xbf16, #tpu.memory_space<vmem>>, vector<512x512xbf16>
    %cst = arith.constant dense<0.000000e+00> : vector<16x512xf32>
    %2 = tpu.matmul %0, %1, %cst {dimension_numbers = #tpu.dot_dimension_numbers<[1], [0], [0], [1], [0, 0, 1, 1], [], []>} : vector<16x512xbf16>, vector<512x512xbf16>, vector<16x512xf32> -> vector<16x512xf32>
    %c0_3 = arith.constant 0 : index
    %c0_4 = arith.constant 0 : index
    %3 = vector.load %arg3[%c0_3, %c0_4] : memref<1x512xf32, #tpu.memory_space<vmem>>, vector<1x512xf32>
    %4 = vector.broadcast %3 : vector<1x512xf32> to vector<16x512xf32>
    %5 = arith.addf %2, %4 : vector<16x512xf32>
    %c0_5 = arith.constant 0 : index
    %c0_6 = arith.constant 0 : index
    %6 = vector.load %arg4[%c0_5, %c0_6] : memref<16x512xf32, #tpu.memory_space<vmem>>, vector<16x512xf32>
    tpu.vector_store %arg4[%c0_5, %c0_6], %5 {strides = array<i32>} : memref<16x512xf32, #tpu.memory_space<vmem>>, vector<16x512xf32>,
    return
  }
  func.func @transform_0(%arg0: i32) -> (i32, i32) {
    %c0_i32 = arith.constant 0 : i32
    %c0_i32_0 = arith.constant 0 : i32
    return %arg0, %c0_i32 : i32, i32
  }
  func.func @transform_1(%arg0: i32) -> (i32, i32) {
    %c0_i32 = arith.constant 0 : i32
    %c0_i32_0 = arith.constant 0 : i32
    %c0_i32_1 = arith.constant 0 : i32
    return %c0_i32, %c0_i32_0 : i32, i32
  }
  func.func @transform_2(%arg0: i32) -> (i32, i32) {
    %c0_i32 = arith.constant 0 : i32
    %c0_i32_0 = arith.constant 0 : i32
    %c0_i32_1 = arith.constant 0 : i32
    return %c0_i32, %c0_i32_0 : i32, i32
  }
  func.func @transform_3(%arg0: i32) -> (i32, i32) {
    %c0_i32 = arith.constant 0 : i32
    %c0_i32_0 = arith.constant 0 : i32
    return %arg0, %c0_i32 : i32, i32
  }
}

module attributes {stable_mosaic.version = 11 : i64} {
  func.func @attention_kernel(%arg0: i32, %arg1: i32, %arg2: memref<1x16x256xbf16, #tpu.memory_space<vmem>>, %arg3: memref<1x16x256xbf16, #tpu.memory_space<vmem>>, %arg4: memref<1x16x256xbf16, #tpu.memory_space<vmem>>, %arg5: memref<1x16x16xbf16, #tpu.memory_space<vmem>>, %arg6: memref<1x16x256xbf16, #tpu.memory_space<vmem>>) attributes {dimension_semantics = [#tpu.dimension_semantics<parallel>, #tpu.dimension_semantics<parallel>], iteration_bounds = array<i64: 2, 2>, scalar_prefetch = 0 : i64, scratch_operands = 0 : i64, tpu.core_type = #tpu.core_type<tc>, window_params = [{transform_indices = @transform_0, window_bounds = array<i64: 1, 16, 256>}, {transform_indices = @transform_1, window_bounds = array<i64: 1, 16, 256>}, {transform_indices = @transform_2, window_bounds = array<i64: 1, 16, 256>}, {pipeline_mode = #tpu.pipeline_mode<synchronous>, transform_indices = @transform_3, window_bounds = array<i64: 1, 16, 16>}, {transform_indices = @transform_4, window_bounds = array<i64: 1, 16, 256>}]} {
    %c0 = arith.constant 0 : index
    %c0_0 = arith.constant 0 : index
    %c0_1 = arith.constant 0 : index
    %0 = vector.load %arg5[%c0, %c0_0, %c0_1] : memref<1x16x16xbf16, #tpu.memory_space<vmem>>, vector<1x16x16xbf16>
    %1 = vector.shape_cast %0 : vector<1x16x16xbf16> to vector<16x16xbf16>
    %c0_2 = arith.constant 0 : index
    %c0_3 = arith.constant 0 : index
    %c0_4 = arith.constant 0 : index
    %2 = vector.load %arg2[%c0_2, %c0_3, %c0_4] : memref<1x16x256xbf16, #tpu.memory_space<vmem>>, vector<1x16x64xbf16>
    %3 = vector.shape_cast %2 : vector<1x16x64xbf16> to vector<16x64xbf16>
    %c0_5 = arith.constant 0 : index
    %c0_6 = arith.constant 0 : index
    %c0_7 = arith.constant 0 : index
    %4 = vector.load %arg3[%c0_5, %c0_6, %c0_7] : memref<1x16x256xbf16, #tpu.memory_space<vmem>>, vector<1x16x64xbf16>
    %5 = vector.shape_cast %4 : vector<1x16x64xbf16> to vector<16x64xbf16>
    %c0_8 = arith.constant 0 : index
    %c0_9 = arith.constant 0 : index
    %c0_10 = arith.constant 0 : index
    %6 = vector.load %arg4[%c0_8, %c0_9, %c0_10] : memref<1x16x256xbf16, #tpu.memory_space<vmem>>, vector<1x16x64xbf16>
    %7 = vector.shape_cast %6 : vector<1x16x64xbf16> to vector<16x64xbf16>
    %cst = arith.constant dense<0.000000e+00> : vector<16x16xf32>
    %8 = tpu.matmul %3, %5, %cst {dimension_numbers = #tpu.dot_dimension_numbers<[1], [1], [0], [0], [0, 0, 1, 0], [], []>} : vector<16x64xbf16>, vector<16x64xbf16>, vector<16x16xf32> -> vector<16x16xf32>
    %cst_11 = arith.constant 0.000000e+00 : bf16
    %9 = vector.broadcast %cst_11 : bf16 to vector<16x16xbf16>
    %10 = arith.cmpf oeq, %1, %9 : vector<16x16xbf16>
    %cst_12 = arith.constant -1.000000e+09 : f32
    %11 = vector.broadcast %cst_12 : f32 to vector<16x16xf32>
    %12 = arith.select %10, %11, %8 : vector<16x16xi1>, vector<16x16xf32>
    %cst_13 = arith.constant dense<0xFF800000> : vector<16xf32>
    %13 = vector.multi_reduction <maximumf>, %12, %cst_13 [1] : vector<16x16xf32> to vector<16xf32>
    %14 = vector.shape_cast %13 : vector<16xf32> to vector<16x1xf32>
    %15 = vector.broadcast %14 : vector<16x1xf32> to vector<16x16xf32>
    %16 = arith.subf %12, %15 : vector<16x16xf32>
    %17 = math.exp %16 : vector<16x16xf32>
    %cst_14 = arith.constant dense<0.000000e+00> : vector<16xf32>
    %18 = vector.multi_reduction <add>, %17, %cst_14 [1] : vector<16x16xf32> to vector<16xf32>
    %19 = vector.shape_cast %18 : vector<16xf32> to vector<16x1xf32>
    %20 = arith.truncf %17 : vector<16x16xf32> to vector<16x16xbf16>
    %cst_15 = arith.constant dense<0.000000e+00> : vector<16x64xf32>
    %21 = tpu.matmul %20, %7, %cst_15 {dimension_numbers = #tpu.dot_dimension_numbers<[1], [0], [0], [1], [0, 0, 1, 1], [], []>} : vector<16x16xbf16>, vector<16x64xbf16>, vector<16x64xf32> -> vector<16x64xf32>
    %22 = tpu.reciprocal %19 {approx = true} : vector<16x1xf32> -> vector<16x1xf32>
    %23 = vector.broadcast %22 : vector<16x1xf32> to vector<16x64xf32>
    %24 = arith.mulf %21, %23 : vector<16x64xf32>
    %c0_16 = arith.constant 0 : index
    %c0_17 = arith.constant 0 : index
    %c64 = arith.constant 64 : index
    %25 = vector.load %arg2[%c0_16, %c0_17, %c64] : memref<1x16x256xbf16, #tpu.memory_space<vmem>>, vector<1x16x64xbf16>
    %26 = vector.shape_cast %25 : vector<1x16x64xbf16> to vector<16x64xbf16>
    %c0_18 = arith.constant 0 : index
    %c0_19 = arith.constant 0 : index
    %c64_20 = arith.constant 64 : index
    %27 = vector.load %arg3[%c0_18, %c0_19, %c64_20] : memref<1x16x256xbf16, #tpu.memory_space<vmem>>, vector<1x16x64xbf16>
    %28 = vector.shape_cast %27 : vector<1x16x64xbf16> to vector<16x64xbf16>
    %c0_21 = arith.constant 0 : index
    %c0_22 = arith.constant 0 : index
    %c64_23 = arith.constant 64 : index
    %29 = vector.load %arg4[%c0_21, %c0_22, %c64_23] : memref<1x16x256xbf16, #tpu.memory_space<vmem>>, vector<1x16x64xbf16>
    %30 = vector.shape_cast %29 : vector<1x16x64xbf16> to vector<16x64xbf16>
    %cst_24 = arith.constant dense<0.000000e+00> : vector<16x16xf32>
    %31 = tpu.matmul %26, %28, %cst_24 {dimension_numbers = #tpu.dot_dimension_numbers<[1], [1], [0], [0], [0, 0, 1, 0], [], []>} : vector<16x64xbf16>, vector<16x64xbf16>, vector<16x16xf32> -> vector<16x16xf32>
    %cst_25 = arith.constant 0.000000e+00 : bf16
    %32 = vector.broadcast %cst_25 : bf16 to vector<16x16xbf16>
    %33 = arith.cmpf oeq, %1, %32 : vector<16x16xbf16>
    %cst_26 = arith.constant -1.000000e+09 : f32
    %34 = vector.broadcast %cst_26 : f32 to vector<16x16xf32>
    %35 = arith.select %33, %34, %31 : vector<16x16xi1>, vector<16x16xf32>
    %cst_27 = arith.constant dense<0xFF800000> : vector<16xf32>
    %36 = vector.multi_reduction <maximumf>, %35, %cst_27 [1] : vector<16x16xf32> to vector<16xf32>
    %37 = vector.shape_cast %36 : vector<16xf32> to vector<16x1xf32>
    %38 = vector.broadcast %37 : vector<16x1xf32> to vector<16x16xf32>
    %39 = arith.subf %35, %38 : vector<16x16xf32>
    %40 = math.exp %39 : vector<16x16xf32>
    %cst_28 = arith.constant dense<0.000000e+00> : vector<16xf32>
    %41 = vector.multi_reduction <add>, %40, %cst_28 [1] : vector<16x16xf32> to vector<16xf32>
    %42 = vector.shape_cast %41 : vector<16xf32> to vector<16x1xf32>
    %43 = arith.truncf %40 : vector<16x16xf32> to vector<16x16xbf16>
    %cst_29 = arith.constant dense<0.000000e+00> : vector<16x64xf32>
    %44 = tpu.matmul %43, %30, %cst_29 {dimension_numbers = #tpu.dot_dimension_numbers<[1], [0], [0], [1], [0, 0, 1, 1], [], []>} : vector<16x16xbf16>, vector<16x64xbf16>, vector<16x64xf32> -> vector<16x64xf32>
    %45 = tpu.reciprocal %42 {approx = true} : vector<16x1xf32> -> vector<16x1xf32>
    %46 = vector.broadcast %45 : vector<16x1xf32> to vector<16x64xf32>
    %47 = arith.mulf %44, %46 : vector<16x64xf32>
    %c0_30 = arith.constant 0 : index
    %c0_31 = arith.constant 0 : index
    %c128 = arith.constant 128 : index
    %48 = vector.load %arg2[%c0_30, %c0_31, %c128] : memref<1x16x256xbf16, #tpu.memory_space<vmem>>, vector<1x16x64xbf16>
    %49 = vector.shape_cast %48 : vector<1x16x64xbf16> to vector<16x64xbf16>
    %c0_32 = arith.constant 0 : index
    %c0_33 = arith.constant 0 : index
    %c128_34 = arith.constant 128 : index
    %50 = vector.load %arg3[%c0_32, %c0_33, %c128_34] : memref<1x16x256xbf16, #tpu.memory_space<vmem>>, vector<1x16x64xbf16>
    %51 = vector.shape_cast %50 : vector<1x16x64xbf16> to vector<16x64xbf16>
    %c0_35 = arith.constant 0 : index
    %c0_36 = arith.constant 0 : index
    %c128_37 = arith.constant 128 : index
    %52 = vector.load %arg4[%c0_35, %c0_36, %c128_37] : memref<1x16x256xbf16, #tpu.memory_space<vmem>>, vector<1x16x64xbf16>
    %53 = vector.shape_cast %52 : vector<1x16x64xbf16> to vector<16x64xbf16>
    %cst_38 = arith.constant dense<0.000000e+00> : vector<16x16xf32>
    %54 = tpu.matmul %49, %51, %cst_38 {dimension_numbers = #tpu.dot_dimension_numbers<[1], [1], [0], [0], [0, 0, 1, 0], [], []>} : vector<16x64xbf16>, vector<16x64xbf16>, vector<16x16xf32> -> vector<16x16xf32>
    %cst_39 = arith.constant 0.000000e+00 : bf16
    %55 = vector.broadcast %cst_39 : bf16 to vector<16x16xbf16>
    %56 = arith.cmpf oeq, %1, %55 : vector<16x16xbf16>
    %cst_40 = arith.constant -1.000000e+09 : f32
    %57 = vector.broadcast %cst_40 : f32 to vector<16x16xf32>
    %58 = arith.select %56, %57, %54 : vector<16x16xi1>, vector<16x16xf32>
    %cst_41 = arith.constant dense<0xFF800000> : vector<16xf32>
    %59 = vector.multi_reduction <maximumf>, %58, %cst_41 [1] : vector<16x16xf32> to vector<16xf32>
    %60 = vector.shape_cast %59 : vector<16xf32> to vector<16x1xf32>
    %61 = vector.broadcast %60 : vector<16x1xf32> to vector<16x16xf32>
    %62 = arith.subf %58, %61 : vector<16x16xf32>
    %63 = math.exp %62 : vector<16x16xf32>
    %cst_42 = arith.constant dense<0.000000e+00> : vector<16xf32>
    %64 = vector.multi_reduction <add>, %63, %cst_42 [1] : vector<16x16xf32> to vector<16xf32>
    %65 = vector.shape_cast %64 : vector<16xf32> to vector<16x1xf32>
    %66 = arith.truncf %63 : vector<16x16xf32> to vector<16x16xbf16>
    %cst_43 = arith.constant dense<0.000000e+00> : vector<16x64xf32>
    %67 = tpu.matmul %66, %53, %cst_43 {dimension_numbers = #tpu.dot_dimension_numbers<[1], [0], [0], [1], [0, 0, 1, 1], [], []>} : vector<16x16xbf16>, vector<16x64xbf16>, vector<16x64xf32> -> vector<16x64xf32>
    %68 = tpu.reciprocal %65 {approx = true} : vector<16x1xf32> -> vector<16x1xf32>
    %69 = vector.broadcast %68 : vector<16x1xf32> to vector<16x64xf32>
    %70 = arith.mulf %67, %69 : vector<16x64xf32>
    %c0_44 = arith.constant 0 : index
    %c0_45 = arith.constant 0 : index
    %c192 = arith.constant 192 : index
    %71 = vector.load %arg2[%c0_44, %c0_45, %c192] : memref<1x16x256xbf16, #tpu.memory_space<vmem>>, vector<1x16x64xbf16>
    %72 = vector.shape_cast %71 : vector<1x16x64xbf16> to vector<16x64xbf16>
    %c0_46 = arith.constant 0 : index
    %c0_47 = arith.constant 0 : index
    %c192_48 = arith.constant 192 : index
    %73 = vector.load %arg3[%c0_46, %c0_47, %c192_48] : memref<1x16x256xbf16, #tpu.memory_space<vmem>>, vector<1x16x64xbf16>
    %74 = vector.shape_cast %73 : vector<1x16x64xbf16> to vector<16x64xbf16>
    %c0_49 = arith.constant 0 : index
    %c0_50 = arith.constant 0 : index
    %c192_51 = arith.constant 192 : index
    %75 = vector.load %arg4[%c0_49, %c0_50, %c192_51] : memref<1x16x256xbf16, #tpu.memory_space<vmem>>, vector<1x16x64xbf16>
    %76 = vector.shape_cast %75 : vector<1x16x64xbf16> to vector<16x64xbf16>
    %cst_52 = arith.constant dense<0.000000e+00> : vector<16x16xf32>
    %77 = tpu.matmul %72, %74, %cst_52 {dimension_numbers = #tpu.dot_dimension_numbers<[1], [1], [0], [0], [0, 0, 1, 0], [], []>} : vector<16x64xbf16>, vector<16x64xbf16>, vector<16x16xf32> -> vector<16x16xf32>
    %cst_53 = arith.constant 0.000000e+00 : bf16
    %78 = vector.broadcast %cst_53 : bf16 to vector<16x16xbf16>
    %79 = arith.cmpf oeq, %1, %78 : vector<16x16xbf16>
    %cst_54 = arith.constant -1.000000e+09 : f32
    %80 = vector.broadcast %cst_54 : f32 to vector<16x16xf32>
    %81 = arith.select %79, %80, %77 : vector<16x16xi1>, vector<16x16xf32>
    %cst_55 = arith.constant dense<0xFF800000> : vector<16xf32>
    %82 = vector.multi_reduction <maximumf>, %81, %cst_55 [1] : vector<16x16xf32> to vector<16xf32>
    %83 = vector.shape_cast %82 : vector<16xf32> to vector<16x1xf32>
    %84 = vector.broadcast %83 : vector<16x1xf32> to vector<16x16xf32>
    %85 = arith.subf %81, %84 : vector<16x16xf32>
    %86 = math.exp %85 : vector<16x16xf32>
    %cst_56 = arith.constant dense<0.000000e+00> : vector<16xf32>
    %87 = vector.multi_reduction <add>, %86, %cst_56 [1] : vector<16x16xf32> to vector<16xf32>
    %88 = vector.shape_cast %87 : vector<16xf32> to vector<16x1xf32>
    %89 = arith.truncf %86 : vector<16x16xf32> to vector<16x16xbf16>
    %cst_57 = arith.constant dense<0.000000e+00> : vector<16x64xf32>
    %90 = tpu.matmul %89, %76, %cst_57 {dimension_numbers = #tpu.dot_dimension_numbers<[1], [0], [0], [1], [0, 0, 1, 1], [], []>} : vector<16x16xbf16>, vector<16x64xbf16>, vector<16x64xf32> -> vector<16x64xf32>
    %91 = tpu.reciprocal %88 {approx = true} : vector<16x1xf32> -> vector<16x1xf32>
    %92 = vector.broadcast %91 : vector<16x1xf32> to vector<16x64xf32>
    %93 = arith.mulf %90, %92 : vector<16x64xf32>
    %94 = tpu.concatenate %24, %47, %70, %93 in 1 : vector<16x64xf32>, vector<16x64xf32>, vector<16x64xf32>, vector<16x64xf32> -> vector<16x256xf32>
    %95 = arith.truncf %94 : vector<16x256xf32> to vector<16x256xbf16>
    %c0_58 = arith.constant 0 : index
    %c0_59 = arith.constant 0 : index
    %c0_60 = arith.constant 0 : index
    %96 = vector.load %arg6[%c0_58, %c0_59, %c0_60] : memref<1x16x256xbf16, #tpu.memory_space<vmem>>, vector<1x16x256xbf16>
    %97 = vector.shape_cast %96 : vector<1x16x256xbf16> to vector<16x256xbf16>
    %98 = vector.shape_cast %95 : vector<16x256xbf16> to vector<1x16x256xbf16>
    tpu.vector_store %arg6[%c0_58, %c0_59, %c0_60], %98 {strides = array<i32>} : memref<1x16x256xbf16, #tpu.memory_space<vmem>>, vector<1x16x256xbf16>,
    return
  }
  func.func @transform_0(%arg0: i32, %arg1: i32) -> (i32, i32, i32) {
    %c0_i32 = arith.constant 0 : i32
    %0 = arith.addi %c0_i32, %arg1 : i32
    %c0_i32_0 = arith.constant 0 : i32
    %c0_i32_1 = arith.constant 0 : i32
    return %arg0, %c0_i32_0, %0 : i32, i32, i32
  }
  func.func @transform_1(%arg0: i32, %arg1: i32) -> (i32, i32, i32) {
    %c2_i32 = arith.constant 2 : i32
    %0 = arith.addi %c2_i32, %arg1 : i32
    %c0_i32 = arith.constant 0 : i32
    %c0_i32_0 = arith.constant 0 : i32
    return %arg0, %c0_i32, %0 : i32, i32, i32
  }
  func.func @transform_2(%arg0: i32, %arg1: i32) -> (i32, i32, i32) {
    %c4_i32 = arith.constant 4 : i32
    %0 = arith.addi %c4_i32, %arg1 : i32
    %c0_i32 = arith.constant 0 : i32
    %c0_i32_0 = arith.constant 0 : i32
    return %arg0, %c0_i32, %0 : i32, i32, i32
  }
  func.func @transform_3(%arg0: i32, %arg1: i32) -> (i32, i32, i32) {
    %c0_i32 = arith.constant 0 : i32
    %c0_i32_0 = arith.constant 0 : i32
    %c0_i32_1 = arith.constant 0 : i32
    %c0_i32_2 = arith.constant 0 : i32
    return %c0_i32, %c0_i32_0, %c0_i32_1 : i32, i32, i32
  }
  func.func @transform_4(%arg0: i32, %arg1: i32) -> (i32, i32, i32) {
    %c0_i32 = arith.constant 0 : i32
    %c0_i32_0 = arith.constant 0 : i32
    return %arg0, %c0_i32, %arg1 : i32, i32, i32
  }
}

module attributes {stable_mosaic.version = 11 : i64} {
  func.func @linear_kernel(%arg0: i32, %arg1: memref<16x512xf32, #tpu.memory_space<vmem>>, %arg2: memref<512x1536xbf16, #tpu.memory_space<vmem>>, %arg3: memref<1x1536xf32, #tpu.memory_space<vmem>>, %arg4: memref<16x1536xbf16, #tpu.memory_space<vmem>>) attributes {dimension_semantics = [#tpu.dimension_semantics<parallel>], iteration_bounds = array<i64: 2>, scalar_prefetch = 0 : i64, scratch_operands = 0 : i64, tpu.core_type = #tpu.core_type<tc>, window_params = [{transform_indices = @transform_0, window_bounds = array<i64: 16, 512>}, {pipeline_mode = #tpu.pipeline_mode<synchronous>, transform_indices = @transform_1, window_bounds = array<i64: 512, 1536>}, {pipeline_mode = #tpu.pipeline_mode<synchronous>, transform_indices = @transform_2, window_bounds = array<i64: 1, 1536>}, {transform_indices = @transform_3, window_bounds = array<i64: 16, 1536>}]} {
    %c0 = arith.constant 0 : index
    %c0_0 = arith.constant 0 : index
    %0 = vector.load %arg1[%c0, %c0_0] : memref<16x512xf32, #tpu.memory_space<vmem>>, vector<16x512xf32>
    %1 = arith.truncf %0 : vector<16x512xf32> to vector<16x512xbf16>
    %c0_1 = arith.constant 0 : index
    %c0_2 = arith.constant 0 : index
    %2 = vector.load %arg2[%c0_1, %c0_2] : memref<512x1536xbf16, #tpu.memory_space<vmem>>, vector<512x1536xbf16>
    %cst = arith.constant dense<0.000000e+00> : vector<16x1536xf32>
    %3 = tpu.matmul %1, %2, %cst {dimension_numbers = #tpu.dot_dimension_numbers<[1], [0], [0], [1], [0, 0, 1, 1], [], []>} : vector<16x512xbf16>, vector<512x1536xbf16>, vector<16x1536xf32> -> vector<16x1536xf32>
    %c0_3 = arith.constant 0 : index
    %c0_4 = arith.constant 0 : index
    %4 = vector.load %arg3[%c0_3, %c0_4] : memref<1x1536xf32, #tpu.memory_space<vmem>>, vector<1x1536xf32>
    %5 = vector.broadcast %4 : vector<1x1536xf32> to vector<16x1536xf32>
    %6 = arith.addf %3, %5 : vector<16x1536xf32>
    %7 = arith.truncf %6 : vector<16x1536xf32> to vector<16x1536xbf16>
    %c0_5 = arith.constant 0 : index
    %c0_6 = arith.constant 0 : index
    %8 = vector.load %arg4[%c0_5, %c0_6] : memref<16x1536xbf16, #tpu.memory_space<vmem>>, vector<16x1536xbf16>
    tpu.vector_store %arg4[%c0_5, %c0_6], %7 {strides = array<i32>} : memref<16x1536xbf16, #tpu.memory_space<vmem>>, vector<16x1536xbf16>,
    return
  }
  func.func @transform_0(%arg0: i32) -> (i32, i32) {
    %c0_i32 = arith.constant 0 : i32
    %c0_i32_0 = arith.constant 0 : i32
    return %arg0, %c0_i32 : i32, i32
  }
  func.func @transform_1(%arg0: i32) -> (i32, i32) {
    %c0_i32 = arith.constant 0 : i32
    %c0_i32_0 = arith.constant 0 : i32
    %c0_i32_1 = arith.constant 0 : i32
    return %c0_i32, %c0_i32_0 : i32, i32
  }
  func.func @transform_2(%arg0: i32) -> (i32, i32) {
    %c0_i32 = arith.constant 0 : i32
    %c0_i32_0 = arith.constant 0 : i32
    %c0_i32_1 = arith.constant 0 : i32
    return %c0_i32, %c0_i32_0 : i32, i32
  }
  func.func @transform_3(%arg0: i32) -> (i32, i32) {
    %c0_i32 = arith.constant 0 : i32
    %c0_i32_0 = arith.constant 0 : i32
    return %arg0, %c0_i32 : i32, i32
  }
}

</mosaic_0001>

<llo_original>
// kernel: _mha_self_forward.4
$region0: #{_mha_self_forward.4}
  #allocation0 [shape = 'u32[]', space=smem, size = 0x4, offset = 0x4, fixed_abs, tag = 'smem constant byte address 0x4 - core index']
  #allocation1 [shape = 'u32[144,128]{1,0:T(1,128)}', space=vmem, size = 0x12000, scoped, tag = 'internal scratch']
  %s0 = inlined_call_operand.vmem [shape: bf16[2,16,1536], index: 0, kind: input, shape index: {}, may-alias: {0,1,2}]
  %s1 = inlined_call_operand.vmem [shape: bf16[2,16,1536], index: 1, kind: input, shape index: {}, may-alias: {0,1,2}]
  %s2 = inlined_call_operand.vmem [shape: bf16[2,16,1536], index: 2, kind: input, shape index: {}, may-alias: {0,1,2}]
  %s3 = inlined_call_operand.vmem [shape: bf16[1,16,16], index: 3, kind: input, shape index: {}]
  %s4 = inlined_call_operand.vmem [shape: bf16[2,16,512], index: 4, kind: output, shape index: {}]
  %s5 = sld [smem:[#allocation0]]
  $region197: #{_mha_self_forward.4} parent=0
    _
  %s7 = ssub.s32 1, %s5
  %s8 = scalar_select 0, %s7, %s5
  $region1: #{_mha_self_forward.4} parent=0
    #allocation2 [shape = 'u8[16384]{0}', space=vmem, size = 0x4000, scoped, tag = 'input window, operand 0']
    #allocation3 [shape = 'u8[16384]{0}', space=vmem, size = 0x4000, scoped, tag = 'input window, operand 1']
    #allocation4 [shape = 'u8[16384]{0}', space=vmem, size = 0x4000, scoped, tag = 'input window, operand 2']
    #allocation5 [shape = 'u8[16384]{0}', space=vmem, size = 0x4000, scoped, tag = 'output window, operand 0']
    loop: start=0, step=1, limit=6
    $region2: #{_mha_self_forward.4} parent=1 // loop_pre_header
      _
    $region3: #{_mha_self_forward.4} parent=1 // loop_header
      %s10 = sphi 0, %s14
      %p11 = scmp.ge.s32.totalorder %s10, 6
      %s17 = sphi 0, %s29
      %s18 = sphi 0, %s25
      %s19 = sphi 0, %s17
      %s20 = sphi 0, %s18
      %s21 = sphi 0, %s19
      %s22 = sphi 0, %s20
      %s34 = sphi 0, %s36
      %s37 = sphi 0, %s34
      %s38 = sphi 0, %s37
      %s54 = sphi 0, %s38
      %s64 = sphi 0, %s66
      %s67 = sphi 0, %s64
      %s68 = sphi 0, %s67
      %s84 = sphi 0, %s68
      %s94 = sphi 0, %s96
      %s97 = sphi 0, %s94
      %s98 = sphi 0, %s97
      %s114 = sphi 0, %s98
      %s118 = sphi 0, %s118
      %s120 = sphi 0, %s118
      %s121 = sphi 0, %s120
      %s135 = sphi 0, %s121
      %s143 = sphi 0, %s145
      %s146 = sphi 0, %s143
      %s147 = sphi 0, %s146
      %s163 = sphi 0, %s147
    $region4: #{_mha_self_forward.4} parent=1 // loop_header_branch
      %13 = sbr.rel (%p11) target = $region8
    $region5: #{_mha_self_forward.4} parent=1 // loop_body
      %s15 = ssub.s32 %s10, 1
      %s16 = ssub.s32 %s10, 2
      %s23 = sadd.s32 1, %s18
      %p24 = scmp.ge.s32.totalorder %s23, 2
      %s25 = scalar_select %p24, 0, %s23
      %s26 = sadd.s32 1, %s17
      %s27 = scalar_select %p24, %s26, %s17
      %p28 = scmp.ge.s32.totalorder %s27, 2
      %s29 = scalar_select %p28, 0, %s27
      %s30 = ssub.s32 %s17, %s29
      %s31 = ssub.s32 %s18, %s25
      %s32 = sor.u32 %s30, %s31
      %p33 = scmp.eq.s32.totalorder %s32, 0
      %s35 = sadd.s32 %s34, 1
      %s36 = scalar_select %p33, %s34, %s35
      %p39 = pneg %p33
      %p40 = scmp.eq.s32.totalorder %s10, 3
      %p41 = por %p39, %p40
      %p42 = scmp.ne.s32.totalorder %s34, %s37
      %p43 = scmp.eq.s32.totalorder %s10, 0
      %p44 = por %p42, %p43
      %p45 = scmp.ne.s32.totalorder %s34, %s37
      %p46 = scmp.eq.s32.totalorder %s15, 3
      %p47 = por %p45, %p46
      %p48 = scmp.ne.s32.totalorder %s37, %s38
      %p49 = scmp.eq.s32.totalorder %s15, 0
      %p50 = por %p48, %p49
      %p51 = scmp.ne.s32.totalorder %s37, %s38
      %p52 = scmp.eq.s32.totalorder %s16, 3
      %p53 = por %p51, %p52
      %p55 = scmp.ne.s32.totalorder %s38, %s54
      %p56 = scmp.eq.s32.totalorder %s16, 0
      %p57 = por %p55, %p56
      %s58 = sadd.s32 %s18, 2
      %s59 = sadd.s32 %s25, 2
      %s60 = ssub.s32 %s17, %s29
      %s61 = ssub.s32 %s58, %s59
      %s62 = sor.u32 %s60, %s61
      %p63 = scmp.eq.s32.totalorder %s62, 0
      %s65 = sadd.s32 %s64, 1
      %s66 = scalar_select %p63, %s64, %s65
      %p69 = pneg %p63
      %p70 = scmp.eq.s32.totalorder %s10, 3
      %p71 = por %p69, %p70
      %p72 = scmp.ne.s32.totalorder %s64, %s67
      %p73 = scmp.eq.s32.totalorder %s10, 0
      %p74 = por %p72, %p73
      %p75 = scmp.ne.s32.totalorder %s64, %s67
      %p76 = scmp.eq.s32.totalorder %s15, 3
      %p77 = por %p75, %p76
      %p78 = scmp.ne.s32.totalorder %s67, %s68
      %p79 = scmp.eq.s32.totalorder %s15, 0
      %p80 = por %p78, %p79
      %p81 = scmp.ne.s32.totalorder %s67, %s68
      %p82 = scmp.eq.s32.totalorder %s16, 3
      %p83 = por %p81, %p82
      %p85 = scmp.ne.s32.totalorder %s68, %s84
      %p86 = scmp.eq.s32.totalorder %s16, 0
      %p87 = por %p85, %p86
      %s88 = sadd.s32 %s18, 4
      %s89 = sadd.s32 %s25, 4
      %s90 = ssub.s32 %s17, %s29
      %s91 = ssub.s32 %s88, %s89
      %s92 = sor.u32 %s90, %s91
      %p93 = scmp.eq.s32.totalorder %s92, 0
      %s95 = sadd.s32 %s94, 1
      %s96 = scalar_select %p93, %s94, %s95
      %p99 = pneg %p93
      %p100 = scmp.eq.s32.totalorder %s10, 3
      %p101 = por %p99, %p100
      %p102 = scmp.ne.s32.totalorder %s94, %s97
      %p103 = scmp.eq.s32.totalorder %s10, 0
      %p104 = por %p102, %p103
      %p105 = scmp.ne.s32.totalorder %s94, %s97
      %p106 = scmp.eq.s32.totalorder %s15, 3
      %p107 = por %p105, %p106
      %p108 = scmp.ne.s32.totalorder %s97, %s98
      %p109 = scmp.eq.s32.totalorder %s15, 0
      %p110 = por %p108, %p109
      %p111 = scmp.ne.s32.totalorder %s97, %s98
      %p112 = scmp.eq.s32.totalorder %s16, 3
      %p113 = por %p111, %p112
      %p115 = scmp.ne.s32.totalorder %s98, %s114
      %p116 = scmp.eq.s32.totalorder %s16, 0
      %p117 = por %p115, %p116
      %s119 = sadd.s32 %s118, 1
      %p122 = scmp.eq.s32.totalorder %s10, 3
      %p123 = scmp.ne.s32.totalorder %s118, %s120
      %p124 = scmp.eq.s32.totalorder %s10, 0
      %p125 = por %p123, %p124
      %p126 = scmp.ne.s32.totalorder %s118, %s120
      %p127 = scmp.eq.s32.totalorder %s15, 3
      %p128 = por %p126, %p127
      %p129 = scmp.ne.s32.totalorder %s120, %s121
      %p130 = scmp.eq.s32.totalorder %s15, 0
      %p131 = por %p129, %p130
      %p132 = scmp.ne.s32.totalorder %s120, %s121
      %p133 = scmp.eq.s32.totalorder %s16, 3
      %p134 = por %p132, %p133
      %p136 = scmp.ne.s32.totalorder %s121, %s135
      %p137 = scmp.eq.s32.totalorder %s16, 0
      %p138 = por %p136, %p137
      %s139 = ssub.s32 %s17, %s29
      %s140 = ssub.s32 %s18, %s25
      %s141 = sor.u32 %s139, %s140
      %p142 = scmp.eq.s32.totalorder %s141, 0
      %s144 = sadd.s32 %s143, 1
      %s145 = scalar_select %p142, %s143, %s144
      %p148 = pneg %p142
      %p149 = scmp.eq.s32.totalorder %s10, 3
      %p150 = por %p148, %p149
      %p151 = scmp.ne.s32.totalorder %s143, %s146
      %p152 = scmp.eq.s32.totalorder %s10, 0
      %p153 = por %p151, %p152
      %p154 = scmp.ne.s32.totalorder %s143, %s146
      %p155 = scmp.eq.s32.totalorder %s15, 3
      %p156 = por %p154, %p155
      %p157 = scmp.ne.s32.totalorder %s146, %s147
      %p158 = scmp.eq.s32.totalorder %s15, 0
      %p159 = por %p157, %p158
      %p160 = scmp.ne.s32.totalorder %s146, %s147
      %p161 = scmp.eq.s32.totalorder %s16, 3
      %p162 = por %p160, %p161
      %p164 = scmp.ne.s32.totalorder %s147, %s163
      %p165 = scmp.eq.s32.totalorder %s16, 0
      %p166 = por %p164, %p165
      %p167 = scmp.le.s32.totalorder 1, %s10
      %p168 = scmp.lt.s32.totalorder %s10, 5
      %p169 = pnand %p167, %p168
      %p170 = pneg %p169
      // Predicated region
      $region9: #{_mha_self_forward.4} parent=5 // pred_check
        _
      $region10: #{_mha_self_forward.4} parent=5 // pred_check_branch
        %172 = sbr.rel (%p169) target = $region12
      $region11: #{_mha_self_forward.4} parent=5 // pred_region
        %s173 = ssub.s32 %s10, 1
        // Predicated region
        $region13: #{_mha_self_forward.4} parent=11 // pred_check
          %p174 = pneg %p131
        $region14: #{_mha_self_forward.4} parent=11 // pred_check_branch
          %176 = sbr.rel (%p174) target = $region16
        $region15: #{_mha_self_forward.4} parent=11 // pred_region
          _
        $region16: #{_mha_self_forward.4} parent=11 // pred_fallthru
          _
      $region12: #{_mha_self_forward.4} parent=5 // pred_fallthru
        _
      %p177 = scmp.lt.s32.totalorder %s10, 4
      // Predicated region
      $region17: #{_mha_self_forward.4} parent=5 // pred_check
        %p178 = pneg %p177
      $region18: #{_mha_self_forward.4} parent=5 // pred_check_branch
        %180 = sbr.rel (%p178) target = $region20
      $region19: #{_mha_self_forward.4} parent=5 // pred_region
        // Predicated region
        $region21: #{_mha_self_forward.4} parent=19 // pred_check
          %p181 = pneg %p44
        $region22: #{_mha_self_forward.4} parent=19 // pred_check_branch
          %183 = sbr.rel (%p181) target = $region24
        $region23: #{_mha_self_forward.4} parent=19 // pred_region
          %s184 = sand.u32 %s34, 1
          %s185 = sand.u32 %s34, 1
          %s186 = smul.addr %s185, 16
          %s187 = scalar_lea.vmem [#allocation2], %s186
          %s188 = smul.u32 2, %s18
          %s189 = smul.addr %s17, 24
          %s190 = sadd.s32 %s188, %s189
          %s191 = smul.addr %s190, 4
          %s192 = scalar_lea.vmem %s0, %s191
          // Predicated region
          $region25: #{_mha_self_forward.4} parent=23 // pred_check
            _
          $region26: #{_mha_self_forward.4} parent=23 // pred_check_branch
            %194 = sbr.rel (0) target = $region28
          $region27: #{_mha_self_forward.4} parent=23 // pred_region
            // Predicated region
            $region29: #{_mha_self_forward.4} parent=27 // pred_check
              _
            $region30: #{_mha_self_forward.4} parent=27 // pred_check_branch
              %196 = sbr.rel (0) target = $region32
            $region31: #{_mha_self_forward.4} parent=27 // pred_region
              // Predicated region
              $region44: #{_mha_self_forward.4} parent=31 // pred_check
                _
              $region45: #{_mha_self_forward.4} parent=31 // pred_check_branch
                %214 = sbr.rel (0) target = $region47
              $region46: #{_mha_self_forward.4} parent=31 // pred_region
                loop: start=0, step=1, limit=1
                $region48: #{_mha_self_forward.4} parent=46 // loop_pre_header
                  _
                $region49: #{_mha_self_forward.4} parent=46 // loop_header
                  %s216 = sphi 0, %s220
                  %p217 = scmp.ge.s32.totalorder %s216, 1
                  %s221 = sphi %s192, %s192
                  %s222 = sphi %s187, %s187
                $region50: #{_mha_self_forward.4} parent=46 // loop_header_branch
                  %219 = sbr.rel (%p217) target = $region54
                $region51: #{_mha_self_forward.4} parent=46 // loop_body
                  %v223 = vld [vmem:[%s221] sm:$0xff]
                  %224 = vst [vmem:[%s222] sm:$0xff] %v223
                  %v225 = vld [vmem:[%s221 + $0x30] sm:$0xff]
                  %226 = vst [vmem:[%s222 + $0x8] sm:$0xff] %v225
                $region52: #{_mha_self_forward.4} parent=46 // loop_footer
                  %s220 = sadd.s32 1, %s216
                $region53: #{_mha_self_forward.4} parent=46 // loop_footer_branch
                  %215 = sbr.rel target = $region49
                $region54: #{_mha_self_forward.4} parent=46 // loop_exit
                  _
              $region47: #{_mha_self_forward.4} parent=31 // pred_fallthru
                _
              // Predicated region
              $region55: #{_mha_self_forward.4} parent=31 // pred_check
                _
              $region56: #{_mha_self_forward.4} parent=31 // pred_check_branch
                %228 = sbr.rel target = $region58
              $region57: #{_mha_self_forward.4} parent=31 // pred_region
                _
              $region58: #{_mha_self_forward.4} parent=31 // pred_fallthru
                _
            $region32: #{_mha_self_forward.4} parent=27 // pred_fallthru
              _
            // Predicated region
            $region33: #{_mha_self_forward.4} parent=27 // pred_check
              _
            $region34: #{_mha_self_forward.4} parent=27 // pred_check_branch
              %198 = sbr.rel target = $region36
            $region35: #{_mha_self_forward.4} parent=27 // pred_region
              %s200 = ssub.s32 256, 1
              loop: start=0, step=1, limit=1
              $region37: #{_mha_self_forward.4} parent=35 // loop_pre_header
                _
              $region38: #{_mha_self_forward.4} parent=35 // loop_header
                %s202 = sphi 0, %s206
                %p203 = scmp.ge.s32.totalorder %s202, 1
                %s207 = sphi %s192, %s192
                %s208 = sphi %s187, %s187
              $region39: #{_mha_self_forward.4} parent=35 // loop_header_branch
                %205 = sbr.rel (%p203) target = $region43
              $region40: #{_mha_self_forward.4} parent=35 // loop_body
                %v209 = vld [vmem:[%s207] sm:%s200]
                %210 = vst [vmem:[%s208] sm:%s200] %v209
                %v211 = vld [vmem:[%s207 + $0x30] sm:%s200]
                %212 = vst [vmem:[%s208 + $0x8] sm:%s200] %v211
              $region41: #{_mha_self_forward.4} parent=35 // loop_footer
                %s206 = sadd.s32 1, %s202
              $region42: #{_mha_self_forward.4} parent=35 // loop_footer_branch
                %201 = sbr.rel target = $region38
              $region43: #{_mha_self_forward.4} parent=35 // loop_exit
                _
            $region36: #{_mha_self_forward.4} parent=27 // pred_fallthru
              _
          $region28: #{_mha_self_forward.4} parent=23 // pred_fallthru
            _
          %229 = vnop
        $region24: #{_mha_self_forward.4} parent=19 // pred_fallthru
          _
        // Predicated region
        $region59: #{_mha_self_forward.4} parent=19 // pred_check
          %p230 = pneg %p74
        $region60: #{_mha_self_forward.4} parent=19 // pred_check_branch
          %232 = sbr.rel (%p230) target = $region62
        $region61: #{_mha_self_forward.4} parent=19 // pred_region
          %s233 = sand.u32 %s64, 1
          %s234 = sand.u32 %s64, 1
          %s235 = smul.addr %s234, 16
          %s236 = scalar_lea.vmem [#allocation3], %s235
          %s237 = sadd.s32 %s18, 2
          %s238 = smul.u32 2, %s237
          %s239 = smul.addr %s17, 24
          %s240 = sadd.s32 %s238, %s239
          %s241 = smul.addr %s240, 4
          %s242 = scalar_lea.vmem %s1, %s241
          // Predicated region
          $region63: #{_mha_self_forward.4} parent=61 // pred_check
            _
          $region64: #{_mha_self_forward.4} parent=61 // pred_check_branch
            %244 = sbr.rel (0) target = $region66
          $region65: #{_mha_self_forward.4} parent=61 // pred_region
            // Predicated region
            $region67: #{_mha_self_forward.4} parent=65 // pred_check
              _
            $region68: #{_mha_self_forward.4} parent=65 // pred_check_branch
              %246 = sbr.rel (0) target = $region70
            $region69: #{_mha_self_forward.4} parent=65 // pred_region
              // Predicated region
              $region82: #{_mha_self_forward.4} parent=69 // pred_check
                _
              $region83: #{_mha_self_forward.4} parent=69 // pred_check_branch
                %264 = sbr.rel (0) target = $region85
              $region84: #{_mha_self_forward.4} parent=69 // pred_region
                loop: start=0, step=1, limit=1
                $region86: #{_mha_self_forward.4} parent=84 // loop_pre_header
                  _
                $region87: #{_mha_self_forward.4} parent=84 // loop_header
                  %s266 = sphi 0, %s270
                  %p267 = scmp.ge.s32.totalorder %s266, 1
                  %s271 = sphi %s242, %s242
                  %s272 = sphi %s236, %s236
                $region88: #{_mha_self_forward.4} parent=84 // loop_header_branch
                  %269 = sbr.rel (%p267) target = $region92
                $region89: #{_mha_self_forward.4} parent=84 // loop_body
                  %v273 = vld [vmem:[%s271] sm:$0xff]
                  %274 = vst [vmem:[%s272] sm:$0xff] %v273
                  %v275 = vld [vmem:[%s271 + $0x30] sm:$0xff]
                  %276 = vst [vmem:[%s272 + $0x8] sm:$0xff] %v275
                $region90: #{_mha_self_forward.4} parent=84 // loop_footer
                  %s270 = sadd.s32 1, %s266
                $region91: #{_mha_self_forward.4} parent=84 // loop_footer_branch
                  %265 = sbr.rel target = $region87
                $region92: #{_mha_self_forward.4} parent=84 // loop_exit
                  _
              $region85: #{_mha_self_forward.4} parent=69 // pred_fallthru
                _
              // Predicated region
              $region93: #{_mha_self_forward.4} parent=69 // pred_check
                _
              $region94: #{_mha_self_forward.4} parent=69 // pred_check_branch
                %278 = sbr.rel target = $region96
              $region95: #{_mha_self_forward.4} parent=69 // pred_region
                _
              $region96: #{_mha_self_forward.4} parent=69 // pred_fallthru
                _
            $region70: #{_mha_self_forward.4} parent=65 // pred_fallthru
              _
            // Predicated region
            $region71: #{_mha_self_forward.4} parent=65 // pred_check
              _
            $region72: #{_mha_self_forward.4} parent=65 // pred_check_branch
              %248 = sbr.rel target = $region74
            $region73: #{_mha_self_forward.4} parent=65 // pred_region
              %s250 = ssub.s32 256, 1
              loop: start=0, step=1, limit=1
              $region75: #{_mha_self_forward.4} parent=73 // loop_pre_header
                _
              $region76: #{_mha_self_forward.4} parent=73 // loop_header
                %s252 = sphi 0, %s256
                %p253 = scmp.ge.s32.totalorder %s252, 1
                %s257 = sphi %s242, %s242
                %s258 = sphi %s236, %s236
              $region77: #{_mha_self_forward.4} parent=73 // loop_header_branch
                %255 = sbr.rel (%p253) target = $region81
              $region78: #{_mha_self_forward.4} parent=73 // loop_body
                %v259 = vld [vmem:[%s257] sm:%s250]
                %260 = vst [vmem:[%s258] sm:%s250] %v259
                %v261 = vld [vmem:[%s257 + $0x30] sm:%s250]
                %262 = vst [vmem:[%s258 + $0x8] sm:%s250] %v261
              $region79: #{_mha_self_forward.4} parent=73 // loop_footer
                %s256 = sadd.s32 1, %s252
              $region80: #{_mha_self_forward.4} parent=73 // loop_footer_branch
                %251 = sbr.rel target = $region76
              $region81: #{_mha_self_forward.4} parent=73 // loop_exit
                _
            $region74: #{_mha_self_forward.4} parent=65 // pred_fallthru
              _
          $region66: #{_mha_self_forward.4} parent=61 // pred_fallthru
            _
          %279 = vnop
        $region62: #{_mha_self_forward.4} parent=19 // pred_fallthru
          _
        // Predicated region
        $region97: #{_mha_self_forward.4} parent=19 // pred_check
          %p280 = pneg %p104
        $region98: #{_mha_self_forward.4} parent=19 // pred_check_branch
          %282 = sbr.rel (%p280) target = $region100
        $region99: #{_mha_self_forward.4} parent=19 // pred_region
          %s283 = sand.u32 %s94, 1
          %s284 = sand.u32 %s94, 1
          %s285 = smul.addr %s284, 16
          %s286 = scalar_lea.vmem [#allocation4], %s285
          %s287 = sadd.s32 %s18, 4
          %s288 = smul.u32 2, %s287
          %s289 = smul.addr %s17, 24
          %s290 = sadd.s32 %s288, %s289
          %s291 = smul.addr %s290, 4
          %s292 = scalar_lea.vmem %s2, %s291
          // Predicated region
          $region101: #{_mha_self_forward.4} parent=99 // pred_check
            _
          $region102: #{_mha_self_forward.4} parent=99 // pred_check_branch
            %294 = sbr.rel (0) target = $region104
          $region103: #{_mha_self_forward.4} parent=99 // pred_region
            // Predicated region
            $region105: #{_mha_self_forward.4} parent=103 // pred_check
              _
            $region106: #{_mha_self_forward.4} parent=103 // pred_check_branch
              %296 = sbr.rel (0) target = $region108
            $region107: #{_mha_self_forward.4} parent=103 // pred_region
              // Predicated region
              $region120: #{_mha_self_forward.4} parent=107 // pred_check
                _
              $region121: #{_mha_self_forward.4} parent=107 // pred_check_branch
                %314 = sbr.rel (0) target = $region123
              $region122: #{_mha_self_forward.4} parent=107 // pred_region
                loop: start=0, step=1, limit=1
                $region124: #{_mha_self_forward.4} parent=122 // loop_pre_header
                  _
                $region125: #{_mha_self_forward.4} parent=122 // loop_header
                  %s316 = sphi 0, %s320
                  %p317 = scmp.ge.s32.totalorder %s316, 1
                  %s321 = sphi %s292, %s292
                  %s322 = sphi %s286, %s286
                $region126: #{_mha_self_forward.4} parent=122 // loop_header_branch
                  %319 = sbr.rel (%p317) target = $region130
                $region127: #{_mha_self_forward.4} parent=122 // loop_body
                  %v323 = vld [vmem:[%s321] sm:$0xff]
                  %324 = vst [vmem:[%s322] sm:$0xff] %v323
                  %v325 = vld [vmem:[%s321 + $0x30] sm:$0xff]
                  %326 = vst [vmem:[%s322 + $0x8] sm:$0xff] %v325
                $region128: #{_mha_self_forward.4} parent=122 // loop_footer
                  %s320 = sadd.s32 1, %s316
                $region129: #{_mha_self_forward.4} parent=122 // loop_footer_branch
                  %315 = sbr.rel target = $region125
                $region130: #{_mha_self_forward.4} parent=122 // loop_exit
                  _
              $region123: #{_mha_self_forward.4} parent=107 // pred_fallthru
                _
              // Predicated region
              $region131: #{_mha_self_forward.4} parent=107 // pred_check
                _
              $region132: #{_mha_self_forward.4} parent=107 // pred_check_branch
                %328 = sbr.rel target = $region134
              $region133: #{_mha_self_forward.4} parent=107 // pred_region
                _
              $region134: #{_mha_self_forward.4} parent=107 // pred_fallthru
                _
            $region108: #{_mha_self_forward.4} parent=103 // pred_fallthru
              _
            // Predicated region
            $region109: #{_mha_self_forward.4} parent=103 // pred_check
              _
            $region110: #{_mha_self_forward.4} parent=103 // pred_check_branch
              %298 = sbr.rel target = $region112
            $region111: #{_mha_self_forward.4} parent=103 // pred_region
              %s300 = ssub.s32 256, 1
              loop: start=0, step=1, limit=1
              $region113: #{_mha_self_forward.4} parent=111 // loop_pre_header
                _
              $region114: #{_mha_self_forward.4} parent=111 // loop_header
                %s302 = sphi 0, %s306
                %p303 = scmp.ge.s32.totalorder %s302, 1
                %s307 = sphi %s292, %s292
                %s308 = sphi %s286, %s286
              $region115: #{_mha_self_forward.4} parent=111 // loop_header_branch
                %305 = sbr.rel (%p303) target = $region119
              $region116: #{_mha_self_forward.4} parent=111 // loop_body
                %v309 = vld [vmem:[%s307] sm:%s300]
                %310 = vst [vmem:[%s308] sm:%s300] %v309
                %v311 = vld [vmem:[%s307 + $0x30] sm:%s300]
                %312 = vst [vmem:[%s308 + $0x8] sm:%s300] %v311
              $region117: #{_mha_self_forward.4} parent=111 // loop_footer
                %s306 = sadd.s32 1, %s302
              $region118: #{_mha_self_forward.4} parent=111 // loop_footer_branch
                %301 = sbr.rel target = $region114
              $region119: #{_mha_self_forward.4} parent=111 // loop_exit
                _
            $region112: #{_mha_self_forward.4} parent=103 // pred_fallthru
              _
          $region104: #{_mha_self_forward.4} parent=99 // pred_fallthru
            _
          %329 = vnop
        $region100: #{_mha_self_forward.4} parent=19 // pred_fallthru
          _
      $region20: #{_mha_self_forward.4} parent=5 // pred_fallthru
        _
      %p330 = scmp.le.s32.totalorder 1, %s10
      %p331 = scmp.lt.s32.totalorder %s10, 5
      %p332 = pnand %p330, %p331
      %p333 = pneg %p332
      // Predicated region
      $region135: #{_mha_self_forward.4} parent=5 // pred_check
        _
      $region136: #{_mha_self_forward.4} parent=5 // pred_check_branch
        %335 = sbr.rel (%p332) target = $region138
      $region137: #{_mha_self_forward.4} parent=5 // pred_region
        %s336 = ssub.s32 %s10, 1
        %s337 = sand.u32 %s37, 1
        %s338 = sand.u32 %s37, 1
        %s339 = smul.addr %s338, 16
        %s340 = scalar_lea.vmem [#allocation2], %s339
        // Predicated region
        $region139: #{_mha_self_forward.4} parent=137 // pred_check
          %p341 = pneg %p50
        $region140: #{_mha_self_forward.4} parent=137 // pred_check_branch
          %343 = sbr.rel (%p341) target = $region142
        $region141: #{_mha_self_forward.4} parent=137 // pred_region
          _
        $region142: #{_mha_self_forward.4} parent=137 // pred_fallthru
          _
        %s344 = sand.u32 %s67, 1
        %s345 = sand.u32 %s67, 1
        %s346 = smul.addr %s345, 16
        %s347 = scalar_lea.vmem [#allocation3], %s346
        // Predicated region
        $region143: #{_mha_self_forward.4} parent=137 // pred_check
          %p348 = pneg %p80
        $region144: #{_mha_self_forward.4} parent=137 // pred_check_branch
          %350 = sbr.rel (%p348) target = $region146
        $region145: #{_mha_self_forward.4} parent=137 // pred_region
          _
        $region146: #{_mha_self_forward.4} parent=137 // pred_fallthru
          _
        %s351 = sand.u32 %s97, 1
        %s352 = sand.u32 %s97, 1
        %s353 = smul.addr %s352, 16
        %s354 = scalar_lea.vmem [#allocation4], %s353
        // Predicated region
        $region147: #{_mha_self_forward.4} parent=137 // pred_check
          %p355 = pneg %p110
        $region148: #{_mha_self_forward.4} parent=137 // pred_check_branch
          %357 = sbr.rel (%p355) target = $region150
        $region149: #{_mha_self_forward.4} parent=137 // pred_region
          _
        $region150: #{_mha_self_forward.4} parent=137 // pred_fallthru
          _
        %s358 = sand.u32 %s37, 1
        %s359 = sand.u32 %s37, 1
        %s360 = smul.addr %s359, 16
        %s361 = scalar_lea.vmem [#allocation2], %s360
        %p362 = pneg %p50
        %p363 = pneg %p47
        %s364 = sand.u32 %s67, 1
        %s365 = sand.u32 %s67, 1
        %s366 = smul.addr %s365, 16
        %s367 = scalar_lea.vmem [#allocation3], %s366
        %p368 = pneg %p80
        %p369 = pneg %p77
        %s370 = sand.u32 %s97, 1
        %s371 = sand.u32 %s97, 1
        %s372 = smul.addr %s371, 16
        %s373 = scalar_lea.vmem [#allocation4], %s372
        %p374 = pneg %p110
        %p375 = pneg %p107
        %p376 = pneg %p131
        %p377 = pneg %p128
        %p378 = pneg %p159
        %p379 = pneg %p156
        %s380 = sand.u32 %s146, 1
        %s381 = sand.u32 %s146, 1
        %s382 = smul.addr %s381, 16
        %s383 = scalar_lea.vmem [#allocation5], %s382
        %s384 = smul.u32 2, %s20
        %s385 = sadd.s32 %s20, 2
        %s386 = smul.u32 2, %s385
        %s387 = sadd.s32 %s20, 4
        %s388 = smul.u32 2, %s387
        %s389 = smul.u32 2, %s20
        %v393 = vld [vmem:[%s3] sm:$0xf]
        %v394 = vld [vmem:[%s3 + $0x4] sm:$0xf]
        %v395 = vld [vmem:[%s340] sm:$0xf]
        %v396 = vld [vmem:[%s340 + $0x8] sm:$0xf]
        %v397 = vld [vmem:[%s347] sm:$0xf]
        %v398 = vld [vmem:[%s347 + $0x8] sm:$0xf]
        %v399 = vld [vmem:[%s354] sm:$0xf]
        %v400 = vld [vmem:[%s354 + $0x8] sm:$0xf]
        %v403 = vunpack.c.l.b16 %v395
        %v404 = vunpack.c.l.b16 %v396
        %v405 = vpack.c.b16 %v404, %v403
        %v408 = vunpack.c.l.b16 %v397
        %v409 = vunpack.c.l.b16 %v398
        %v410 = vpack.c.b16 %v409, %v408
        %vm411 = vcmask 523264
        %v413 = vsel %vm411, %v405, 0
        %v416 = vsel %vm411, %v410, 0
        %418 = vmatprep.subr.bf16.mxu0 0
        %419 = vmatpush1.bf16.xpose.msra.mxu0 0
        %420 = vmatprep.subr.bf16.mxu0 0
        %421 = vmatpush1.bf16.xpose.msra.mxu0 0
        %422 = vmatprep.subr.bf16.mxu0 0
        %423 = vmatpush1.bf16.xpose.msra.mxu0 0
        %424 = vmatprep.subr.bf16.mxu0 0
        %425 = vmatpush1.bf16.xpose.msra.mxu0 0
        %426 = vmatprep.subr.bf16.mxu0 0
        %427 = vmatpush1.bf16.xpose.msra.mxu0 0
        %428 = vmatprep.subr.bf16.mxu0 0
        %429 = vmatpush1.bf16.xpose.msra.mxu0 0
        %430 = vmatprep.subr.bf16.mxu0 0
        %431 = vmatpush1.bf16.xpose.msra.mxu0 0
        %432 = vmatprep.subr.bf16.mxu0 0
        %433 = vmatpush1.bf16.xpose.msra.mxu0 %v416
        %434 = vmatprep.subr.bf16.mxu0 0
        %435 = vmatpush2.bf16.xpose.msra.mxu0 0
        %436 = vmatprep.subr.bf16.mxu0 0
        %437 = vmatpush2.bf16.xpose.msra.mxu0 0
        %438 = vmatprep.subr.bf16.mxu0 0
        %439 = vmatpush2.bf16.xpose.msra.mxu0 0
        %440 = vmatprep.subr.bf16.mxu0 0
        %441 = vmatpush2.bf16.xpose.msra.mxu0 0
        %442 = vmatprep.subr.bf16.mxu0 0
        %443 = vmatpush2.bf16.xpose.msra.mxu0 0
        %444 = vmatprep.subr.bf16.mxu0 0
        %445 = vmatpush2.bf16.xpose.msra.mxu0 0
        %446 = vmatprep.subr.bf16.mxu0 0
        %447 = vmatpush2.bf16.xpose.msra.mxu0 0
        %448 = vmatprep.subr.bf16.mxu0 0
        %449 = vmatpush2.bf16.xpose.msra.mxu0 0
        %450 = vmatprep.mubr.bf16.mxu0 0
        %451 = vmatmul.mubr.bf16.gmra.mxu0 %v413
        %v452 = vpop.f32.mrf.mxu0
        %v453 = vadd.f32 0.0, %v452
        %v454 = vpop.f32.mrf.mxu0
        %v455 = vpop.f32.mrf.mxu0
        %v456 = vadd.f32 0.0, %v455
        %v457 = vpop.f32.mrf.mxu0
        %458 = vdwg.mxu0
        %vm459 = vcmp.eq.bf16.partialorder %v393, 0
        %vm460 = vcmp.eq.bf16.partialorder %v394, 0
        %v461 = vsel %vm459, 65537, 0
        %v462 = vsel %vm460, 65537, 0
        %v463 = vunpack.c.l.b16 %v461
        %v464 = vunpack.c.l.b16 %v462
        %vm465 = vcmp.ne.s32.totalorder %v463, 0
        %vm466 = vcmp.ne.s32.totalorder %v464, 0
        %v467 = vsel %vm465, -1e+09, %v453
        %v468 = vsel %vm466, -1e+09, %v456
        %vm469 = vcmask 130048
        %v470 = vsel %vm469, %v467, -inf
        %471 = vmax.xlane.f32.xlu0 %v470
        %v472 = vpop.xlane.xlu0 %471
        %v473 = vsel %vm469, %v468, -inf
        %474 = vmax.xlane.f32.xlu0 %v473
        %v475 = vpop.xlane.xlu0 %474
        %v476 = vsub.f32 %v467, %v472
        %v477 = vsub.f32 %v468, %v475
        %v478 = vmul.f32 %v476, 1.442695
        %v479 = vpow.pop %v478
        %v480 = vmul.f32 %v477, 1.442695
        %v481 = vpow.pop %v480
        %v482 = vsel %vm469, %v479, 0.0
        %483 = vadd.xlane.f32.xlu0 %v482
        %v484 = vpop.xlane.xlu0 %483
        %v485 = vsel %vm469, %v481, 0.0
        %486 = vadd.xlane.f32.xlu0 %v485
        %v487 = vpop.xlane.xlu0 %486
        %v488 = vpack.c.bf16 %v481, %v479
        %v491 = vunpack.c.l.b16 %v399
        %v492 = vunpack.c.l.b16 %v400
        %v493 = vpack.c.b16 %v492, %v491
        %v496 = vsel %vm469, %v488, 0
        %498 = vmatprep.subr.bf16.mxu0 0
        %499 = vmatpush1.bf16.msra.mxu0 0
        %500 = vmatprep.subr.bf16.mxu0 0
        %501 = vmatpush1.bf16.msra.mxu0 0
        %502 = vmatprep.subr.bf16.mxu0 0
        %503 = vmatpush1.bf16.msra.mxu0 0
        %504 = vmatprep.subr.bf16.mxu0 0
        %505 = vmatpush1.bf16.msra.mxu0 0
        %506 = vmatprep.subr.bf16.mxu0 0
        %507 = vmatpush1.bf16.msra.mxu0 0
        %508 = vmatprep.subr.bf16.mxu0 0
        %509 = vmatpush1.bf16.msra.mxu0 0
        %510 = vmatprep.subr.bf16.mxu0 0
        %511 = vmatpush1.bf16.msra.mxu0 0
        %512 = vmatprep.subr.bf16.mxu0 0
        %513 = vmatpush1.bf16.msra.mxu0 %v493
        %514 = vmatprep.subr.bf16.mxu0 0
        %515 = vmatpush2.bf16.msra.mxu0 0
        %516 = vmatprep.subr.bf16.mxu0 0
        %517 = vmatpush2.bf16.msra.mxu0 0
        %518 = vmatprep.subr.bf16.mxu0 0
        %519 = vmatpush2.bf16.msra.mxu0 0
        %520 = vmatprep.subr.bf16.mxu0 0
        %521 = vmatpush2.bf16.msra.mxu0 0
        %522 = vmatprep.subr.bf16.mxu0 0
        %523 = vmatpush2.bf16.msra.mxu0 0
        %524 = vmatprep.subr.bf16.mxu0 0
        %525 = vmatpush2.bf16.msra.mxu0 0
        %526 = vmatprep.subr.bf16.mxu0 0
        %527 = vmatpush2.bf16.msra.mxu0 0
        %528 = vmatprep.subr.bf16.mxu0 0
        %529 = vmatpush2.bf16.msra.mxu0 0
        %530 = vmatprep.mubr.bf16.mxu0 0
        %531 = vmatmul.mubr.bf16.gmra.mxu0 %v496
        %v532 = vpop.f32.mrf.mxu0
        %v533 = vadd.f32 0.0, %v532
        %v534 = vpop.f32.mrf.mxu0
        %v535 = vpop.f32.mrf.mxu0
        %v536 = vadd.f32 0.0, %v535
        %v537 = vpop.f32.mrf.mxu0
        %538 = vdwg.mxu0
        %v539 = vrcp.pop %v484
        %v540 = vrcp.pop %v487
        %v541 = vmul.f32 %v533, %v539
        %v542 = vmul.f32 %v536, %v540
        %543 = vrot.lane.b32.xlu0 %v405, 64
        %v544 = vpop.permute.xlu0 %543
        %545 = vrot.lane.b32.xlu0 %v410, 64
        %v546 = vpop.permute.xlu0 %545
        %v548 = vsel %vm411, %v544, 0
        %v551 = vsel %vm411, %v546, 0
        %553 = vmatprep.subr.bf16.mxu0 0
        %554 = vmatpush1.bf16.xpose.msra.mxu0 0
        %555 = vmatprep.subr.bf16.mxu0 0
        %556 = vmatpush1.bf16.xpose.msra.mxu0 0
        %557 = vmatprep.subr.bf16.mxu0 0
        %558 = vmatpush1.bf16.xpose.msra.mxu0 0
        %559 = vmatprep.subr.bf16.mxu0 0
        %560 = vmatpush1.bf16.xpose.msra.mxu0 0
        %561 = vmatprep.subr.bf16.mxu0 0
        %562 = vmatpush1.bf16.xpose.msra.mxu0 0
        %563 = vmatprep.subr.bf16.mxu0 0
        %564 = vmatpush1.bf16.xpose.msra.mxu0 0
        %565 = vmatprep.subr.bf16.mxu0 0
        %566 = vmatpush1.bf16.xpose.msra.mxu0 0
        %567 = vmatprep.subr.bf16.mxu0 0
        %568 = vmatpush1.bf16.xpose.msra.mxu0 %v551
        %569 = vmatprep.subr.bf16.mxu0 0
        %570 = vmatpush2.bf16.xpose.msra.mxu0 0
        %571 = vmatprep.subr.bf16.mxu0 0
        %572 = vmatpush2.bf16.xpose.msra.mxu0 0
        %573 = vmatprep.subr.bf16.mxu0 0
        %574 = vmatpush2.bf16.xpose.msra.mxu0 0
        %575 = vmatprep.subr.bf16.mxu0 0
        %576 = vmatpush2.bf16.xpose.msra.mxu0 0
        %577 = vmatprep.subr.bf16.mxu0 0
        %578 = vmatpush2.bf16.xpose.msra.mxu0 0
        %579 = vmatprep.subr.bf16.mxu0 0
        %580 = vmatpush2.bf16.xpose.msra.mxu0 0
        %581 = vmatprep.subr.bf16.mxu0 0
        %582 = vmatpush2.bf16.xpose.msra.mxu0 0
        %583 = vmatprep.subr.bf16.mxu0 0
        %584 = vmatpush2.bf16.xpose.msra.mxu0 0
        %585 = vmatprep.mubr.bf16.mxu0 0
        %586 = vmatmul.mubr.bf16.gmra.mxu0 %v548
        %v587 = vpop.f32.mrf.mxu0
        %v588 = vadd.f32 0.0, %v587
        %v589 = vpop.f32.mrf.mxu0
        %v590 = vpop.f32.mrf.mxu0
        %v591 = vadd.f32 0.0, %v590
        %v592 = vpop.f32.mrf.mxu0
        %593 = vdwg.mxu0
        %v594 = vsel %vm465, -1e+09, %v588
        %v595 = vsel %vm466, -1e+09, %v591
        %v596 = vsel %vm469, %v594, -inf
        %597 = vmax.xlane.f32.xlu0 %v596
        %v598 = vpop.xlane.xlu0 %597
        %v599 = vsel %vm469, %v595, -inf
        %600 = vmax.xlane.f32.xlu0 %v599
        %v601 = vpop.xlane.xlu0 %600
        %v602 = vsub.f32 %v594, %v598
        %v603 = vsub.f32 %v595, %v601
        %v604 = vmul.f32 %v602, 1.442695
        %v605 = vpow.pop %v604
        %v606 = vmul.f32 %v603, 1.442695
        %v607 = vpow.pop %v606
        %v608 = vsel %vm469, %v605, 0.0
        %609 = vadd.xlane.f32.xlu0 %v608
        %v610 = vpop.xlane.xlu0 %609
        %v611 = vsel %vm469, %v607, 0.0
        %612 = vadd.xlane.f32.xlu0 %v611
        %v613 = vpop.xlane.xlu0 %612
        %v614 = vpack.c.bf16 %v607, %v605
        %615 = vrot.lane.b32.xlu0 %v493, 64
        %v616 = vpop.permute.xlu0 %615
        %v619 = vsel %vm469, %v614, 0
        %621 = vmatprep.subr.bf16.mxu0 0
        %622 = vmatpush1.bf16.msra.mxu0 0
        %623 = vmatprep.subr.bf16.mxu0 0
        %624 = vmatpush1.bf16.msra.mxu0 0
        %625 = vmatprep.subr.bf16.mxu0 0
        %626 = vmatpush1.bf16.msra.mxu0 0
        %627 = vmatprep.subr.bf16.mxu0 0
        %628 = vmatpush1.bf16.msra.mxu0 0
        %629 = vmatprep.subr.bf16.mxu0 0
        %630 = vmatpush1.bf16.msra.mxu0 0
        %631 = vmatprep.subr.bf16.mxu0 0
        %632 = vmatpush1.bf16.msra.mxu0 0
        %633 = vmatprep.subr.bf16.mxu0 0
        %634 = vmatpush1.bf16.msra.mxu0 0
        %635 = vmatprep.subr.bf16.mxu0 0
        %636 = vmatpush1.bf16.msra.mxu0 %v616
        %637 = vmatprep.subr.bf16.mxu0 0
        %638 = vmatpush2.bf16.msra.mxu0 0
        %639 = vmatprep.subr.bf16.mxu0 0
        %640 = vmatpush2.bf16.msra.mxu0 0
        %641 = vmatprep.subr.bf16.mxu0 0
        %642 = vmatpush2.bf16.msra.mxu0 0
        %643 = vmatprep.subr.bf16.mxu0 0
        %644 = vmatpush2.bf16.msra.mxu0 0
        %645 = vmatprep.subr.bf16.mxu0 0
        %646 = vmatpush2.bf16.msra.mxu0 0
        %647 = vmatprep.subr.bf16.mxu0 0
        %648 = vmatpush2.bf16.msra.mxu0 0
        %649 = vmatprep.subr.bf16.mxu0 0
        %650 = vmatpush2.bf16.msra.mxu0 0
        %651 = vmatprep.subr.bf16.mxu0 0
        %652 = vmatpush2.bf16.msra.mxu0 0
        %653 = vmatprep.mubr.bf16.mxu0 0
        %654 = vmatmul.mubr.bf16.gmra.mxu0 %v619
        %v655 = vpop.f32.mrf.mxu0
        %v656 = vadd.f32 0.0, %v655
        %v657 = vpop.f32.mrf.mxu0
        %v658 = vpop.f32.mrf.mxu0
        %v659 = vadd.f32 0.0, %v658
        %v660 = vpop.f32.mrf.mxu0
        %661 = vdwg.mxu0
        %v662 = vrcp.pop %v610
        %v663 = vrcp.pop %v613
        %v664 = vmul.f32 %v656, %v662
        %v665 = vmul.f32 %v659, %v663
        %v666 = vld [vmem:[%s340 + $0x4] sm:$0xf]
        %v667 = vld [vmem:[%s340 + $0xc] sm:$0xf]
        %v668 = vld [vmem:[%s347 + $0x4] sm:$0xf]
        %v669 = vld [vmem:[%s347 + $0xc] sm:$0xf]
        %v670 = vld [vmem:[%s354 + $0x4] sm:$0xf]
        %v671 = vld [vmem:[%s354 + $0xc] sm:$0xf]
        %v674 = vunpack.c.l.b16 %v666
        %v675 = vunpack.c.l.b16 %v667
        %v676 = vpack.c.b16 %v675, %v674
        %v679 = vunpack.c.l.b16 %v668
        %v680 = vunpack.c.l.b16 %v669
        %v681 = vpack.c.b16 %v680, %v679
        %v683 = vsel %vm411, %v676, 0
        %v686 = vsel %vm411, %v681, 0
        %688 = vmatprep.subr.bf16.mxu0 0
        %689 = vmatpush1.bf16.xpose.msra.mxu0 0
        %690 = vmatprep.subr.bf16.mxu0 0
        %691 = vmatpush1.bf16.xpose.msra.mxu0 0
        %692 = vmatprep.subr.bf16.mxu0 0
        %693 = vmatpush1.bf16.xpose.msra.mxu0 0
        %694 = vmatprep.subr.bf16.mxu0 0
        %695 = vmatpush1.bf16.xpose.msra.mxu0 0
        %696 = vmatprep.subr.bf16.mxu0 0
        %697 = vmatpush1.bf16.xpose.msra.mxu0 0
        %698 = vmatprep.subr.bf16.mxu0 0
        %699 = vmatpush1.bf16.xpose.msra.mxu0 0
        %700 = vmatprep.subr.bf16.mxu0 0
        %701 = vmatpush1.bf16.xpose.msra.mxu0 0
        %702 = vmatprep.subr.bf16.mxu0 0
        %703 = vmatpush1.bf16.xpose.msra.mxu0 %v686
        %704 = vmatprep.subr.bf16.mxu0 0
        %705 = vmatpush2.bf16.xpose.msra.mxu0 0
        %706 = vmatprep.subr.bf16.mxu0 0
        %707 = vmatpush2.bf16.xpose.msra.mxu0 0
        %708 = vmatprep.subr.bf16.mxu0 0
        %709 = vmatpush2.bf16.xpose.msra.mxu0 0
        %710 = vmatprep.subr.bf16.mxu0 0
        %711 = vmatpush2.bf16.xpose.msra.mxu0 0
        %712 = vmatprep.subr.bf16.mxu0 0
        %713 = vmatpush2.bf16.xpose.msra.mxu0 0
        %714 = vmatprep.subr.bf16.mxu0 0
        %715 = vmatpush2.bf16.xpose.msra.mxu0 0
        %716 = vmatprep.subr.bf16.mxu0 0
        %717 = vmatpush2.bf16.xpose.msra.mxu0 0
        %718 = vmatprep.subr.bf16.mxu0 0
        %719 = vmatpush2.bf16.xpose.msra.mxu0 0
        %720 = vmatprep.mubr.bf16.mxu0 0
        %721 = vmatmul.mubr.bf16.gmra.mxu0 %v683
        %v722 = vpop.f32.mrf.mxu0
        %v723 = vadd.f32 0.0, %v722
        %v724 = vpop.f32.mrf.mxu0
        %v725 = vpop.f32.mrf.mxu0
        %v726 = vadd.f32 0.0, %v725
        %v727 = vpop.f32.mrf.mxu0
        %728 = vdwg.mxu0
        %v729 = vsel %vm465, -1e+09, %v723
        %v730 = vsel %vm466, -1e+09, %v726
        %v731 = vsel %vm469, %v729, -inf
        %732 = vmax.xlane.f32.xlu0 %v731
        %v733 = vpop.xlane.xlu0 %732
        %v734 = vsel %vm469, %v730, -inf
        %735 = vmax.xlane.f32.xlu0 %v734
        %v736 = vpop.xlane.xlu0 %735
        %v737 = vsub.f32 %v729, %v733
        %v738 = vsub.f32 %v730, %v736
        %v739 = vmul.f32 %v737, 1.442695
        %v740 = vpow.pop %v739
        %v741 = vmul.f32 %v738, 1.442695
        %v742 = vpow.pop %v741
        %v743 = vsel %vm469, %v740, 0.0
        %744 = vadd.xlane.f32.xlu0 %v743
        %v745 = vpop.xlane.xlu0 %744
        %v746 = vsel %vm469, %v742, 0.0
        %747 = vadd.xlane.f32.xlu0 %v746
        %v748 = vpop.xlane.xlu0 %747
        %v749 = vpack.c.bf16 %v742, %v740
        %v752 = vunpack.c.l.b16 %v670
        %v753 = vunpack.c.l.b16 %v671
        %v754 = vpack.c.b16 %v753, %v752
        %v757 = vsel %vm469, %v749, 0
        %759 = vmatprep.subr.bf16.mxu0 0
        %760 = vmatpush1.bf16.msra.mxu0 0
        %761 = vmatprep.subr.bf16.mxu0 0
        %762 = vmatpush1.bf16.msra.mxu0 0
        %763 = vmatprep.subr.bf16.mxu0 0
        %764 = vmatpush1.bf16.msra.mxu0 0
        %765 = vmatprep.subr.bf16.mxu0 0
        %766 = vmatpush1.bf16.msra.mxu0 0
        %767 = vmatprep.subr.bf16.mxu0 0
        %768 = vmatpush1.bf16.msra.mxu0 0
        %769 = vmatprep.subr.bf16.mxu0 0
        %770 = vmatpush1.bf16.msra.mxu0 0
        %771 = vmatprep.subr.bf16.mxu0 0
        %772 = vmatpush1.bf16.msra.mxu0 0
        %773 = vmatprep.subr.bf16.mxu0 0
        %774 = vmatpush1.bf16.msra.mxu0 %v754
        %775 = vmatprep.subr.bf16.mxu0 0
        %776 = vmatpush2.bf16.msra.mxu0 0
        %777 = vmatprep.subr.bf16.mxu0 0
        %778 = vmatpush2.bf16.msra.mxu0 0
        %779 = vmatprep.subr.bf16.mxu0 0
        %780 = vmatpush2.bf16.msra.mxu0 0
        %781 = vmatprep.subr.bf16.mxu0 0
        %782 = vmatpush2.bf16.msra.mxu0 0
        %783 = vmatprep.subr.bf16.mxu0 0
        %784 = vmatpush2.bf16.msra.mxu0 0
        %785 = vmatprep.subr.bf16.mxu0 0
        %786 = vmatpush2.bf16.msra.mxu0 0
        %787 = vmatprep.subr.bf16.mxu0 0
        %788 = vmatpush2.bf16.msra.mxu0 0
        %789 = vmatprep.subr.bf16.mxu0 0
        %790 = vmatpush2.bf16.msra.mxu0 0
        %791 = vmatprep.mubr.bf16.mxu0 0
        %792 = vmatmul.mubr.bf16.gmra.mxu0 %v757
        %v793 = vpop.f32.mrf.mxu0
        %v794 = vadd.f32 0.0, %v793
        %v795 = vpop.f32.mrf.mxu0
        %v796 = vpop.f32.mrf.mxu0
        %v797 = vadd.f32 0.0, %v796
        %v798 = vpop.f32.mrf.mxu0
        %799 = vdwg.mxu0
        %v800 = vrcp.pop %v745
        %v801 = vrcp.pop %v748
        %v802 = vmul.f32 %v794, %v800
        %v803 = vmul.f32 %v797, %v801
        %804 = vrot.lane.b32.xlu0 %v676, 64
        %v805 = vpop.permute.xlu0 %804
        %806 = vrot.lane.b32.xlu0 %v681, 64
        %v807 = vpop.permute.xlu0 %806
        %v809 = vsel %vm411, %v805, 0
        %v812 = vsel %vm411, %v807, 0
        %814 = vmatprep.subr.bf16.mxu0 0
        %815 = vmatpush1.bf16.xpose.msra.mxu0 0
        %816 = vmatprep.subr.bf16.mxu0 0
        %817 = vmatpush1.bf16.xpose.msra.mxu0 0
        %818 = vmatprep.subr.bf16.mxu0 0
        %819 = vmatpush1.bf16.xpose.msra.mxu0 0
        %820 = vmatprep.subr.bf16.mxu0 0
        %821 = vmatpush1.bf16.xpose.msra.mxu0 0
        %822 = vmatprep.subr.bf16.mxu0 0
        %823 = vmatpush1.bf16.xpose.msra.mxu0 0
        %824 = vmatprep.subr.bf16.mxu0 0
        %825 = vmatpush1.bf16.xpose.msra.mxu0 0
        %826 = vmatprep.subr.bf16.mxu0 0
        %827 = vmatpush1.bf16.xpose.msra.mxu0 0
        %828 = vmatprep.subr.bf16.mxu0 0
        %829 = vmatpush1.bf16.xpose.msra.mxu0 %v812
        %830 = vmatprep.subr.bf16.mxu0 0
        %831 = vmatpush2.bf16.xpose.msra.mxu0 0
        %832 = vmatprep.subr.bf16.mxu0 0
        %833 = vmatpush2.bf16.xpose.msra.mxu0 0
        %834 = vmatprep.subr.bf16.mxu0 0
        %835 = vmatpush2.bf16.xpose.msra.mxu0 0
        %836 = vmatprep.subr.bf16.mxu0 0
        %837 = vmatpush2.bf16.xpose.msra.mxu0 0
        %838 = vmatprep.subr.bf16.mxu0 0
        %839 = vmatpush2.bf16.xpose.msra.mxu0 0
        %840 = vmatprep.subr.bf16.mxu0 0
        %841 = vmatpush2.bf16.xpose.msra.mxu0 0
        %842 = vmatprep.subr.bf16.mxu0 0
        %843 = vmatpush2.bf16.xpose.msra.mxu0 0
        %844 = vmatprep.subr.bf16.mxu0 0
        %845 = vmatpush2.bf16.xpose.msra.mxu0 0
        %846 = vmatprep.mubr.bf16.mxu0 0
        %847 = vmatmul.mubr.bf16.gmra.mxu0 %v809
        %v848 = vpop.f32.mrf.mxu0
        %v849 = vadd.f32 0.0, %v848
        %v850 = vpop.f32.mrf.mxu0
        %v851 = vpop.f32.mrf.mxu0
        %v852 = vadd.f32 0.0, %v851
        %v853 = vpop.f32.mrf.mxu0
        %854 = vdwg.mxu0
        %v855 = vsel %vm465, -1e+09, %v849
        %v856 = vsel %vm466, -1e+09, %v852
        %v857 = vsel %vm469, %v855, -inf
        %858 = vmax.xlane.f32.xlu0 %v857
        %v859 = vpop.xlane.xlu0 %858
        %v860 = vsel %vm469, %v856, -inf
        %861 = vmax.xlane.f32.xlu0 %v860
        %v862 = vpop.xlane.xlu0 %861
        %v863 = vsub.f32 %v855, %v859
        %v864 = vsub.f32 %v856, %v862
        %v865 = vmul.f32 %v863, 1.442695
        %v866 = vpow.pop %v865
        %v867 = vmul.f32 %v864, 1.442695
        %v868 = vpow.pop %v867
        %v869 = vsel %vm469, %v866, 0.0
        %870 = vadd.xlane.f32.xlu0 %v869
        %v871 = vpop.xlane.xlu0 %870
        %v872 = vsel %vm469, %v868, 0.0
        %873 = vadd.xlane.f32.xlu0 %v872
        %v874 = vpop.xlane.xlu0 %873
        %v875 = vpack.c.bf16 %v868, %v866
        %876 = vrot.lane.b32.xlu0 %v754, 64
        %v877 = vpop.permute.xlu0 %876
        %v880 = vsel %vm469, %v875, 0
        %882 = vmatprep.subr.bf16.mxu0 0
        %883 = vmatpush1.bf16.msra.mxu0 0
        %884 = vmatprep.subr.bf16.mxu0 0
        %885 = vmatpush1.bf16.msra.mxu0 0
        %886 = vmatprep.subr.bf16.mxu0 0
        %887 = vmatpush1.bf16.msra.mxu0 0
        %888 = vmatprep.subr.bf16.mxu0 0
        %889 = vmatpush1.bf16.msra.mxu0 0
        %890 = vmatprep.subr.bf16.mxu0 0
        %891 = vmatpush1.bf16.msra.mxu0 0
        %892 = vmatprep.subr.bf16.mxu0 0
        %893 = vmatpush1.bf16.msra.mxu0 0
        %894 = vmatprep.subr.bf16.mxu0 0
        %895 = vmatpush1.bf16.msra.mxu0 0
        %896 = vmatprep.subr.bf16.mxu0 0
        %897 = vmatpush1.bf16.msra.mxu0 %v877
        %898 = vmatprep.subr.bf16.mxu0 0
        %899 = vmatpush2.bf16.msra.mxu0 0
        %900 = vmatprep.subr.bf16.mxu0 0
        %901 = vmatpush2.bf16.msra.mxu0 0
        %902 = vmatprep.subr.bf16.mxu0 0
        %903 = vmatpush2.bf16.msra.mxu0 0
        %904 = vmatprep.subr.bf16.mxu0 0
        %905 = vmatpush2.bf16.msra.mxu0 0
        %906 = vmatprep.subr.bf16.mxu0 0
        %907 = vmatpush2.bf16.msra.mxu0 0
        %908 = vmatprep.subr.bf16.mxu0 0
        %909 = vmatpush2.bf16.msra.mxu0 0
        %910 = vmatprep.subr.bf16.mxu0 0
        %911 = vmatpush2.bf16.msra.mxu0 0
        %912 = vmatprep.subr.bf16.mxu0 0
        %913 = vmatpush2.bf16.msra.mxu0 0
        %914 = vmatprep.mubr.bf16.mxu0 0
        %915 = vmatmul.mubr.bf16.gmra.mxu0 %v880
        %v916 = vpop.f32.mrf.mxu0
        %v917 = vadd.f32 0.0, %v916
        %v918 = vpop.f32.mrf.mxu0
        %v919 = vpop.f32.mrf.mxu0
        %v920 = vadd.f32 0.0, %v919
        %v921 = vpop.f32.mrf.mxu0
        %922 = vdwg.mxu0
        %v923 = vrcp.pop %v871
        %v924 = vrcp.pop %v874
        %v925 = vmul.f32 %v917, %v923
        %v926 = vmul.f32 %v920, %v924
        %929 = vrot.lane.b32.xlu0 %v664, 64
        %v930 = vpop.permute.xlu0 %929
        %931 = vrot.lane.b32.xlu0 %v665, 64
        %v932 = vpop.permute.xlu0 %931
        %937 = vrot.lane.b32.xlu0 %v925, 64
        %v938 = vpop.permute.xlu0 %937
        %939 = vrot.lane.b32.xlu0 %v926, 64
        %v940 = vpop.permute.xlu0 %939
        %v943 = vsel %vm411, %v541, %v930
        %v944 = vsel %vm411, %v542, %v932
        %v945 = vsel %vm411, %v802, %v938
        %v946 = vsel %vm411, %v803, %v940
        %v947 = vpack.c.bf16 %v944, %v943
        %v948 = vpack.c.bf16 %v946, %v945
        %v951 = vunpack.c.l.b16 %v947
        %v952 = vunpack.c.l.b16 %v948
        %v953 = vunpack.c.h.b16 %v947
        %v954 = vunpack.c.h.b16 %v948
        %v955 = vpack.c.b16 %v952, %v951
        %v956 = vpack.c.b16 %v954, %v953
        %959 = vst [vmem:[%s383] sm:$0xff] %v955
        %960 = vst [vmem:[%s383 + $0x8] sm:$0xff] %v956
        %s961 = sand.u32 %s146, 1
        %s962 = sand.u32 %s146, 1
        %s963 = smul.addr %s962, 16
        %s964 = scalar_lea.vmem [#allocation5], %s963
        // Predicated region
        $region151: #{_mha_self_forward.4} parent=137 // pred_check
          %p965 = pneg %p156
        $region152: #{_mha_self_forward.4} parent=137 // pred_check_branch
          %967 = sbr.rel (%p965) target = $region154
        $region153: #{_mha_self_forward.4} parent=137 // pred_region
          %s968 = smul.u32 2, %s20
          %s969 = smul.addr %s19, 8
          %s970 = sadd.s32 %s968, %s969
          %s971 = smul.addr %s970, 4
          %s972 = scalar_lea.vmem %s4, %s971
          // Predicated region
          $region155: #{_mha_self_forward.4} parent=153 // pred_check
            _
          $region156: #{_mha_self_forward.4} parent=153 // pred_check_branch
            %974 = sbr.rel (0) target = $region158
          $region157: #{_mha_self_forward.4} parent=153 // pred_region
            // Predicated region
            $region159: #{_mha_self_forward.4} parent=157 // pred_check
              _
            $region160: #{_mha_self_forward.4} parent=157 // pred_check_branch
              %976 = sbr.rel (0) target = $region162
            $region161: #{_mha_self_forward.4} parent=157 // pred_region
              // Predicated region
              $region174: #{_mha_self_forward.4} parent=161 // pred_check
                _
              $region175: #{_mha_self_forward.4} parent=161 // pred_check_branch
                %994 = sbr.rel (0) target = $region177
              $region176: #{_mha_self_forward.4} parent=161 // pred_region
                loop: start=0, step=1, limit=1
                $region178: #{_mha_self_forward.4} parent=176 // loop_pre_header
                  _
                $region179: #{_mha_self_forward.4} parent=176 // loop_header
                  %s996 = sphi 0, %s1000
                  %p997 = scmp.ge.s32.totalorder %s996, 1
                  %s1001 = sphi %s964, %s964
                  %s1002 = sphi %s972, %s972
                $region180: #{_mha_self_forward.4} parent=176 // loop_header_branch
                  %999 = sbr.rel (%p997) target = $region184
                $region181: #{_mha_self_forward.4} parent=176 // loop_body
                  %v1003 = vld [vmem:[%s1001] sm:$0xff]
                  %1004 = vst [vmem:[%s1002] sm:$0xff] %v1003
                  %v1005 = vld [vmem:[%s1001 + $0x8] sm:$0xff]
                  %1006 = vst [vmem:[%s1002 + $0x10] sm:$0xff] %v1005
                $region182: #{_mha_self_forward.4} parent=176 // loop_footer
                  %s1000 = sadd.s32 1, %s996
                $region183: #{_mha_self_forward.4} parent=176 // loop_footer_branch
                  %995 = sbr.rel target = $region179
                $region184: #{_mha_self_forward.4} parent=176 // loop_exit
                  _
              $region177: #{_mha_self_forward.4} parent=161 // pred_fallthru
                _
              // Predicated region
              $region185: #{_mha_self_forward.4} parent=161 // pred_check
                _
              $region186: #{_mha_self_forward.4} parent=161 // pred_check_branch
                %1008 = sbr.rel target = $region188
              $region187: #{_mha_self_forward.4} parent=161 // pred_region
                _
              $region188: #{_mha_self_forward.4} parent=161 // pred_fallthru
                _
            $region162: #{_mha_self_forward.4} parent=157 // pred_fallthru
              _
            // Predicated region
            $region163: #{_mha_self_forward.4} parent=157 // pred_check
              _
            $region164: #{_mha_self_forward.4} parent=157 // pred_check_branch
              %978 = sbr.rel target = $region166
            $region165: #{_mha_self_forward.4} parent=157 // pred_region
              %s980 = ssub.s32 256, 1
              loop: start=0, step=1, limit=1
              $region167: #{_mha_self_forward.4} parent=165 // loop_pre_header
                _
              $region168: #{_mha_self_forward.4} parent=165 // loop_header
                %s982 = sphi 0, %s986
                %p983 = scmp.ge.s32.totalorder %s982, 1
                %s987 = sphi %s964, %s964
                %s988 = sphi %s972, %s972
              $region169: #{_mha_self_forward.4} parent=165 // loop_header_branch
                %985 = sbr.rel (%p983) target = $region173
              $region170: #{_mha_self_forward.4} parent=165 // loop_body
                %v989 = vld [vmem:[%s987] sm:%s980]
                %990 = vst [vmem:[%s988] sm:%s980] %v989
                %v991 = vld [vmem:[%s987 + $0x8] sm:%s980]
                %992 = vst [vmem:[%s988 + $0x10] sm:%s980] %v991
              $region171: #{_mha_self_forward.4} parent=165 // loop_footer
                %s986 = sadd.s32 1, %s982
              $region172: #{_mha_self_forward.4} parent=165 // loop_footer_branch
                %981 = sbr.rel target = $region168
              $region173: #{_mha_self_forward.4} parent=165 // loop_exit
                _
            $region166: #{_mha_self_forward.4} parent=157 // pred_fallthru
              _
          $region158: #{_mha_self_forward.4} parent=153 // pred_fallthru
            _
          %1009 = vnop
        $region154: #{_mha_self_forward.4} parent=137 // pred_fallthru
          _
      $region138: #{_mha_self_forward.4} parent=5 // pred_fallthru
        _
      %p1010 = scmp.le.s32.totalorder 2, %s10
      // Predicated region
      $region189: #{_mha_self_forward.4} parent=5 // pred_check
        %p1011 = pneg %p1010
      $region190: #{_mha_self_forward.4} parent=5 // pred_check_branch
        %1013 = sbr.rel (%p1011) target = $region192
      $region191: #{_mha_self_forward.4} parent=5 // pred_region
        %s1014 = ssub.s32 %s10, 2
        // Predicated region
        $region193: #{_mha_self_forward.4} parent=191 // pred_check
          %p1015 = pneg %p162
        $region194: #{_mha_self_forward.4} parent=191 // pred_check_branch
          %1017 = sbr.rel (%p1015) target = $region196
        $region195: #{_mha_self_forward.4} parent=191 // pred_region
          %s1018 = sand.u32 %s147, 1
          %s1019 = sand.u32 %s147, 1
          %s1020 = smul.addr %s1019, 16
          %s1021 = scalar_lea.vmem [#allocation5], %s1020
        $region196: #{_mha_self_forward.4} parent=191 // pred_fallthru
          _
      $region192: #{_mha_self_forward.4} parent=5 // pred_fallthru
        _
    $region6: #{_mha_self_forward.4} parent=1 // loop_footer
      %s14 = sadd.s32 1, %s10
    $region7: #{_mha_self_forward.4} parent=1 // loop_footer_branch
      %9 = sbr.rel target = $region3
    $region8: #{_mha_self_forward.4} parent=1 // loop_exit
      _

// kernel: _mha_self_forward.5
$region0: #{_mha_self_forward.5}
  #allocation0 [shape = 'u32[]', space=smem, size = 0x4, offset = 0x4, fixed_abs, tag = 'smem constant byte address 0x4 - core index']
  #allocation1 [shape = 'u32[144,128]{1,0:T(1,128)}', space=vmem, size = 0x12000, scoped, tag = 'internal scratch']
  %s0 = inlined_call_operand.vmem [shape: bf16[32,512], index: 0, kind: input, shape index: {}]
  %s1 = inlined_call_operand.vmem [shape: bf16[512,512], index: 1, kind: input, shape index: {}]
  %s2 = inlined_call_operand.vmem [shape: f32[1,512], index: 2, kind: input, shape index: {}]
  %s3 = inlined_call_operand.hbm [shape: f32[32,512], index: 3, kind: output, shape index: {}]
  %s4 = sld [smem:[#allocation0]]
  $region45: #{_mha_self_forward.5} parent=0
    _
  %s6 = ssub.s32 1, %s4
  %s7 = scalar_select 0, %s6, %s4
  $region1: #{_mha_self_forward.5} parent=0
    #allocation2 [shape = 'u8[65536]{0}', space=vmem, size = 0x10000, scoped, tag = 'output window, operand 0']
    #allocation3 [shape = 's32[2]{0}', space=sflag, size = 0x8, scoped, tag = 'scoped memory for _mha_self_forward.5']
    %8 = vsyncpa [#allocation3], 0
    %s9 = scalar_lea.sflag [#allocation3], 1
    %10 = vsyncpa %s9, 0
    loop: start=0, step=1, limit=4
    $region2: #{_mha_self_forward.5} parent=1 // loop_pre_header
      _
    $region3: #{_mha_self_forward.5} parent=1 // loop_header
      %s12 = sphi 0, %s16
      %p13 = scmp.ge.s32.totalorder %s12, 4
      %s22 = sphi 0, %s24
      %s25 = sphi 0, %s22
      %s26 = sphi 0, %s25
      %s42 = sphi 0, %s26
      %s46 = sphi 0, %s46
      %s48 = sphi 0, %s46
      %s49 = sphi 0, %s48
      %s63 = sphi 0, %s49
      %s67 = sphi 0, %s67
      %s69 = sphi 0, %s67
      %s70 = sphi 0, %s69
      %s84 = sphi 0, %s70
      %s90 = sphi 0, %s92
      %s93 = sphi 0, %s90
      %s94 = sphi 0, %s93
      %s110 = sphi 0, %s94
    $region4: #{_mha_self_forward.5} parent=1 // loop_header_branch
      %15 = sbr.rel (%p13) target = $region8
    $region5: #{_mha_self_forward.5} parent=1 // loop_body
      %s17 = ssub.s32 %s12, 1
      %s18 = ssub.s32 %s12, 2
      %s19 = sadd.s32 %s12, 1
      %s20 = ssub.s32 %s12, %s19
      %p21 = scmp.eq.s32.totalorder %s20, 0
      %s23 = sadd.s32 %s22, 1
      %s24 = scalar_select %p21, %s22, %s23
      %p27 = pneg %p21
      %p28 = scmp.eq.s32.totalorder %s12, 1
      %p29 = por %p27, %p28
      %p30 = scmp.ne.s32.totalorder %s22, %s25
      %p31 = scmp.eq.s32.totalorder %s12, 0
      %p32 = por %p30, %p31
      %p33 = scmp.ne.s32.totalorder %s22, %s25
      %p34 = scmp.eq.s32.totalorder %s17, 1
      %p35 = por %p33, %p34
      %p36 = scmp.ne.s32.totalorder %s25, %s26
      %p37 = scmp.eq.s32.totalorder %s17, 0
      %p38 = por %p36, %p37
      %p39 = scmp.ne.s32.totalorder %s25, %s26
      %p40 = scmp.eq.s32.totalorder %s18, 1
      %p41 = por %p39, %p40
      %p43 = scmp.ne.s32.totalorder %s26, %s42
      %p44 = scmp.eq.s32.totalorder %s18, 0
      %p45 = por %p43, %p44
      %s47 = sadd.s32 %s46, 1
      %p50 = scmp.eq.s32.totalorder %s12, 1
      %p51 = scmp.ne.s32.totalorder %s46, %s48
      %p52 = scmp.eq.s32.totalorder %s12, 0
      %p53 = por %p51, %p52
      %p54 = scmp.ne.s32.totalorder %s46, %s48
      %p55 = scmp.eq.s32.totalorder %s17, 1
      %p56 = por %p54, %p55
      %p57 = scmp.ne.s32.totalorder %s48, %s49
      %p58 = scmp.eq.s32.totalorder %s17, 0
      %p59 = por %p57, %p58
      %p60 = scmp.ne.s32.totalorder %s48, %s49
      %p61 = scmp.eq.s32.totalorder %s18, 1
      %p62 = por %p60, %p61
      %p64 = scmp.ne.s32.totalorder %s49, %s63
      %p65 = scmp.eq.s32.totalorder %s18, 0
      %p66 = por %p64, %p65
      %s68 = sadd.s32 %s67, 1
      %p71 = scmp.eq.s32.totalorder %s12, 1
      %p72 = scmp.ne.s32.totalorder %s67, %s69
      %p73 = scmp.eq.s32.totalorder %s12, 0
      %p74 = por %p72, %p73
      %p75 = scmp.ne.s32.totalorder %s67, %s69
      %p76 = scmp.eq.s32.totalorder %s17, 1
      %p77 = por %p75, %p76
      %p78 = scmp.ne.s32.totalorder %s69, %s70
      %p79 = scmp.eq.s32.totalorder %s17, 0
      %p80 = por %p78, %p79
      %p81 = scmp.ne.s32.totalorder %s69, %s70
      %p82 = scmp.eq.s32.totalorder %s18, 1
      %p83 = por %p81, %p82
      %p85 = scmp.ne.s32.totalorder %s70, %s84
      %p86 = scmp.eq.s32.totalorder %s18, 0
      %p87 = por %p85, %p86
      %s88 = ssub.s32 %s12, %s19
      %p89 = scmp.eq.s32.totalorder %s88, 0
      %s91 = sadd.s32 %s90, 1
      %s92 = scalar_select %p89, %s90, %s91
      %p95 = pneg %p89
      %p96 = scmp.eq.s32.totalorder %s12, 1
      %p97 = por %p95, %p96
      %p98 = scmp.ne.s32.totalorder %s90, %s93
      %p99 = scmp.eq.s32.totalorder %s12, 0
      %p100 = por %p98, %p99
      %p101 = scmp.ne.s32.totalorder %s90, %s93
      %p102 = scmp.eq.s32.totalorder %s17, 1
      %p103 = por %p101, %p102
      %p104 = scmp.ne.s32.totalorder %s93, %s94
      %p105 = scmp.eq.s32.totalorder %s17, 0
      %p106 = por %p104, %p105
      %p107 = scmp.ne.s32.totalorder %s93, %s94
      %p108 = scmp.eq.s32.totalorder %s18, 1
      %p109 = por %p107, %p108
      %p111 = scmp.ne.s32.totalorder %s94, %s110
      %p112 = scmp.eq.s32.totalorder %s18, 0
      %p113 = por %p111, %p112
      %p114 = scmp.le.s32.totalorder 1, %s12
      %p115 = scmp.lt.s32.totalorder %s12, 3
      %p116 = pnand %p114, %p115
      %p117 = pneg %p116
      // Predicated region
      $region9: #{_mha_self_forward.5} parent=5 // pred_check
        _
      $region10: #{_mha_self_forward.5} parent=5 // pred_check_branch
        %119 = sbr.rel (%p116) target = $region12
      $region11: #{_mha_self_forward.5} parent=5 // pred_region
        %s120 = ssub.s32 %s12, 1
        // Predicated region
        $region13: #{_mha_self_forward.5} parent=11 // pred_check
          %p121 = pneg %p59
        $region14: #{_mha_self_forward.5} parent=11 // pred_check_branch
          %123 = sbr.rel (%p121) target = $region16
        $region15: #{_mha_self_forward.5} parent=11 // pred_region
          _
        $region16: #{_mha_self_forward.5} parent=11 // pred_fallthru
          _
        // Predicated region
        $region17: #{_mha_self_forward.5} parent=11 // pred_check
          %p124 = pneg %p80
        $region18: #{_mha_self_forward.5} parent=11 // pred_check_branch
          %126 = sbr.rel (%p124) target = $region20
        $region19: #{_mha_self_forward.5} parent=11 // pred_region
          _
        $region20: #{_mha_self_forward.5} parent=11 // pred_fallthru
          _
      $region12: #{_mha_self_forward.5} parent=5 // pred_fallthru
        _
      %p127 = scmp.lt.s32.totalorder %s12, 2
      // Predicated region
      $region21: #{_mha_self_forward.5} parent=5 // pred_check
        %p128 = pneg %p127
      $region22: #{_mha_self_forward.5} parent=5 // pred_check_branch
        %130 = sbr.rel (%p128) target = $region24
      $region23: #{_mha_self_forward.5} parent=5 // pred_region
        // Predicated region
        $region25: #{_mha_self_forward.5} parent=23 // pred_check
          %p131 = pneg %p32
        $region26: #{_mha_self_forward.5} parent=23 // pred_check_branch
          %133 = sbr.rel (%p131) target = $region28
        $region27: #{_mha_self_forward.5} parent=23 // pred_region
          %s134 = smul.u32 2, %s12
          %p135 = scmp.lt.s32.totalorder %s134, 3
          %s136 = scalar_select %p135, %s134, 3
          %s137 = smul.addr %s136, 4
          %s138 = smul.addr %s137, 4
          %s139 = scalar_lea.vmem %s0, %s138
          %s140 = smul.u32 2, %s12
        $region28: #{_mha_self_forward.5} parent=23 // pred_fallthru
          _
      $region24: #{_mha_self_forward.5} parent=5 // pred_fallthru
        _
      %p141 = scmp.le.s32.totalorder 1, %s12
      %p142 = scmp.lt.s32.totalorder %s12, 3
      %p143 = pnand %p141, %p142
      %p144 = pneg %p143
      // Predicated region
      $region29: #{_mha_self_forward.5} parent=5 // pred_check
        _
      $region30: #{_mha_self_forward.5} parent=5 // pred_check_branch
        %146 = sbr.rel (%p143) target = $region32
      $region31: #{_mha_self_forward.5} parent=5 // pred_region
        %s147 = ssub.s32 %s12, 1
        %s148 = smul.u32 2, %s17
        %p149 = scmp.lt.s32.totalorder %s148, 3
        %s150 = scalar_select %p149, %s148, 3
        %s151 = smul.addr %s150, 4
        %s152 = smul.addr %s151, 4
        %s153 = scalar_lea.vmem %s0, %s152
        %p154 = pneg %p38
        %p155 = pneg %p35
        %p156 = pneg %p59
        %p157 = pneg %p56
        %p158 = pneg %p80
        %p159 = pneg %p77
        %p160 = pneg %p106
        %p161 = pneg %p103
        %s162 = sand.u32 %s93, 1
        %s163 = scalar_lea.sflag [#allocation3], %s162
        %s164 = sand.u32 %s93, 1
        %s165 = smul.addr %s164, 64
        %s166 = scalar_lea.vmem [#allocation2], %s165
        %s167 = smul.u32 2, %s17
        %p168 = scmp.lt.s32.totalorder %s167, 3
        %s169 = scalar_select %p168, %s167, 3
        %s170 = smul.addr %s169, 4
        %s171 = smul.addr %s170, 4
        %s172 = scalar_lea.vmem %s0, %s171
        %s173 = smul.u32 2, %s17
        %s174 = smul.u32 2, %s17
        %v175 = vld [vmem:[%s172] sm:$0xff]
        %v176 = vld [vmem:[%s172 + $0x8] sm:$0xff]
        %v177 = vld [vmem:[%s172 + $0x10] sm:$0xff]
        %v178 = vld [vmem:[%s172 + $0x18] sm:$0xff]
        %v179 = vld [vmem:[%s1] sm:$0xff]
        %v180 = vld [vmem:[%s1 + $0x8] sm:$0xff]
        %v181 = vld [vmem:[%s1 + $0x10] sm:$0xff]
        %v182 = vld [vmem:[%s1 + $0x18] sm:$0xff]
        %v183 = vld [vmem:[%s1 + $0x20] sm:$0xff]
        %v184 = vld [vmem:[%s1 + $0x28] sm:$0xff]
        %v185 = vld [vmem:[%s1 + $0x30] sm:$0xff]
        %v186 = vld [vmem:[%s1 + $0x38] sm:$0xff]
        %v187 = vld [vmem:[%s1 + $0x40] sm:$0xff]
        %v188 = vld [vmem:[%s1 + $0x48] sm:$0xff]
        %v189 = vld [vmem:[%s1 + $0x50] sm:$0xff]
        %v190 = vld [vmem:[%s1 + $0x58] sm:$0xff]
        %v191 = vld [vmem:[%s1 + $0x60] sm:$0xff]
        %v192 = vld [vmem:[%s1 + $0x68] sm:$0xff]
        %v193 = vld [vmem:[%s1 + $0x70] sm:$0xff]
        %v194 = vld [vmem:[%s1 + $0x78] sm:$0xff]
        %v195 = vld [vmem:[%s1 + $0x80] sm:$0xff]
        %v196 = vld [vmem:[%s1 + $0x88] sm:$0xff]
        %v197 = vld [vmem:[%s1 + $0x90] sm:$0xff]
        %v198 = vld [vmem:[%s1 + $0x98] sm:$0xff]
        %v199 = vld [vmem:[%s1 + $0xa0] sm:$0xff]
        %v200 = vld [vmem:[%s1 + $0xa8] sm:$0xff]
        %v201 = vld [vmem:[%s1 + $0xb0] sm:$0xff]
        %v202 = vld [vmem:[%s1 + $0xb8] sm:$0xff]
        %v203 = vld [vmem:[%s1 + $0xc0] sm:$0xff]
        %v204 = vld [vmem:[%s1 + $0xc8] sm:$0xff]
        %v205 = vld [vmem:[%s1 + $0xd0] sm:$0xff]
        %v206 = vld [vmem:[%s1 + $0xd8] sm:$0xff]
        %v207 = vld [vmem:[%s1 + $0xe0] sm:$0xff]
        %v208 = vld [vmem:[%s1 + $0xe8] sm:$0xff]
        %v209 = vld [vmem:[%s1 + $0xf0] sm:$0xff]
        %v210 = vld [vmem:[%s1 + $0xf8] sm:$0xff]
        %v211 = vld [vmem:[%s1 + $0x100] sm:$0xff]
        %v212 = vld [vmem:[%s1 + $0x108] sm:$0xff]
        %v213 = vld [vmem:[%s1 + $0x110] sm:$0xff]
        %v214 = vld [vmem:[%s1 + $0x118] sm:$0xff]
        %v215 = vld [vmem:[%s1 + $0x120] sm:$0xff]
        %v216 = vld [vmem:[%s1 + $0x128] sm:$0xff]
        %v217 = vld [vmem:[%s1 + $0x130] sm:$0xff]
        %v218 = vld [vmem:[%s1 + $0x138] sm:$0xff]
        %v219 = vld [vmem:[%s1 + $0x140] sm:$0xff]
        %v220 = vld [vmem:[%s1 + $0x148] sm:$0xff]
        %v221 = vld [vmem:[%s1 + $0x150] sm:$0xff]
        %v222 = vld [vmem:[%s1 + $0x158] sm:$0xff]
        %v223 = vld [vmem:[%s1 + $0x160] sm:$0xff]
        %v224 = vld [vmem:[%s1 + $0x168] sm:$0xff]
        %v225 = vld [vmem:[%s1 + $0x170] sm:$0xff]
        %v226 = vld [vmem:[%s1 + $0x178] sm:$0xff]
        %v227 = vld [vmem:[%s1 + $0x180] sm:$0xff]
        %v228 = vld [vmem:[%s1 + $0x188] sm:$0xff]
        %v229 = vld [vmem:[%s1 + $0x190] sm:$0xff]
        %v230 = vld [vmem:[%s1 + $0x198] sm:$0xff]
        %v231 = vld [vmem:[%s1 + $0x1a0] sm:$0xff]
        %v232 = vld [vmem:[%s1 + $0x1a8] sm:$0xff]
        %v233 = vld [vmem:[%s1 + $0x1b0] sm:$0xff]
        %v234 = vld [vmem:[%s1 + $0x1b8] sm:$0xff]
        %v235 = vld [vmem:[%s1 + $0x1c0] sm:$0xff]
        %v236 = vld [vmem:[%s1 + $0x1c8] sm:$0xff]
        %v237 = vld [vmem:[%s1 + $0x1d0] sm:$0xff]
        %v238 = vld [vmem:[%s1 + $0x1d8] sm:$0xff]
        %v239 = vld [vmem:[%s1 + $0x1e0] sm:$0xff]
        %v240 = vld [vmem:[%s1 + $0x1e8] sm:$0xff]
        %v241 = vld [vmem:[%s1 + $0x1f0] sm:$0xff]
        %v242 = vld [vmem:[%s1 + $0x1f8] sm:$0xff]
        %v243 = vld [vmem:[%s1 + $0x200] sm:$0xff]
        %v244 = vld [vmem:[%s1 + $0x208] sm:$0xff]
        %v245 = vld [vmem:[%s1 + $0x210] sm:$0xff]
        %v246 = vld [vmem:[%s1 + $0x218] sm:$0xff]
        %v247 = vld [vmem:[%s1 + $0x220] sm:$0xff]
        %v248 = vld [vmem:[%s1 + $0x228] sm:$0xff]
        %v249 = vld [vmem:[%s1 + $0x230] sm:$0xff]
        %v250 = vld [vmem:[%s1 + $0x238] sm:$0xff]
        %v251 = vld [vmem:[%s1 + $0x240] sm:$0xff]
        %v252 = vld [vmem:[%s1 + $0x248] sm:$0xff]
        %v253 = vld [vmem:[%s1 + $0x250] sm:$0xff]
        %v254 = vld [vmem:[%s1 + $0x258] sm:$0xff]
        %v255 = vld [vmem:[%s1 + $0x260] sm:$0xff]
        %v256 = vld [vmem:[%s1 + $0x268] sm:$0xff]
        %v257 = vld [vmem:[%s1 + $0x270] sm:$0xff]
        %v258 = vld [vmem:[%s1 + $0x278] sm:$0xff]
        %v259 = vld [vmem:[%s1 + $0x280] sm:$0xff]
        %v260 = vld [vmem:[%s1 + $0x288] sm:$0xff]
        %v261 = vld [vmem:[%s1 + $0x290] sm:$0xff]
        %v262 = vld [vmem:[%s1 + $0x298] sm:$0xff]
        %v263 = vld [vmem:[%s1 + $0x2a0] sm:$0xff]
        %v264 = vld [vmem:[%s1 + $0x2a8] sm:$0xff]
        %v265 = vld [vmem:[%s1 + $0x2b0] sm:$0xff]
        %v266 = vld [vmem:[%s1 + $0x2b8] sm:$0xff]
        %v267 = vld [vmem:[%s1 + $0x2c0] sm:$0xff]
        %v268 = vld [vmem:[%s1 + $0x2c8] sm:$0xff]
        %v269 = vld [vmem:[%s1 + $0x2d0] sm:$0xff]
        %v270 = vld [vmem:[%s1 + $0x2d8] sm:$0xff]
        %v271 = vld [vmem:[%s1 + $0x2e0] sm:$0xff]
        %v272 = vld [vmem:[%s1 + $0x2e8] sm:$0xff]
        %v273 = vld [vmem:[%s1 + $0x2f0] sm:$0xff]
        %v274 = vld [vmem:[%s1 + $0x2f8] sm:$0xff]
        %v275 = vld [vmem:[%s1 + $0x300] sm:$0xff]
        %v276 = vld [vmem:[%s1 + $0x308] sm:$0xff]
        %v277 = vld [vmem:[%s1 + $0x310] sm:$0xff]
        %v278 = vld [vmem:[%s1 + $0x318] sm:$0xff]
        %v279 = vld [vmem:[%s1 + $0x320] sm:$0xff]
        %v280 = vld [vmem:[%s1 + $0x328] sm:$0xff]
        %v281 = vld [vmem:[%s1 + $0x330] sm:$0xff]
        %v282 = vld [vmem:[%s1 + $0x338] sm:$0xff]
        %v283 = vld [vmem:[%s1 + $0x340] sm:$0xff]
        %v284 = vld [vmem:[%s1 + $0x348] sm:$0xff]
        %v285 = vld [vmem:[%s1 + $0x350] sm:$0xff]
        %v286 = vld [vmem:[%s1 + $0x358] sm:$0xff]
        %v287 = vld [vmem:[%s1 + $0x360] sm:$0xff]
        %v288 = vld [vmem:[%s1 + $0x368] sm:$0xff]
        %v289 = vld [vmem:[%s1 + $0x370] sm:$0xff]
        %v290 = vld [vmem:[%s1 + $0x378] sm:$0xff]
        %v291 = vld [vmem:[%s1 + $0x380] sm:$0xff]
        %v292 = vld [vmem:[%s1 + $0x388] sm:$0xff]
        %v293 = vld [vmem:[%s1 + $0x390] sm:$0xff]
        %v294 = vld [vmem:[%s1 + $0x398] sm:$0xff]
        %v295 = vld [vmem:[%s1 + $0x3a0] sm:$0xff]
        %v296 = vld [vmem:[%s1 + $0x3a8] sm:$0xff]
        %v297 = vld [vmem:[%s1 + $0x3b0] sm:$0xff]
        %v298 = vld [vmem:[%s1 + $0x3b8] sm:$0xff]
        %v299 = vld [vmem:[%s1 + $0x3c0] sm:$0xff]
        %v300 = vld [vmem:[%s1 + $0x3c8] sm:$0xff]
        %v301 = vld [vmem:[%s1 + $0x3d0] sm:$0xff]
        %v302 = vld [vmem:[%s1 + $0x3d8] sm:$0xff]
        %v303 = vld [vmem:[%s1 + $0x3e0] sm:$0xff]
        %v304 = vld [vmem:[%s1 + $0x3e8] sm:$0xff]
        %v305 = vld [vmem:[%s1 + $0x3f0] sm:$0xff]
        %v306 = vld [vmem:[%s1 + $0x3f8] sm:$0xff]
        %v307 = vld [vmem:[%s2] sm:$0xf]
        %v309 = vlaneseq
        %v310 = vshrl.u32 %v309, 7
        %v311 = vsub.s32 0, %v310
        %v312 = vrot.slane %v307, %v311
        %v313 = vlaneseq
        %v314 = vshrl.u32 %v313, 7
        %v315 = vsub.s32 1, %v314
        %v316 = vrot.slane %v307, %v315
        %v317 = vlaneseq
        %v318 = vshrl.u32 %v317, 7
        %v319 = vsub.s32 2, %v318
        %v320 = vrot.slane %v307, %v319
        %v321 = vlaneseq
        %v322 = vshrl.u32 %v321, 7
        %v323 = vsub.s32 3, %v322
        %v324 = vrot.slane %v307, %v323
        %v333 = vunpack.c.l.b16 %v175
        %v334 = vunpack.c.h.b16 %v175
        %v335 = vunpack.c.l.b16 %v176
        %v336 = vunpack.c.h.b16 %v176
        %v337 = vunpack.c.l.b16 %v177
        %v338 = vunpack.c.h.b16 %v177
        %v339 = vunpack.c.l.b16 %v178
        %v340 = vunpack.c.h.b16 %v178
        %v341 = vpack.c.b16 %v337, %v333
        %v342 = vpack.c.b16 %v338, %v334
        %v343 = vpack.c.b16 %v339, %v335
        %v344 = vpack.c.b16 %v340, %v336
        %v477 = vunpack.c.l.b16 %v179
        %v478 = vunpack.c.h.b16 %v179
        %v479 = vunpack.c.l.b16 %v180
        %v480 = vunpack.c.h.b16 %v180
        %v481 = vunpack.c.l.b16 %v181
        %v482 = vunpack.c.h.b16 %v181
        %v483 = vunpack.c.l.b16 %v182
        %v484 = vunpack.c.h.b16 %v182
        %v485 = vunpack.c.l.b16 %v183
        %v486 = vunpack.c.h.b16 %v183
        %v487 = vunpack.c.l.b16 %v184
        %v488 = vunpack.c.h.b16 %v184
        %v489 = vunpack.c.l.b16 %v185
        %v490 = vunpack.c.h.b16 %v185
        %v491 = vunpack.c.l.b16 %v186
        %v492 = vunpack.c.h.b16 %v186
        %v493 = vunpack.c.l.b16 %v187
        %v494 = vunpack.c.h.b16 %v187
        %v495 = vunpack.c.l.b16 %v188
        %v496 = vunpack.c.h.b16 %v188
        %v497 = vunpack.c.l.b16 %v189
        %v498 = vunpack.c.h.b16 %v189
        %v499 = vunpack.c.l.b16 %v190
        %v500 = vunpack.c.h.b16 %v190
        %v501 = vunpack.c.l.b16 %v191
        %v502 = vunpack.c.h.b16 %v191
        %v503 = vunpack.c.l.b16 %v192
        %v504 = vunpack.c.h.b16 %v192
        %v505 = vunpack.c.l.b16 %v193
        %v506 = vunpack.c.h.b16 %v193
        %v507 = vunpack.c.l.b16 %v194
        %v508 = vunpack.c.h.b16 %v194
        %v509 = vunpack.c.l.b16 %v195
        %v510 = vunpack.c.h.b16 %v195
        %v511 = vunpack.c.l.b16 %v196
        %v512 = vunpack.c.h.b16 %v196
        %v513 = vunpack.c.l.b16 %v197
        %v514 = vunpack.c.h.b16 %v197
        %v515 = vunpack.c.l.b16 %v198
        %v516 = vunpack.c.h.b16 %v198
        %v517 = vunpack.c.l.b16 %v199
        %v518 = vunpack.c.h.b16 %v199
        %v519 = vunpack.c.l.b16 %v200
        %v520 = vunpack.c.h.b16 %v200
        %v521 = vunpack.c.l.b16 %v201
        %v522 = vunpack.c.h.b16 %v201
        %v523 = vunpack.c.l.b16 %v202
        %v524 = vunpack.c.h.b16 %v202
        %v525 = vunpack.c.l.b16 %v203
        %v526 = vunpack.c.h.b16 %v203
        %v527 = vunpack.c.l.b16 %v204
        %v528 = vunpack.c.h.b16 %v204
        %v529 = vunpack.c.l.b16 %v205
        %v530 = vunpack.c.h.b16 %v205
        %v531 = vunpack.c.l.b16 %v206
        %v532 = vunpack.c.h.b16 %v206
        %v533 = vunpack.c.l.b16 %v207
        %v534 = vunpack.c.h.b16 %v207
        %v535 = vunpack.c.l.b16 %v208
        %v536 = vunpack.c.h.b16 %v208
        %v537 = vunpack.c.l.b16 %v209
        %v538 = vunpack.c.h.b16 %v209
        %v539 = vunpack.c.l.b16 %v210
        %v540 = vunpack.c.h.b16 %v210
        %v541 = vunpack.c.l.b16 %v211
        %v542 = vunpack.c.h.b16 %v211
        %v543 = vunpack.c.l.b16 %v212
        %v544 = vunpack.c.h.b16 %v212
        %v545 = vunpack.c.l.b16 %v213
        %v546 = vunpack.c.h.b16 %v213
        %v547 = vunpack.c.l.b16 %v214
        %v548 = vunpack.c.h.b16 %v214
        %v549 = vunpack.c.l.b16 %v215
        %v550 = vunpack.c.h.b16 %v215
        %v551 = vunpack.c.l.b16 %v216
        %v552 = vunpack.c.h.b16 %v216
        %v553 = vunpack.c.l.b16 %v217
        %v554 = vunpack.c.h.b16 %v217
        %v555 = vunpack.c.l.b16 %v218
        %v556 = vunpack.c.h.b16 %v218
        %v557 = vunpack.c.l.b16 %v219
        %v558 = vunpack.c.h.b16 %v219
        %v559 = vunpack.c.l.b16 %v220
        %v560 = vunpack.c.h.b16 %v220
        %v561 = vunpack.c.l.b16 %v221
        %v562 = vunpack.c.h.b16 %v221
        %v563 = vunpack.c.l.b16 %v222
        %v564 = vunpack.c.h.b16 %v222
        %v565 = vunpack.c.l.b16 %v223
        %v566 = vunpack.c.h.b16 %v223
        %v567 = vunpack.c.l.b16 %v224
        %v568 = vunpack.c.h.b16 %v224
        %v569 = vunpack.c.l.b16 %v225
        %v570 = vunpack.c.h.b16 %v225
        %v571 = vunpack.c.l.b16 %v226
        %v572 = vunpack.c.h.b16 %v226
        %v573 = vunpack.c.l.b16 %v227
        %v574 = vunpack.c.h.b16 %v227
        %v575 = vunpack.c.l.b16 %v228
        %v576 = vunpack.c.h.b16 %v228
        %v577 = vunpack.c.l.b16 %v229
        %v578 = vunpack.c.h.b16 %v229
        %v579 = vunpack.c.l.b16 %v230
        %v580 = vunpack.c.h.b16 %v230
        %v581 = vunpack.c.l.b16 %v231
        %v582 = vunpack.c.h.b16 %v231
        %v583 = vunpack.c.l.b16 %v232
        %v584 = vunpack.c.h.b16 %v232
        %v585 = vunpack.c.l.b16 %v233
        %v586 = vunpack.c.h.b16 %v233
        %v587 = vunpack.c.l.b16 %v234
        %v588 = vunpack.c.h.b16 %v234
        %v589 = vunpack.c.l.b16 %v235
        %v590 = vunpack.c.h.b16 %v235
        %v591 = vunpack.c.l.b16 %v236
        %v592 = vunpack.c.h.b16 %v236
        %v593 = vunpack.c.l.b16 %v237
        %v594 = vunpack.c.h.b16 %v237
        %v595 = vunpack.c.l.b16 %v238
        %v596 = vunpack.c.h.b16 %v238
        %v597 = vunpack.c.l.b16 %v239
        %v598 = vunpack.c.h.b16 %v239
        %v599 = vunpack.c.l.b16 %v240
        %v600 = vunpack.c.h.b16 %v240
        %v601 = vunpack.c.l.b16 %v241
        %v602 = vunpack.c.h.b16 %v241
        %v603 = vunpack.c.l.b16 %v242
        %v604 = vunpack.c.h.b16 %v242
        %v605 = vunpack.c.l.b16 %v243
        %v606 = vunpack.c.h.b16 %v243
        %v607 = vunpack.c.l.b16 %v244
        %v608 = vunpack.c.h.b16 %v244
        %v609 = vunpack.c.l.b16 %v245
        %v610 = vunpack.c.h.b16 %v245
        %v611 = vunpack.c.l.b16 %v246
        %v612 = vunpack.c.h.b16 %v246
        %v613 = vunpack.c.l.b16 %v247
        %v614 = vunpack.c.h.b16 %v247
        %v615 = vunpack.c.l.b16 %v248
        %v616 = vunpack.c.h.b16 %v248
        %v617 = vunpack.c.l.b16 %v249
        %v618 = vunpack.c.h.b16 %v249
        %v619 = vunpack.c.l.b16 %v250
        %v620 = vunpack.c.h.b16 %v250
        %v621 = vunpack.c.l.b16 %v251
        %v622 = vunpack.c.h.b16 %v251
        %v623 = vunpack.c.l.b16 %v252
        %v624 = vunpack.c.h.b16 %v252
        %v625 = vunpack.c.l.b16 %v253
        %v626 = vunpack.c.h.b16 %v253
        %v627 = vunpack.c.l.b16 %v254
        %v628 = vunpack.c.h.b16 %v254
        %v629 = vunpack.c.l.b16 %v255
        %v630 = vunpack.c.h.b16 %v255
        %v631 = vunpack.c.l.b16 %v256
        %v632 = vunpack.c.h.b16 %v256
        %v633 = vunpack.c.l.b16 %v257
        %v634 = vunpack.c.h.b16 %v257
        %v635 = vunpack.c.l.b16 %v258
        %v636 = vunpack.c.h.b16 %v258
        %v637 = vunpack.c.l.b16 %v259
        %v638 = vunpack.c.h.b16 %v259
        %v639 = vunpack.c.l.b16 %v260
        %v640 = vunpack.c.h.b16 %v260
        %v641 = vunpack.c.l.b16 %v261
        %v642 = vunpack.c.h.b16 %v261
        %v643 = vunpack.c.l.b16 %v262
        %v644 = vunpack.c.h.b16 %v262
        %v645 = vunpack.c.l.b16 %v263
        %v646 = vunpack.c.h.b16 %v263
        %v647 = vunpack.c.l.b16 %v264
        %v648 = vunpack.c.h.b16 %v264
        %v649 = vunpack.c.l.b16 %v265
        %v650 = vunpack.c.h.b16 %v265
        %v651 = vunpack.c.l.b16 %v266
        %v652 = vunpack.c.h.b16 %v266
        %v653 = vunpack.c.l.b16 %v267
        %v654 = vunpack.c.h.b16 %v267
        %v655 = vunpack.c.l.b16 %v268
        %v656 = vunpack.c.h.b16 %v268
        %v657 = vunpack.c.l.b16 %v269
        %v658 = vunpack.c.h.b16 %v269
        %v659 = vunpack.c.l.b16 %v270
        %v660 = vunpack.c.h.b16 %v270
        %v661 = vunpack.c.l.b16 %v271
        %v662 = vunpack.c.h.b16 %v271
        %v663 = vunpack.c.l.b16 %v272
        %v664 = vunpack.c.h.b16 %v272
        %v665 = vunpack.c.l.b16 %v273
        %v666 = vunpack.c.h.b16 %v273
        %v667 = vunpack.c.l.b16 %v274
        %v668 = vunpack.c.h.b16 %v274
        %v669 = vunpack.c.l.b16 %v275
        %v670 = vunpack.c.h.b16 %v275
        %v671 = vunpack.c.l.b16 %v276
        %v672 = vunpack.c.h.b16 %v276
        %v673 = vunpack.c.l.b16 %v277
        %v674 = vunpack.c.h.b16 %v277
        %v675 = vunpack.c.l.b16 %v278
        %v676 = vunpack.c.h.b16 %v278
        %v677 = vunpack.c.l.b16 %v279
        %v678 = vunpack.c.h.b16 %v279
        %v679 = vunpack.c.l.b16 %v280
        %v680 = vunpack.c.h.b16 %v280
        %v681 = vunpack.c.l.b16 %v281
        %v682 = vunpack.c.h.b16 %v281
        %v683 = vunpack.c.l.b16 %v282
        %v684 = vunpack.c.h.b16 %v282
        %v685 = vunpack.c.l.b16 %v283
        %v686 = vunpack.c.h.b16 %v283
        %v687 = vunpack.c.l.b16 %v284
        %v688 = vunpack.c.h.b16 %v284
        %v689 = vunpack.c.l.b16 %v285
        %v690 = vunpack.c.h.b16 %v285
        %v691 = vunpack.c.l.b16 %v286
        %v692 = vunpack.c.h.b16 %v286
        %v693 = vunpack.c.l.b16 %v287
        %v694 = vunpack.c.h.b16 %v287
        %v695 = vunpack.c.l.b16 %v288
        %v696 = vunpack.c.h.b16 %v288
        %v697 = vunpack.c.l.b16 %v289
        %v698 = vunpack.c.h.b16 %v289
        %v699 = vunpack.c.l.b16 %v290
        %v700 = vunpack.c.h.b16 %v290
        %v701 = vunpack.c.l.b16 %v291
        %v702 = vunpack.c.h.b16 %v291
        %v703 = vunpack.c.l.b16 %v292
        %v704 = vunpack.c.h.b16 %v292
        %v705 = vunpack.c.l.b16 %v293
        %v706 = vunpack.c.h.b16 %v293
        %v707 = vunpack.c.l.b16 %v294
        %v708 = vunpack.c.h.b16 %v294
        %v709 = vunpack.c.l.b16 %v295
        %v710 = vunpack.c.h.b16 %v295
        %v711 = vunpack.c.l.b16 %v296
        %v712 = vunpack.c.h.b16 %v296
        %v713 = vunpack.c.l.b16 %v297
        %v714 = vunpack.c.h.b16 %v297
        %v715 = vunpack.c.l.b16 %v298
        %v716 = vunpack.c.h.b16 %v298
        %v717 = vunpack.c.l.b16 %v299
        %v718 = vunpack.c.h.b16 %v299
        %v719 = vunpack.c.l.b16 %v300
        %v720 = vunpack.c.h.b16 %v300
        %v721 = vunpack.c.l.b16 %v301
        %v722 = vunpack.c.h.b16 %v301
        %v723 = vunpack.c.l.b16 %v302
        %v724 = vunpack.c.h.b16 %v302
        %v725 = vunpack.c.l.b16 %v303
        %v726 = vunpack.c.h.b16 %v303
        %v727 = vunpack.c.l.b16 %v304
        %v728 = vunpack.c.h.b16 %v304
        %v729 = vunpack.c.l.b16 %v305
        %v730 = vunpack.c.h.b16 %v305
        %v731 = vunpack.c.l.b16 %v306
        %v732 = vunpack.c.h.b16 %v306
        %v733 = vpack.c.b16 %v481, %v477
        %v734 = vpack.c.b16 %v482, %v478
        %v735 = vpack.c.b16 %v483, %v479
        %v736 = vpack.c.b16 %v484, %v480
        %v737 = vpack.c.b16 %v489, %v485
        %v738 = vpack.c.b16 %v490, %v486
        %v739 = vpack.c.b16 %v491, %v487
        %v740 = vpack.c.b16 %v492, %v488
        %v741 = vpack.c.b16 %v497, %v493
        %v742 = vpack.c.b16 %v498, %v494
        %v743 = vpack.c.b16 %v499, %v495
        %v744 = vpack.c.b16 %v500, %v496
        %v745 = vpack.c.b16 %v505, %v501
        %v746 = vpack.c.b16 %v506, %v502
        %v747 = vpack.c.b16 %v507, %v503
        %v748 = vpack.c.b16 %v508, %v504
        %v749 = vpack.c.b16 %v513, %v509
        %v750 = vpack.c.b16 %v514, %v510
        %v751 = vpack.c.b16 %v515, %v511
        %v752 = vpack.c.b16 %v516, %v512
        %v753 = vpack.c.b16 %v521, %v517
        %v754 = vpack.c.b16 %v522, %v518
        %v755 = vpack.c.b16 %v523, %v519
        %v756 = vpack.c.b16 %v524, %v520
        %v757 = vpack.c.b16 %v529, %v525
        %v758 = vpack.c.b16 %v530, %v526
        %v759 = vpack.c.b16 %v531, %v527
        %v760 = vpack.c.b16 %v532, %v528
        %v761 = vpack.c.b16 %v537, %v533
        %v762 = vpack.c.b16 %v538, %v534
        %v763 = vpack.c.b16 %v539, %v535
        %v764 = vpack.c.b16 %v540, %v536
        %v765 = vpack.c.b16 %v545, %v541
        %v766 = vpack.c.b16 %v546, %v542
        %v767 = vpack.c.b16 %v547, %v543
        %v768 = vpack.c.b16 %v548, %v544
        %v769 = vpack.c.b16 %v553, %v549
        %v770 = vpack.c.b16 %v554, %v550
        %v771 = vpack.c.b16 %v555, %v551
        %v772 = vpack.c.b16 %v556, %v552
        %v773 = vpack.c.b16 %v561, %v557
        %v774 = vpack.c.b16 %v562, %v558
        %v775 = vpack.c.b16 %v563, %v559
        %v776 = vpack.c.b16 %v564, %v560
        %v777 = vpack.c.b16 %v569, %v565
        %v778 = vpack.c.b16 %v570, %v566
        %v779 = vpack.c.b16 %v571, %v567
        %v780 = vpack.c.b16 %v572, %v568
        %v781 = vpack.c.b16 %v577, %v573
        %v782 = vpack.c.b16 %v578, %v574
        %v783 = vpack.c.b16 %v579, %v575
        %v784 = vpack.c.b16 %v580, %v576
        %v785 = vpack.c.b16 %v585, %v581
        %v786 = vpack.c.b16 %v586, %v582
        %v787 = vpack.c.b16 %v587, %v583
        %v788 = vpack.c.b16 %v588, %v584
        %v789 = vpack.c.b16 %v593, %v589
        %v790 = vpack.c.b16 %v594, %v590
        %v791 = vpack.c.b16 %v595, %v591
        %v792 = vpack.c.b16 %v596, %v592
        %v793 = vpack.c.b16 %v601, %v597
        %v794 = vpack.c.b16 %v602, %v598
        %v795 = vpack.c.b16 %v603, %v599
        %v796 = vpack.c.b16 %v604, %v600
        %v797 = vpack.c.b16 %v609, %v605
        %v798 = vpack.c.b16 %v610, %v606
        %v799 = vpack.c.b16 %v611, %v607
        %v800 = vpack.c.b16 %v612, %v608
        %v801 = vpack.c.b16 %v617, %v613
        %v802 = vpack.c.b16 %v618, %v614
        %v803 = vpack.c.b16 %v619, %v615
        %v804 = vpack.c.b16 %v620, %v616
        %v805 = vpack.c.b16 %v625, %v621
        %v806 = vpack.c.b16 %v626, %v622
        %v807 = vpack.c.b16 %v627, %v623
        %v808 = vpack.c.b16 %v628, %v624
        %v809 = vpack.c.b16 %v633, %v629
        %v810 = vpack.c.b16 %v634, %v630
        %v811 = vpack.c.b16 %v635, %v631
        %v812 = vpack.c.b16 %v636, %v632
        %v813 = vpack.c.b16 %v641, %v637
        %v814 = vpack.c.b16 %v642, %v638
        %v815 = vpack.c.b16 %v643, %v639
        %v816 = vpack.c.b16 %v644, %v640
        %v817 = vpack.c.b16 %v649, %v645
        %v818 = vpack.c.b16 %v650, %v646
        %v819 = vpack.c.b16 %v651, %v647
        %v820 = vpack.c.b16 %v652, %v648
        %v821 = vpack.c.b16 %v657, %v653
        %v822 = vpack.c.b16 %v658, %v654
        %v823 = vpack.c.b16 %v659, %v655
        %v824 = vpack.c.b16 %v660, %v656
        %v825 = vpack.c.b16 %v665, %v661
        %v826 = vpack.c.b16 %v666, %v662
        %v827 = vpack.c.b16 %v667, %v663
        %v828 = vpack.c.b16 %v668, %v664
        %v829 = vpack.c.b16 %v673, %v669
        %v830 = vpack.c.b16 %v674, %v670
        %v831 = vpack.c.b16 %v675, %v671
        %v832 = vpack.c.b16 %v676, %v672
        %v833 = vpack.c.b16 %v681, %v677
        %v834 = vpack.c.b16 %v682, %v678
        %v835 = vpack.c.b16 %v683, %v679
        %v836 = vpack.c.b16 %v684, %v680
        %v837 = vpack.c.b16 %v689, %v685
        %v838 = vpack.c.b16 %v690, %v686
        %v839 = vpack.c.b16 %v691, %v687
        %v840 = vpack.c.b16 %v692, %v688
        %v841 = vpack.c.b16 %v697, %v693
        %v842 = vpack.c.b16 %v698, %v694
        %v843 = vpack.c.b16 %v699, %v695
        %v844 = vpack.c.b16 %v700, %v696
        %v845 = vpack.c.b16 %v705, %v701
        %v846 = vpack.c.b16 %v706, %v702
        %v847 = vpack.c.b16 %v707, %v703
        %v848 = vpack.c.b16 %v708, %v704
        %v849 = vpack.c.b16 %v713, %v709
        %v850 = vpack.c.b16 %v714, %v710
        %v851 = vpack.c.b16 %v715, %v711
        %v852 = vpack.c.b16 %v716, %v712
        %v853 = vpack.c.b16 %v721, %v717
        %v854 = vpack.c.b16 %v722, %v718
        %v855 = vpack.c.b16 %v723, %v719
        %v856 = vpack.c.b16 %v724, %v720
        %v857 = vpack.c.b16 %v729, %v725
        %v858 = vpack.c.b16 %v730, %v726
        %v859 = vpack.c.b16 %v731, %v727
        %v860 = vpack.c.b16 %v732, %v728
        %989 = vmatprep.subr.bf16.mxu0 %v762
        %990 = vmatpush1.bf16.msra.mxu0 %v761
        %991 = vmatprep.subr.bf16.mxu0 %v758
        %992 = vmatpush1.bf16.msra.mxu0 %v757
        %993 = vmatprep.subr.bf16.mxu0 %v754
        %994 = vmatpush1.bf16.msra.mxu0 %v753
        %995 = vmatprep.subr.bf16.mxu0 %v750
        %996 = vmatpush1.bf16.msra.mxu0 %v749
        %997 = vmatprep.subr.bf16.mxu0 %v746
        %998 = vmatpush1.bf16.msra.mxu0 %v745
        %999 = vmatprep.subr.bf16.mxu0 %v742
        %1000 = vmatpush1.bf16.msra.mxu0 %v741
        %1001 = vmatprep.subr.bf16.mxu0 %v738
        %1002 = vmatpush1.bf16.msra.mxu0 %v737
        %1003 = vmatprep.subr.bf16.mxu0 %v734
        %1004 = vmatpush1.bf16.msra.mxu0 %v733
        %1005 = vmatprep.subr.bf16.mxu0 %v794
        %1006 = vmatpush2.bf16.msra.mxu0 %v793
        %1007 = vmatprep.subr.bf16.mxu0 %v790
        %1008 = vmatpush2.bf16.msra.mxu0 %v789
        %1009 = vmatprep.subr.bf16.mxu0 %v786
        %1010 = vmatpush2.bf16.msra.mxu0 %v785
        %1011 = vmatprep.subr.bf16.mxu0 %v782
        %1012 = vmatpush2.bf16.msra.mxu0 %v781
        %1013 = vmatprep.subr.bf16.mxu0 %v778
        %1014 = vmatpush2.bf16.msra.mxu0 %v777
        %1015 = vmatprep.subr.bf16.mxu0 %v774
        %1016 = vmatpush2.bf16.msra.mxu0 %v773
        %1017 = vmatprep.subr.bf16.mxu0 %v770
        %1018 = vmatpush2.bf16.msra.mxu0 %v769
        %1019 = vmatprep.subr.bf16.mxu0 %v766
        %1020 = vmatpush2.bf16.msra.mxu0 %v765
        %1021 = vmatprep.mubr.bf16.mxu0 %v342
        %1022 = vmatmul.mubr.bf16.gmra.mxu0 %v341
        %v1023 = vpop.f32.mrf.mxu0
        %v1024 = vadd.f32 %v312, %v1023
        %v1025 = vpop.f32.mrf.mxu0
        %v1026 = vadd.f32 %v316, %v1025
        %v1027 = vpop.f32.mrf.mxu0
        %v1028 = vadd.f32 %v312, %v1027
        %v1029 = vpop.f32.mrf.mxu0
        %v1030 = vadd.f32 %v316, %v1029
        %1031 = vdwg.mxu0
        %1032 = vmatprep.subr.bf16.mxu0 %v826
        %1033 = vmatpush1.bf16.msra.mxu0 %v825
        %1034 = vmatprep.subr.bf16.mxu0 %v822
        %1035 = vmatpush1.bf16.msra.mxu0 %v821
        %1036 = vmatprep.subr.bf16.mxu0 %v818
        %1037 = vmatpush1.bf16.msra.mxu0 %v817
        %1038 = vmatprep.subr.bf16.mxu0 %v814
        %1039 = vmatpush1.bf16.msra.mxu0 %v813
        %1040 = vmatprep.subr.bf16.mxu0 %v810
        %1041 = vmatpush1.bf16.msra.mxu0 %v809
        %1042 = vmatprep.subr.bf16.mxu0 %v806
        %1043 = vmatpush1.bf16.msra.mxu0 %v805
        %1044 = vmatprep.subr.bf16.mxu0 %v802
        %1045 = vmatpush1.bf16.msra.mxu0 %v801
        %1046 = vmatprep.subr.bf16.mxu0 %v798
        %1047 = vmatpush1.bf16.msra.mxu0 %v797
        %1048 = vmatprep.subr.bf16.mxu0 %v858
        %1049 = vmatpush2.bf16.msra.mxu0 %v857
        %1050 = vmatprep.subr.bf16.mxu0 %v854
        %1051 = vmatpush2.bf16.msra.mxu0 %v853
        %1052 = vmatprep.subr.bf16.mxu0 %v850
        %1053 = vmatpush2.bf16.msra.mxu0 %v849
        %1054 = vmatprep.subr.bf16.mxu0 %v846
        %1055 = vmatpush2.bf16.msra.mxu0 %v845
        %1056 = vmatprep.subr.bf16.mxu0 %v842
        %1057 = vmatpush2.bf16.msra.mxu0 %v841
        %1058 = vmatprep.subr.bf16.mxu0 %v838
        %1059 = vmatpush2.bf16.msra.mxu0 %v837
        %1060 = vmatprep.subr.bf16.mxu0 %v834
        %1061 = vmatpush2.bf16.msra.mxu0 %v833
        %1062 = vmatprep.subr.bf16.mxu0 %v830
        %1063 = vmatpush2.bf16.msra.mxu0 %v829
        %1064 = vmatprep.mubr.bf16.mxu0 %v344
        %1065 = vmatmul.mubr.bf16.gmra.mxu0 %v343
        %v1066 = vpop.f32.mrf.mxu0
        %v1067 = vadd.f32 %v1024, %v1066
        %v1068 = vpop.f32.mrf.mxu0
        %v1069 = vadd.f32 %v1026, %v1068
        %v1070 = vpop.f32.mrf.mxu0
        %v1071 = vadd.f32 %v1028, %v1070
        %v1072 = vpop.f32.mrf.mxu0
        %v1073 = vadd.f32 %v1030, %v1072
        %1074 = vdwg.mxu0
        %1075 = vmatprep.subr.bf16.mxu0 %v764
        %1076 = vmatpush1.bf16.msra.mxu0 %v763
        %1077 = vmatprep.subr.bf16.mxu0 %v760
        %1078 = vmatpush1.bf16.msra.mxu0 %v759
        %1079 = vmatprep.subr.bf16.mxu0 %v756
        %1080 = vmatpush1.bf16.msra.mxu0 %v755
        %1081 = vmatprep.subr.bf16.mxu0 %v752
        %1082 = vmatpush1.bf16.msra.mxu0 %v751
        %1083 = vmatprep.subr.bf16.mxu0 %v748
        %1084 = vmatpush1.bf16.msra.mxu0 %v747
        %1085 = vmatprep.subr.bf16.mxu0 %v744
        %1086 = vmatpush1.bf16.msra.mxu0 %v743
        %1087 = vmatprep.subr.bf16.mxu0 %v740
        %1088 = vmatpush1.bf16.msra.mxu0 %v739
        %1089 = vmatprep.subr.bf16.mxu0 %v736
        %1090 = vmatpush1.bf16.msra.mxu0 %v735
        %1091 = vmatprep.subr.bf16.mxu0 %v796
        %1092 = vmatpush2.bf16.msra.mxu0 %v795
        %1093 = vmatprep.subr.bf16.mxu0 %v792
        %1094 = vmatpush2.bf16.msra.mxu0 %v791
        %1095 = vmatprep.subr.bf16.mxu0 %v788
        %1096 = vmatpush2.bf16.msra.mxu0 %v787
        %1097 = vmatprep.subr.bf16.mxu0 %v784
        %1098 = vmatpush2.bf16.msra.mxu0 %v783
        %1099 = vmatprep.subr.bf16.mxu0 %v780
        %1100 = vmatpush2.bf16.msra.mxu0 %v779
        %1101 = vmatprep.subr.bf16.mxu0 %v776
        %1102 = vmatpush2.bf16.msra.mxu0 %v775
        %1103 = vmatprep.subr.bf16.mxu0 %v772
        %1104 = vmatpush2.bf16.msra.mxu0 %v771
        %1105 = vmatprep.subr.bf16.mxu0 %v768
        %1106 = vmatpush2.bf16.msra.mxu0 %v767
        %1107 = vmatprep.mubr.bf16.mxu0 %v342
        %1108 = vmatmul.mubr.bf16.gmra.mxu0 %v341
        %v1109 = vpop.f32.mrf.mxu0
        %v1110 = vadd.f32 %v320, %v1109
        %v1111 = vpop.f32.mrf.mxu0
        %v1112 = vadd.f32 %v324, %v1111
        %v1113 = vpop.f32.mrf.mxu0
        %v1114 = vadd.f32 %v320, %v1113
        %v1115 = vpop.f32.mrf.mxu0
        %v1116 = vadd.f32 %v324, %v1115
        %1117 = vdwg.mxu0
        %1118 = vmatprep.subr.bf16.mxu0 %v828
        %1119 = vmatpush1.bf16.msra.mxu0 %v827
        %1120 = vmatprep.subr.bf16.mxu0 %v824
        %1121 = vmatpush1.bf16.msra.mxu0 %v823
        %1122 = vmatprep.subr.bf16.mxu0 %v820
        %1123 = vmatpush1.bf16.msra.mxu0 %v819
        %1124 = vmatprep.subr.bf16.mxu0 %v816
        %1125 = vmatpush1.bf16.msra.mxu0 %v815
        %1126 = vmatprep.subr.bf16.mxu0 %v812
        %1127 = vmatpush1.bf16.msra.mxu0 %v811
        %1128 = vmatprep.subr.bf16.mxu0 %v808
        %1129 = vmatpush1.bf16.msra.mxu0 %v807
        %1130 = vmatprep.subr.bf16.mxu0 %v804
        %1131 = vmatpush1.bf16.msra.mxu0 %v803
        %1132 = vmatprep.subr.bf16.mxu0 %v800
        %1133 = vmatpush1.bf16.msra.mxu0 %v799
        %1134 = vmatprep.subr.bf16.mxu0 %v860
        %1135 = vmatpush2.bf16.msra.mxu0 %v859
        %1136 = vmatprep.subr.bf16.mxu0 %v856
        %1137 = vmatpush2.bf16.msra.mxu0 %v855
        %1138 = vmatprep.subr.bf16.mxu0 %v852
        %1139 = vmatpush2.bf16.msra.mxu0 %v851
        %1140 = vmatprep.subr.bf16.mxu0 %v848
        %1141 = vmatpush2.bf16.msra.mxu0 %v847
        %1142 = vmatprep.subr.bf16.mxu0 %v844
        %1143 = vmatpush2.bf16.msra.mxu0 %v843
        %1144 = vmatprep.subr.bf16.mxu0 %v840
        %1145 = vmatpush2.bf16.msra.mxu0 %v839
        %1146 = vmatprep.subr.bf16.mxu0 %v836
        %1147 = vmatpush2.bf16.msra.mxu0 %v835
        %1148 = vmatprep.subr.bf16.mxu0 %v832
        %1149 = vmatpush2.bf16.msra.mxu0 %v831
        %1150 = vmatprep.mubr.bf16.mxu0 %v344
        %1151 = vmatmul.mubr.bf16.gmra.mxu0 %v343
        %v1152 = vpop.f32.mrf.mxu0
        %v1153 = vadd.f32 %v1110, %v1152
        %v1154 = vpop.f32.mrf.mxu0
        %v1155 = vadd.f32 %v1112, %v1154
        %v1156 = vpop.f32.mrf.mxu0
        %v1157 = vadd.f32 %v1114, %v1156
        %v1158 = vpop.f32.mrf.mxu0
        %v1159 = vadd.f32 %v1116, %v1158
        %1160 = vdwg.mxu0
        %1161 = vst [vmem:[%s166] sm:$0xff] %v1067
        %1162 = vst [vmem:[%s166 + $0x8] sm:$0xff] %v1069
        %1163 = vst [vmem:[%s166 + $0x10] sm:$0xff] %v1153
        %1164 = vst [vmem:[%s166 + $0x18] sm:$0xff] %v1155
        %1165 = vst [vmem:[%s166 + $0x20] sm:$0xff] %v1071
        %1166 = vst [vmem:[%s166 + $0x28] sm:$0xff] %v1073
        %1167 = vst [vmem:[%s166 + $0x30] sm:$0xff] %v1157
        %1168 = vst [vmem:[%s166 + $0x38] sm:$0xff] %v1159
        %s1169 = sand.u32 %s93, 1
        %s1170 = scalar_lea.sflag [#allocation3], %s1169
        %s1171 = sand.u32 %s93, 1
        %s1172 = smul.addr %s1171, 64
        %s1173 = scalar_lea.vmem [#allocation2], %s1172
        // Predicated region
        $region33: #{_mha_self_forward.5} parent=31 // pred_check
          %p1174 = pneg %p103
        $region34: #{_mha_self_forward.5} parent=31 // pred_check_branch
          %1176 = sbr.rel (%p1174) target = $region36
        $region35: #{_mha_self_forward.5} parent=31 // pred_region
          %s1177 = smul.u32 2, %s17
          %s1179 = ssub.s32 1024, 1024
          %1180 = vsyncadd %s1170, %s1179
          %s1181 = smul.addr %s1177, 4
          %s1182 = smul.addr %s1181, 128
          %s1183 = scalar_lea.hbm %s3, %s1182
          %s1184 = sshll.u32 %s1173, 4
          %s1185 = int_to_ptr.vmem [resolvable:$true] %s1184
          %1190 = dma.vmem_to_hbm [thread:$0]  %s1185, 1024, %s1183, %s1170, 512, 512, 32
        $region36: #{_mha_self_forward.5} parent=31 // pred_fallthru
          _
      $region32: #{_mha_self_forward.5} parent=5 // pred_fallthru
        _
      %p1191 = scmp.le.s32.totalorder 2, %s12
      // Predicated region
      $region37: #{_mha_self_forward.5} parent=5 // pred_check
        %p1192 = pneg %p1191
      $region38: #{_mha_self_forward.5} parent=5 // pred_check_branch
        %1194 = sbr.rel (%p1192) target = $region40
      $region39: #{_mha_self_forward.5} parent=5 // pred_region
        %s1195 = ssub.s32 %s12, 2
        // Predicated region
        $region41: #{_mha_self_forward.5} parent=39 // pred_check
          %p1196 = pneg %p109
        $region42: #{_mha_self_forward.5} parent=39 // pred_check_branch
          %1198 = sbr.rel (%p1196) target = $region44
        $region43: #{_mha_self_forward.5} parent=39 // pred_region
          %s1199 = sand.u32 %s94, 1
          %s1200 = scalar_lea.sflag [#allocation3], %s1199
          %s1201 = sand.u32 %s94, 1
          %s1202 = smul.addr %s1201, 64
          %s1203 = scalar_lea.vmem [#allocation2], %s1202
          %1204 = dma.done %s1200, 1024
        $region44: #{_mha_self_forward.5} parent=39 // pred_fallthru
          _
      $region40: #{_mha_self_forward.5} parent=5 // pred_fallthru
        _
    $region6: #{_mha_self_forward.5} parent=1 // loop_footer
      %s16 = sadd.s32 1, %s12
    $region7: #{_mha_self_forward.5} parent=1 // loop_footer_branch
      %11 = sbr.rel target = $region3
    $region8: #{_mha_self_forward.5} parent=1 // loop_exit
      _
    %1205 = vsyncpa [#allocation3], 1
    %s1206 = scalar_lea.sflag [#allocation3], 1
    %1207 = vsyncpa %s1206, 1

// kernel: _mha_self_forward.3
$region0: #{_mha_self_forward.3}
  #allocation0 [shape = 'u32[]', space=smem, size = 0x4, offset = 0x4, fixed_abs, tag = 'smem constant byte address 0x4 - core index']
  #allocation1 [shape = 'u32[144,128]{1,0:T(1,128)}', space=vmem, size = 0x12000, scoped, tag = 'internal scratch']
  %s0 = inlined_call_operand.vmem [shape: f32[32,512], index: 0, kind: input, shape index: {}]
  %s1 = inlined_call_operand.vmem [shape: bf16[512,1536], index: 1, kind: input, shape index: {}]
  %s2 = inlined_call_operand.vmem [shape: f32[1,1536], index: 2, kind: input, shape index: {}]
  %s3 = inlined_call_operand.vmem [shape: bf16[32,1536], index: 3, kind: output, shape index: {}]
  %s4 = sld [smem:[#allocation0]]
  $region45: #{_mha_self_forward.3} parent=0
    _
  %s6 = ssub.s32 1, %s4
  %s7 = scalar_select 0, %s6, %s4
  loop: start=0, step=1, limit=4
  $region2: #{_mha_self_forward.3} parent=0 // loop_pre_header
    _
  $region3: #{_mha_self_forward.3} parent=0 // loop_header
    %s9 = sphi 0, %s13
    %p10 = scmp.ge.s32.totalorder %s9, 4
    %s19 = sphi 0, %s21
    %s22 = sphi 0, %s19
    %s23 = sphi 0, %s22
    %s39 = sphi 0, %s23
    %s43 = sphi 0, %s43
    %s45 = sphi 0, %s43
    %s46 = sphi 0, %s45
    %s60 = sphi 0, %s46
    %s64 = sphi 0, %s64
    %s66 = sphi 0, %s64
    %s67 = sphi 0, %s66
    %s81 = sphi 0, %s67
    %s87 = sphi 0, %s89
    %s90 = sphi 0, %s87
    %s91 = sphi 0, %s90
    %s107 = sphi 0, %s91
  $region4: #{_mha_self_forward.3} parent=0 // loop_header_branch
    %12 = sbr.rel (%p10) target = $region8
  $region5: #{_mha_self_forward.3} parent=0 // loop_body
    %s14 = ssub.s32 %s9, 1
    %s15 = ssub.s32 %s9, 2
    %s16 = sadd.s32 %s9, 1
    %s17 = ssub.s32 %s9, %s16
    %p18 = scmp.eq.s32.totalorder %s17, 0
    %s20 = sadd.s32 %s19, 1
    %s21 = scalar_select %p18, %s19, %s20
    %p24 = pneg %p18
    %p25 = scmp.eq.s32.totalorder %s9, 1
    %p26 = por %p24, %p25
    %p27 = scmp.ne.s32.totalorder %s19, %s22
    %p28 = scmp.eq.s32.totalorder %s9, 0
    %p29 = por %p27, %p28
    %p30 = scmp.ne.s32.totalorder %s19, %s22
    %p31 = scmp.eq.s32.totalorder %s14, 1
    %p32 = por %p30, %p31
    %p33 = scmp.ne.s32.totalorder %s22, %s23
    %p34 = scmp.eq.s32.totalorder %s14, 0
    %p35 = por %p33, %p34
    %p36 = scmp.ne.s32.totalorder %s22, %s23
    %p37 = scmp.eq.s32.totalorder %s15, 1
    %p38 = por %p36, %p37
    %p40 = scmp.ne.s32.totalorder %s23, %s39
    %p41 = scmp.eq.s32.totalorder %s15, 0
    %p42 = por %p40, %p41
    %s44 = sadd.s32 %s43, 1
    %p47 = scmp.eq.s32.totalorder %s9, 1
    %p48 = scmp.ne.s32.totalorder %s43, %s45
    %p49 = scmp.eq.s32.totalorder %s9, 0
    %p50 = por %p48, %p49
    %p51 = scmp.ne.s32.totalorder %s43, %s45
    %p52 = scmp.eq.s32.totalorder %s14, 1
    %p53 = por %p51, %p52
    %p54 = scmp.ne.s32.totalorder %s45, %s46
    %p55 = scmp.eq.s32.totalorder %s14, 0
    %p56 = por %p54, %p55
    %p57 = scmp.ne.s32.totalorder %s45, %s46
    %p58 = scmp.eq.s32.totalorder %s15, 1
    %p59 = por %p57, %p58
    %p61 = scmp.ne.s32.totalorder %s46, %s60
    %p62 = scmp.eq.s32.totalorder %s15, 0
    %p63 = por %p61, %p62
    %s65 = sadd.s32 %s64, 1
    %p68 = scmp.eq.s32.totalorder %s9, 1
    %p69 = scmp.ne.s32.totalorder %s64, %s66
    %p70 = scmp.eq.s32.totalorder %s9, 0
    %p71 = por %p69, %p70
    %p72 = scmp.ne.s32.totalorder %s64, %s66
    %p73 = scmp.eq.s32.totalorder %s14, 1
    %p74 = por %p72, %p73
    %p75 = scmp.ne.s32.totalorder %s66, %s67
    %p76 = scmp.eq.s32.totalorder %s14, 0
    %p77 = por %p75, %p76
    %p78 = scmp.ne.s32.totalorder %s66, %s67
    %p79 = scmp.eq.s32.totalorder %s15, 1
    %p80 = por %p78, %p79
    %p82 = scmp.ne.s32.totalorder %s67, %s81
    %p83 = scmp.eq.s32.totalorder %s15, 0
    %p84 = por %p82, %p83
    %s85 = ssub.s32 %s9, %s16
    %p86 = scmp.eq.s32.totalorder %s85, 0
    %s88 = sadd.s32 %s87, 1
    %s89 = scalar_select %p86, %s87, %s88
    %p92 = pneg %p86
    %p93 = scmp.eq.s32.totalorder %s9, 1
    %p94 = por %p92, %p93
    %p95 = scmp.ne.s32.totalorder %s87, %s90
    %p96 = scmp.eq.s32.totalorder %s9, 0
    %p97 = por %p95, %p96
    %p98 = scmp.ne.s32.totalorder %s87, %s90
    %p99 = scmp.eq.s32.totalorder %s14, 1
    %p100 = por %p98, %p99
    %p101 = scmp.ne.s32.totalorder %s90, %s91
    %p102 = scmp.eq.s32.totalorder %s14, 0
    %p103 = por %p101, %p102
    %p104 = scmp.ne.s32.totalorder %s90, %s91
    %p105 = scmp.eq.s32.totalorder %s15, 1
    %p106 = por %p104, %p105
    %p108 = scmp.ne.s32.totalorder %s91, %s107
    %p109 = scmp.eq.s32.totalorder %s15, 0
    %p110 = por %p108, %p109
    %p111 = scmp.le.s32.totalorder 1, %s9
    %p112 = scmp.lt.s32.totalorder %s9, 3
    %p113 = pnand %p111, %p112
    %p114 = pneg %p113
    // Predicated region
    $region9: #{_mha_self_forward.3} parent=5 // pred_check
      _
    $region10: #{_mha_self_forward.3} parent=5 // pred_check_branch
      %116 = sbr.rel (%p113) target = $region12
    $region11: #{_mha_self_forward.3} parent=5 // pred_region
      %s117 = ssub.s32 %s9, 1
      // Predicated region
      $region13: #{_mha_self_forward.3} parent=11 // pred_check
        %p118 = pneg %p56
      $region14: #{_mha_self_forward.3} parent=11 // pred_check_branch
        %120 = sbr.rel (%p118) target = $region16
      $region15: #{_mha_self_forward.3} parent=11 // pred_region
        _
      $region16: #{_mha_self_forward.3} parent=11 // pred_fallthru
        _
      // Predicated region
      $region17: #{_mha_self_forward.3} parent=11 // pred_check
        %p121 = pneg %p77
      $region18: #{_mha_self_forward.3} parent=11 // pred_check_branch
        %123 = sbr.rel (%p121) target = $region20
      $region19: #{_mha_self_forward.3} parent=11 // pred_region
        _
      $region20: #{_mha_self_forward.3} parent=11 // pred_fallthru
        _
    $region12: #{_mha_self_forward.3} parent=5 // pred_fallthru
      _
    %p124 = scmp.lt.s32.totalorder %s9, 2
    // Predicated region
    $region21: #{_mha_self_forward.3} parent=5 // pred_check
      %p125 = pneg %p124
    $region22: #{_mha_self_forward.3} parent=5 // pred_check_branch
      %127 = sbr.rel (%p125) target = $region24
    $region23: #{_mha_self_forward.3} parent=5 // pred_region
      // Predicated region
      $region25: #{_mha_self_forward.3} parent=23 // pred_check
        %p128 = pneg %p29
      $region26: #{_mha_self_forward.3} parent=23 // pred_check_branch
        %130 = sbr.rel (%p128) target = $region28
      $region27: #{_mha_self_forward.3} parent=23 // pred_region
        %s131 = smul.u32 2, %s9
        %p132 = scmp.lt.s32.totalorder %s131, 3
        %s133 = scalar_select %p132, %s131, 3
        %s134 = smul.addr %s133, 4
        %s135 = smul.addr %s134, 8
        %s136 = scalar_lea.vmem %s0, %s135
        %s137 = smul.u32 2, %s9
      $region28: #{_mha_self_forward.3} parent=23 // pred_fallthru
        _
    $region24: #{_mha_self_forward.3} parent=5 // pred_fallthru
      _
    %p138 = scmp.le.s32.totalorder 1, %s9
    %p139 = scmp.lt.s32.totalorder %s9, 3
    %p140 = pnand %p138, %p139
    %p141 = pneg %p140
    // Predicated region
    $region29: #{_mha_self_forward.3} parent=5 // pred_check
      _
    $region30: #{_mha_self_forward.3} parent=5 // pred_check_branch
      %143 = sbr.rel (%p140) target = $region32
    $region31: #{_mha_self_forward.3} parent=5 // pred_region
      %s144 = ssub.s32 %s9, 1
      %s145 = smul.u32 2, %s14
      %p146 = scmp.lt.s32.totalorder %s145, 3
      %s147 = scalar_select %p146, %s145, 3
      %s148 = smul.addr %s147, 4
      %s149 = smul.addr %s148, 8
      %s150 = scalar_lea.vmem %s0, %s149
      %p151 = pneg %p35
      %p152 = pneg %p32
      %p153 = pneg %p56
      %p154 = pneg %p53
      %p155 = pneg %p77
      %p156 = pneg %p74
      %p157 = pneg %p103
      %p158 = pneg %p100
      %s159 = smul.u32 2, %s14
      %p160 = scmp.lt.s32.totalorder %s159, 3
      %s161 = scalar_select %p160, %s159, 3
      %s162 = smul.addr %s161, 12
      %s163 = smul.addr %s162, 4
      %s164 = scalar_lea.vmem %s3, %s163
      %s165 = smul.u32 2, %s14
      %p166 = scmp.lt.s32.totalorder %s165, 3
      %s167 = scalar_select %p166, %s165, 3
      %s168 = smul.addr %s167, 4
      %s169 = smul.addr %s168, 8
      %s170 = scalar_lea.vmem %s0, %s169
      %s171 = smul.u32 2, %s14
      %s172 = smul.u32 2, %s14
      %p173 = scmp.lt.s32.totalorder %s172, 3
      %s174 = scalar_select %p173, %s172, 3
      %s175 = smul.addr %s174, 12
      %s176 = smul.addr %s175, 4
      %s177 = scalar_lea.vmem %s3, %s176
      %s178 = smul.u32 2, %s14
      %v179 = vld [vmem:[%s170] sm:$0xff]
      %v180 = vld [vmem:[%s170 + $0x8] sm:$0xff]
      %v181 = vld [vmem:[%s170 + $0x10] sm:$0xff]
      %v182 = vld [vmem:[%s170 + $0x18] sm:$0xff]
      %v183 = vld [vmem:[%s170 + $0x20] sm:$0xff]
      %v184 = vld [vmem:[%s170 + $0x28] sm:$0xff]
      %v185 = vld [vmem:[%s170 + $0x30] sm:$0xff]
      %v186 = vld [vmem:[%s170 + $0x38] sm:$0xff]
      %v187 = vpack.c.bf16 %v183, %v179
      %v188 = vpack.c.bf16 %v184, %v180
      %v189 = vpack.c.bf16 %v185, %v181
      %v190 = vpack.c.bf16 %v186, %v182
      %v191 = vld [vmem:[%s1] sm:$0xff]
      %v192 = vld [vmem:[%s1 + $0x8] sm:$0xff]
      %v193 = vld [vmem:[%s1 + $0x10] sm:$0xff]
      %v194 = vld [vmem:[%s1 + $0x18] sm:$0xff]
      %v195 = vld [vmem:[%s1 + $0x20] sm:$0xff]
      %v196 = vld [vmem:[%s1 + $0x28] sm:$0xff]
      %v197 = vld [vmem:[%s1 + $0x30] sm:$0xff]
      %v198 = vld [vmem:[%s1 + $0x38] sm:$0xff]
      %v199 = vld [vmem:[%s1 + $0x40] sm:$0xff]
      %v200 = vld [vmem:[%s1 + $0x48] sm:$0xff]
      %v201 = vld [vmem:[%s1 + $0x50] sm:$0xff]
      %v202 = vld [vmem:[%s1 + $0x58] sm:$0xff]
      %v203 = vld [vmem:[%s1 + $0x60] sm:$0xff]
      %v204 = vld [vmem:[%s1 + $0x68] sm:$0xff]
      %v205 = vld [vmem:[%s1 + $0x70] sm:$0xff]
      %v206 = vld [vmem:[%s1 + $0x78] sm:$0xff]
      %v207 = vld [vmem:[%s1 + $0x80] sm:$0xff]
      %v208 = vld [vmem:[%s1 + $0x88] sm:$0xff]
      %v209 = vld [vmem:[%s1 + $0x90] sm:$0xff]
      %v210 = vld [vmem:[%s1 + $0x98] sm:$0xff]
      %v211 = vld [vmem:[%s1 + $0xa0] sm:$0xff]
      %v212 = vld [vmem:[%s1 + $0xa8] sm:$0xff]
      %v213 = vld [vmem:[%s1 + $0xb0] sm:$0xff]
      %v214 = vld [vmem:[%s1 + $0xb8] sm:$0xff]
      %v215 = vld [vmem:[%s1 + $0xc0] sm:$0xff]
      %v216 = vld [vmem:[%s1 + $0xc8] sm:$0xff]
      %v217 = vld [vmem:[%s1 + $0xd0] sm:$0xff]
      %v218 = vld [vmem:[%s1 + $0xd8] sm:$0xff]
      %v219 = vld [vmem:[%s1 + $0xe0] sm:$0xff]
      %v220 = vld [vmem:[%s1 + $0xe8] sm:$0xff]
      %v221 = vld [vmem:[%s1 + $0xf0] sm:$0xff]
      %v222 = vld [vmem:[%s1 + $0xf8] sm:$0xff]
      %v223 = vld [vmem:[%s1 + $0x100] sm:$0xff]
      %v224 = vld [vmem:[%s1 + $0x108] sm:$0xff]
      %v225 = vld [vmem:[%s1 + $0x110] sm:$0xff]
      %v226 = vld [vmem:[%s1 + $0x118] sm:$0xff]
      %v227 = vld [vmem:[%s1 + $0x120] sm:$0xff]
      %v228 = vld [vmem:[%s1 + $0x128] sm:$0xff]
      %v229 = vld [vmem:[%s1 + $0x130] sm:$0xff]
      %v230 = vld [vmem:[%s1 + $0x138] sm:$0xff]
      %v231 = vld [vmem:[%s1 + $0x140] sm:$0xff]
      %v232 = vld [vmem:[%s1 + $0x148] sm:$0xff]
      %v233 = vld [vmem:[%s1 + $0x150] sm:$0xff]
      %v234 = vld [vmem:[%s1 + $0x158] sm:$0xff]
      %v235 = vld [vmem:[%s1 + $0x160] sm:$0xff]
      %v236 = vld [vmem:[%s1 + $0x168] sm:$0xff]
      %v237 = vld [vmem:[%s1 + $0x170] sm:$0xff]
      %v238 = vld [vmem:[%s1 + $0x178] sm:$0xff]
      %v239 = vld [vmem:[%s1 + $0x180] sm:$0xff]
      %v240 = vld [vmem:[%s1 + $0x188] sm:$0xff]
      %v241 = vld [vmem:[%s1 + $0x190] sm:$0xff]
      %v242 = vld [vmem:[%s1 + $0x198] sm:$0xff]
      %v243 = vld [vmem:[%s1 + $0x1a0] sm:$0xff]
      %v244 = vld [vmem:[%s1 + $0x1a8] sm:$0xff]
      %v245 = vld [vmem:[%s1 + $0x1b0] sm:$0xff]
      %v246 = vld [vmem:[%s1 + $0x1b8] sm:$0xff]
      %v247 = vld [vmem:[%s1 + $0x1c0] sm:$0xff]
      %v248 = vld [vmem:[%s1 + $0x1c8] sm:$0xff]
      %v249 = vld [vmem:[%s1 + $0x1d0] sm:$0xff]
      %v250 = vld [vmem:[%s1 + $0x1d8] sm:$0xff]
      %v251 = vld [vmem:[%s1 + $0x1e0] sm:$0xff]
      %v252 = vld [vmem:[%s1 + $0x1e8] sm:$0xff]
      %v253 = vld [vmem:[%s1 + $0x1f0] sm:$0xff]
      %v254 = vld [vmem:[%s1 + $0x1f8] sm:$0xff]
      %v255 = vld [vmem:[%s1 + $0x200] sm:$0xff]
      %v256 = vld [vmem:[%s1 + $0x208] sm:$0xff]
      %v257 = vld [vmem:[%s1 + $0x210] sm:$0xff]
      %v258 = vld [vmem:[%s1 + $0x218] sm:$0xff]
      %v259 = vld [vmem:[%s1 + $0x220] sm:$0xff]
      %v260 = vld [vmem:[%s1 + $0x228] sm:$0xff]
      %v261 = vld [vmem:[%s1 + $0x230] sm:$0xff]
      %v262 = vld [vmem:[%s1 + $0x238] sm:$0xff]
      %v263 = vld [vmem:[%s1 + $0x240] sm:$0xff]
      %v264 = vld [vmem:[%s1 + $0x248] sm:$0xff]
      %v265 = vld [vmem:[%s1 + $0x250] sm:$0xff]
      %v266 = vld [vmem:[%s1 + $0x258] sm:$0xff]
      %v267 = vld [vmem:[%s1 + $0x260] sm:$0xff]
      %v268 = vld [vmem:[%s1 + $0x268] sm:$0xff]
      %v269 = vld [vmem:[%s1 + $0x270] sm:$0xff]
      %v270 = vld [vmem:[%s1 + $0x278] sm:$0xff]
      %v271 = vld [vmem:[%s1 + $0x280] sm:$0xff]
      %v272 = vld [vmem:[%s1 + $0x288] sm:$0xff]
      %v273 = vld [vmem:[%s1 + $0x290] sm:$0xff]
      %v274 = vld [vmem:[%s1 + $0x298] sm:$0xff]
      %v275 = vld [vmem:[%s1 + $0x2a0] sm:$0xff]
      %v276 = vld [vmem:[%s1 + $0x2a8] sm:$0xff]
      %v277 = vld [vmem:[%s1 + $0x2b0] sm:$0xff]
      %v278 = vld [vmem:[%s1 + $0x2b8] sm:$0xff]
      %v279 = vld [vmem:[%s1 + $0x2c0] sm:$0xff]
      %v280 = vld [vmem:[%s1 + $0x2c8] sm:$0xff]
      %v281 = vld [vmem:[%s1 + $0x2d0] sm:$0xff]
      %v282 = vld [vmem:[%s1 + $0x2d8] sm:$0xff]
      %v283 = vld [vmem:[%s1 + $0x2e0] sm:$0xff]
      %v284 = vld [vmem:[%s1 + $0x2e8] sm:$0xff]
      %v285 = vld [vmem:[%s1 + $0x2f0] sm:$0xff]
      %v286 = vld [vmem:[%s1 + $0x2f8] sm:$0xff]
      %v287 = vld [vmem:[%s1 + $0x300] sm:$0xff]
      %v288 = vld [vmem:[%s1 + $0x308] sm:$0xff]
      %v289 = vld [vmem:[%s1 + $0x310] sm:$0xff]
      %v290 = vld [vmem:[%s1 + $0x318] sm:$0xff]
      %v291 = vld [vmem:[%s1 + $0x320] sm:$0xff]
      %v292 = vld [vmem:[%s1 + $0x328] sm:$0xff]
      %v293 = vld [vmem:[%s1 + $0x330] sm:$0xff]
      %v294 = vld [vmem:[%s1 + $0x338] sm:$0xff]
      %v295 = vld [vmem:[%s1 + $0x340] sm:$0xff]
      %v296 = vld [vmem:[%s1 + $0x348] sm:$0xff]
      %v297 = vld [vmem:[%s1 + $0x350] sm:$0xff]
      %v298 = vld [vmem:[%s1 + $0x358] sm:$0xff]
      %v299 = vld [vmem:[%s1 + $0x360] sm:$0xff]
      %v300 = vld [vmem:[%s1 + $0x368] sm:$0xff]
      %v301 = vld [vmem:[%s1 + $0x370] sm:$0xff]
      %v302 = vld [vmem:[%s1 + $0x378] sm:$0xff]
      %v303 = vld [vmem:[%s1 + $0x380] sm:$0xff]
      %v304 = vld [vmem:[%s1 + $0x388] sm:$0xff]
      %v305 = vld [vmem:[%s1 + $0x390] sm:$0xff]
      %v306 = vld [vmem:[%s1 + $0x398] sm:$0xff]
      %v307 = vld [vmem:[%s1 + $0x3a0] sm:$0xff]
      %v308 = vld [vmem:[%s1 + $0x3a8] sm:$0xff]
      %v309 = vld [vmem:[%s1 + $0x3b0] sm:$0xff]
      %v310 = vld [vmem:[%s1 + $0x3b8] sm:$0xff]
      %v311 = vld [vmem:[%s1 + $0x3c0] sm:$0xff]
      %v312 = vld [vmem:[%s1 + $0x3c8] sm:$0xff]
      %v313 = vld [vmem:[%s1 + $0x3d0] sm:$0xff]
      %v314 = vld [vmem:[%s1 + $0x3d8] sm:$0xff]
      %v315 = vld [vmem:[%s1 + $0x3e0] sm:$0xff]
      %v316 = vld [vmem:[%s1 + $0x3e8] sm:$0xff]
      %v317 = vld [vmem:[%s1 + $0x3f0] sm:$0xff]
      %v318 = vld [vmem:[%s1 + $0x3f8] sm:$0xff]
      %v319 = vld [vmem:[%s1 + $0x400] sm:$0xff]
      %v320 = vld [vmem:[%s1 + $0x408] sm:$0xff]
      %v321 = vld [vmem:[%s1 + $0x410] sm:$0xff]
      %v322 = vld [vmem:[%s1 + $0x418] sm:$0xff]
      %v323 = vld [vmem:[%s1 + $0x420] sm:$0xff]
      %v324 = vld [vmem:[%s1 + $0x428] sm:$0xff]
      %v325 = vld [vmem:[%s1 + $0x430] sm:$0xff]
      %v326 = vld [vmem:[%s1 + $0x438] sm:$0xff]
      %v327 = vld [vmem:[%s1 + $0x440] sm:$0xff]
      %v328 = vld [vmem:[%s1 + $0x448] sm:$0xff]
      %v329 = vld [vmem:[%s1 + $0x450] sm:$0xff]
      %v330 = vld [vmem:[%s1 + $0x458] sm:$0xff]
      %v331 = vld [vmem:[%s1 + $0x460] sm:$0xff]
      %v332 = vld [vmem:[%s1 + $0x468] sm:$0xff]
      %v333 = vld [vmem:[%s1 + $0x470] sm:$0xff]
      %v334 = vld [vmem:[%s1 + $0x478] sm:$0xff]
      %v335 = vld [vmem:[%s1 + $0x480] sm:$0xff]
      %v336 = vld [vmem:[%s1 + $0x488] sm:$0xff]
      %v337 = vld [vmem:[%s1 + $0x490] sm:$0xff]
      %v338 = vld [vmem:[%s1 + $0x498] sm:$0xff]
      %v339 = vld [vmem:[%s1 + $0x4a0] sm:$0xff]
      %v340 = vld [vmem:[%s1 + $0x4a8] sm:$0xff]
      %v341 = vld [vmem:[%s1 + $0x4b0] sm:$0xff]
      %v342 = vld [vmem:[%s1 + $0x4b8] sm:$0xff]
      %v343 = vld [vmem:[%s1 + $0x4c0] sm:$0xff]
      %v344 = vld [vmem:[%s1 + $0x4c8] sm:$0xff]
      %v345 = vld [vmem:[%s1 + $0x4d0] sm:$0xff]
      %v346 = vld [vmem:[%s1 + $0x4d8] sm:$0xff]
      %v347 = vld [vmem:[%s1 + $0x4e0] sm:$0xff]
      %v348 = vld [vmem:[%s1 + $0x4e8] sm:$0xff]
      %v349 = vld [vmem:[%s1 + $0x4f0] sm:$0xff]
      %v350 = vld [vmem:[%s1 + $0x4f8] sm:$0xff]
      %v351 = vld [vmem:[%s1 + $0x500] sm:$0xff]
      %v352 = vld [vmem:[%s1 + $0x508] sm:$0xff]
      %v353 = vld [vmem:[%s1 + $0x510] sm:$0xff]
      %v354 = vld [vmem:[%s1 + $0x518] sm:$0xff]
      %v355 = vld [vmem:[%s1 + $0x520] sm:$0xff]
      %v356 = vld [vmem:[%s1 + $0x528] sm:$0xff]
      %v357 = vld [vmem:[%s1 + $0x530] sm:$0xff]
      %v358 = vld [vmem:[%s1 + $0x538] sm:$0xff]
      %v359 = vld [vmem:[%s1 + $0x540] sm:$0xff]
      %v360 = vld [vmem:[%s1 + $0x548] sm:$0xff]
      %v361 = vld [vmem:[%s1 + $0x550] sm:$0xff]
      %v362 = vld [vmem:[%s1 + $0x558] sm:$0xff]
      %v363 = vld [vmem:[%s1 + $0x560] sm:$0xff]
      %v364 = vld [vmem:[%s1 + $0x568] sm:$0xff]
      %v365 = vld [vmem:[%s1 + $0x570] sm:$0xff]
      %v366 = vld [vmem:[%s1 + $0x578] sm:$0xff]
      %v367 = vld [vmem:[%s1 + $0x580] sm:$0xff]
      %v368 = vld [vmem:[%s1 + $0x588] sm:$0xff]
      %v369 = vld [vmem:[%s1 + $0x590] sm:$0xff]
      %v370 = vld [vmem:[%s1 + $0x598] sm:$0xff]
      %v371 = vld [vmem:[%s1 + $0x5a0] sm:$0xff]
      %v372 = vld [vmem:[%s1 + $0x5a8] sm:$0xff]
      %v373 = vld [vmem:[%s1 + $0x5b0] sm:$0xff]
      %v374 = vld [vmem:[%s1 + $0x5b8] sm:$0xff]
      %v375 = vld [vmem:[%s1 + $0x5c0] sm:$0xff]
      %v376 = vld [vmem:[%s1 + $0x5c8] sm:$0xff]
      %v377 = vld [vmem:[%s1 + $0x5d0] sm:$0xff]
      %v378 = vld [vmem:[%s1 + $0x5d8] sm:$0xff]
      %v379 = vld [vmem:[%s1 + $0x5e0] sm:$0xff]
      %v380 = vld [vmem:[%s1 + $0x5e8] sm:$0xff]
      %v381 = vld [vmem:[%s1 + $0x5f0] sm:$0xff]
      %v382 = vld [vmem:[%s1 + $0x5f8] sm:$0xff]
      %v383 = vld [vmem:[%s1 + $0x600] sm:$0xff]
      %v384 = vld [vmem:[%s1 + $0x608] sm:$0xff]
      %v385 = vld [vmem:[%s1 + $0x610] sm:$0xff]
      %v386 = vld [vmem:[%s1 + $0x618] sm:$0xff]
      %v387 = vld [vmem:[%s1 + $0x620] sm:$0xff]
      %v388 = vld [vmem:[%s1 + $0x628] sm:$0xff]
      %v389 = vld [vmem:[%s1 + $0x630] sm:$0xff]
      %v390 = vld [vmem:[%s1 + $0x638] sm:$0xff]
      %v391 = vld [vmem:[%s1 + $0x640] sm:$0xff]
      %v392 = vld [vmem:[%s1 + $0x648] sm:$0xff]
      %v393 = vld [vmem:[%s1 + $0x650] sm:$0xff]
      %v394 = vld [vmem:[%s1 + $0x658] sm:$0xff]
      %v395 = vld [vmem:[%s1 + $0x660] sm:$0xff]
      %v396 = vld [vmem:[%s1 + $0x668] sm:$0xff]
      %v397 = vld [vmem:[%s1 + $0x670] sm:$0xff]
      %v398 = vld [vmem:[%s1 + $0x678] sm:$0xff]
      %v399 = vld [vmem:[%s1 + $0x680] sm:$0xff]
      %v400 = vld [vmem:[%s1 + $0x688] sm:$0xff]
      %v401 = vld [vmem:[%s1 + $0x690] sm:$0xff]
      %v402 = vld [vmem:[%s1 + $0x698] sm:$0xff]
      %v403 = vld [vmem:[%s1 + $0x6a0] sm:$0xff]
      %v404 = vld [vmem:[%s1 + $0x6a8] sm:$0xff]
      %v405 = vld [vmem:[%s1 + $0x6b0] sm:$0xff]
      %v406 = vld [vmem:[%s1 + $0x6b8] sm:$0xff]
      %v407 = vld [vmem:[%s1 + $0x6c0] sm:$0xff]
      %v408 = vld [vmem:[%s1 + $0x6c8] sm:$0xff]
      %v409 = vld [vmem:[%s1 + $0x6d0] sm:$0xff]
      %v410 = vld [vmem:[%s1 + $0x6d8] sm:$0xff]
      %v411 = vld [vmem:[%s1 + $0x6e0] sm:$0xff]
      %v412 = vld [vmem:[%s1 + $0x6e8] sm:$0xff]
      %v413 = vld [vmem:[%s1 + $0x6f0] sm:$0xff]
      %v414 = vld [vmem:[%s1 + $0x6f8] sm:$0xff]
      %v415 = vld [vmem:[%s1 + $0x700] sm:$0xff]
      %v416 = vld [vmem:[%s1 + $0x708] sm:$0xff]
      %v417 = vld [vmem:[%s1 + $0x710] sm:$0xff]
      %v418 = vld [vmem:[%s1 + $0x718] sm:$0xff]
      %v419 = vld [vmem:[%s1 + $0x720] sm:$0xff]
      %v420 = vld [vmem:[%s1 + $0x728] sm:$0xff]
      %v421 = vld [vmem:[%s1 + $0x730] sm:$0xff]
      %v422 = vld [vmem:[%s1 + $0x738] sm:$0xff]
      %v423 = vld [vmem:[%s1 + $0x740] sm:$0xff]
      %v424 = vld [vmem:[%s1 + $0x748] sm:$0xff]
      %v425 = vld [vmem:[%s1 + $0x750] sm:$0xff]
      %v426 = vld [vmem:[%s1 + $0x758] sm:$0xff]
      %v427 = vld [vmem:[%s1 + $0x760] sm:$0xff]
      %v428 = vld [vmem:[%s1 + $0x768] sm:$0xff]
      %v429 = vld [vmem:[%s1 + $0x770] sm:$0xff]
      %v430 = vld [vmem:[%s1 + $0x778] sm:$0xff]
      %v431 = vld [vmem:[%s1 + $0x780] sm:$0xff]
      %v432 = vld [vmem:[%s1 + $0x788] sm:$0xff]
      %v433 = vld [vmem:[%s1 + $0x790] sm:$0xff]
      %v434 = vld [vmem:[%s1 + $0x798] sm:$0xff]
      %v435 = vld [vmem:[%s1 + $0x7a0] sm:$0xff]
      %v436 = vld [vmem:[%s1 + $0x7a8] sm:$0xff]
      %v437 = vld [vmem:[%s1 + $0x7b0] sm:$0xff]
      %v438 = vld [vmem:[%s1 + $0x7b8] sm:$0xff]
      %v439 = vld [vmem:[%s1 + $0x7c0] sm:$0xff]
      %v440 = vld [vmem:[%s1 + $0x7c8] sm:$0xff]
      %v441 = vld [vmem:[%s1 + $0x7d0] sm:$0xff]
      %v442 = vld [vmem:[%s1 + $0x7d8] sm:$0xff]
      %v443 = vld [vmem:[%s1 + $0x7e0] sm:$0xff]
      %v444 = vld [vmem:[%s1 + $0x7e8] sm:$0xff]
      %v445 = vld [vmem:[%s1 + $0x7f0] sm:$0xff]
      %v446 = vld [vmem:[%s1 + $0x7f8] sm:$0xff]
      %v447 = vld [vmem:[%s1 + $0x800] sm:$0xff]
      %v448 = vld [vmem:[%s1 + $0x808] sm:$0xff]
      %v449 = vld [vmem:[%s1 + $0x810] sm:$0xff]
      %v450 = vld [vmem:[%s1 + $0x818] sm:$0xff]
      %v451 = vld [vmem:[%s1 + $0x820] sm:$0xff]
      %v452 = vld [vmem:[%s1 + $0x828] sm:$0xff]
      %v453 = vld [vmem:[%s1 + $0x830] sm:$0xff]
      %v454 = vld [vmem:[%s1 + $0x838] sm:$0xff]
      %v455 = vld [vmem:[%s1 + $0x840] sm:$0xff]
      %v456 = vld [vmem:[%s1 + $0x848] sm:$0xff]
      %v457 = vld [vmem:[%s1 + $0x850] sm:$0xff]
      %v458 = vld [vmem:[%s1 + $0x858] sm:$0xff]
      %v459 = vld [vmem:[%s1 + $0x860] sm:$0xff]
      %v460 = vld [vmem:[%s1 + $0x868] sm:$0xff]
      %v461 = vld [vmem:[%s1 + $0x870] sm:$0xff]
      %v462 = vld [vmem:[%s1 + $0x878] sm:$0xff]
      %v463 = vld [vmem:[%s1 + $0x880] sm:$0xff]
      %v464 = vld [vmem:[%s1 + $0x888] sm:$0xff]
      %v465 = vld [vmem:[%s1 + $0x890] sm:$0xff]
      %v466 = vld [vmem:[%s1 + $0x898] sm:$0xff]
      %v467 = vld [vmem:[%s1 + $0x8a0] sm:$0xff]
      %v468 = vld [vmem:[%s1 + $0x8a8] sm:$0xff]
      %v469 = vld [vmem:[%s1 + $0x8b0] sm:$0xff]
      %v470 = vld [vmem:[%s1 + $0x8b8] sm:$0xff]
      %v471 = vld [vmem:[%s1 + $0x8c0] sm:$0xff]
      %v472 = vld [vmem:[%s1 + $0x8c8] sm:$0xff]
      %v473 = vld [vmem:[%s1 + $0x8d0] sm:$0xff]
      %v474 = vld [vmem:[%s1 + $0x8d8] sm:$0xff]
      %v475 = vld [vmem:[%s1 + $0x8e0] sm:$0xff]
      %v476 = vld [vmem:[%s1 + $0x8e8] sm:$0xff]
      %v477 = vld [vmem:[%s1 + $0x8f0] sm:$0xff]
      %v478 = vld [vmem:[%s1 + $0x8f8] sm:$0xff]
      %v479 = vld [vmem:[%s1 + $0x900] sm:$0xff]
      %v480 = vld [vmem:[%s1 + $0x908] sm:$0xff]
      %v481 = vld [vmem:[%s1 + $0x910] sm:$0xff]
      %v482 = vld [vmem:[%s1 + $0x918] sm:$0xff]
      %v483 = vld [vmem:[%s1 + $0x920] sm:$0xff]
      %v484 = vld [vmem:[%s1 + $0x928] sm:$0xff]
      %v485 = vld [vmem:[%s1 + $0x930] sm:$0xff]
      %v486 = vld [vmem:[%s1 + $0x938] sm:$0xff]
      %v487 = vld [vmem:[%s1 + $0x940] sm:$0xff]
      %v488 = vld [vmem:[%s1 + $0x948] sm:$0xff]
      %v489 = vld [vmem:[%s1 + $0x950] sm:$0xff]
      %v490 = vld [vmem:[%s1 + $0x958] sm:$0xff]
      %v491 = vld [vmem:[%s1 + $0x960] sm:$0xff]
      %v492 = vld [vmem:[%s1 + $0x968] sm:$0xff]
      %v493 = vld [vmem:[%s1 + $0x970] sm:$0xff]
      %v494 = vld [vmem:[%s1 + $0x978] sm:$0xff]
      %v495 = vld [vmem:[%s1 + $0x980] sm:$0xff]
      %v496 = vld [vmem:[%s1 + $0x988] sm:$0xff]
      %v497 = vld [vmem:[%s1 + $0x990] sm:$0xff]
      %v498 = vld [vmem:[%s1 + $0x998] sm:$0xff]
      %v499 = vld [vmem:[%s1 + $0x9a0] sm:$0xff]
      %v500 = vld [vmem:[%s1 + $0x9a8] sm:$0xff]
      %v501 = vld [vmem:[%s1 + $0x9b0] sm:$0xff]
      %v502 = vld [vmem:[%s1 + $0x9b8] sm:$0xff]
      %v503 = vld [vmem:[%s1 + $0x9c0] sm:$0xff]
      %v504 = vld [vmem:[%s1 + $0x9c8] sm:$0xff]
      %v505 = vld [vmem:[%s1 + $0x9d0] sm:$0xff]
      %v506 = vld [vmem:[%s1 + $0x9d8] sm:$0xff]
      %v507 = vld [vmem:[%s1 + $0x9e0] sm:$0xff]
      %v508 = vld [vmem:[%s1 + $0x9e8] sm:$0xff]
      %v509 = vld [vmem:[%s1 + $0x9f0] sm:$0xff]
      %v510 = vld [vmem:[%s1 + $0x9f8] sm:$0xff]
      %v511 = vld [vmem:[%s1 + $0xa00] sm:$0xff]
      %v512 = vld [vmem:[%s1 + $0xa08] sm:$0xff]
      %v513 = vld [vmem:[%s1 + $0xa10] sm:$0xff]
      %v514 = vld [vmem:[%s1 + $0xa18] sm:$0xff]
      %v515 = vld [vmem:[%s1 + $0xa20] sm:$0xff]
      %v516 = vld [vmem:[%s1 + $0xa28] sm:$0xff]
      %v517 = vld [vmem:[%s1 + $0xa30] sm:$0xff]
      %v518 = vld [vmem:[%s1 + $0xa38] sm:$0xff]
      %v519 = vld [vmem:[%s1 + $0xa40] sm:$0xff]
      %v520 = vld [vmem:[%s1 + $0xa48] sm:$0xff]
      %v521 = vld [vmem:[%s1 + $0xa50] sm:$0xff]
      %v522 = vld [vmem:[%s1 + $0xa58] sm:$0xff]
      %v523 = vld [vmem:[%s1 + $0xa60] sm:$0xff]
      %v524 = vld [vmem:[%s1 + $0xa68] sm:$0xff]
      %v525 = vld [vmem:[%s1 + $0xa70] sm:$0xff]
      %v526 = vld [vmem:[%s1 + $0xa78] sm:$0xff]
      %v527 = vld [vmem:[%s1 + $0xa80] sm:$0xff]
      %v528 = vld [vmem:[%s1 + $0xa88] sm:$0xff]
      %v529 = vld [vmem:[%s1 + $0xa90] sm:$0xff]
      %v530 = vld [vmem:[%s1 + $0xa98] sm:$0xff]
      %v531 = vld [vmem:[%s1 + $0xaa0] sm:$0xff]
      %v532 = vld [vmem:[%s1 + $0xaa8] sm:$0xff]
      %v533 = vld [vmem:[%s1 + $0xab0] sm:$0xff]
      %v534 = vld [vmem:[%s1 + $0xab8] sm:$0xff]
      %v535 = vld [vmem:[%s1 + $0xac0] sm:$0xff]
      %v536 = vld [vmem:[%s1 + $0xac8] sm:$0xff]
      %v537 = vld [vmem:[%s1 + $0xad0] sm:$0xff]
      %v538 = vld [vmem:[%s1 + $0xad8] sm:$0xff]
      %v539 = vld [vmem:[%s1 + $0xae0] sm:$0xff]
      %v540 = vld [vmem:[%s1 + $0xae8] sm:$0xff]
      %v541 = vld [vmem:[%s1 + $0xaf0] sm:$0xff]
      %v542 = vld [vmem:[%s1 + $0xaf8] sm:$0xff]
      %v543 = vld [vmem:[%s1 + $0xb00] sm:$0xff]
      %v544 = vld [vmem:[%s1 + $0xb08] sm:$0xff]
      %v545 = vld [vmem:[%s1 + $0xb10] sm:$0xff]
      %v546 = vld [vmem:[%s1 + $0xb18] sm:$0xff]
      %v547 = vld [vmem:[%s1 + $0xb20] sm:$0xff]
      %v548 = vld [vmem:[%s1 + $0xb28] sm:$0xff]
      %v549 = vld [vmem:[%s1 + $0xb30] sm:$0xff]
      %v550 = vld [vmem:[%s1 + $0xb38] sm:$0xff]
      %v551 = vld [vmem:[%s1 + $0xb40] sm:$0xff]
      %v552 = vld [vmem:[%s1 + $0xb48] sm:$0xff]
      %v553 = vld [vmem:[%s1 + $0xb50] sm:$0xff]
      %v554 = vld [vmem:[%s1 + $0xb58] sm:$0xff]
      %v555 = vld [vmem:[%s1 + $0xb60] sm:$0xff]
      %v556 = vld [vmem:[%s1 + $0xb68] sm:$0xff]
      %v557 = vld [vmem:[%s1 + $0xb70] sm:$0xff]
      %v558 = vld [vmem:[%s1 + $0xb78] sm:$0xff]
      %v559 = vld [vmem:[%s1 + $0xb80] sm:$0xff]
      %v560 = vld [vmem:[%s1 + $0xb88] sm:$0xff]
      %v561 = vld [vmem:[%s1 + $0xb90] sm:$0xff]
      %v562 = vld [vmem:[%s1 + $0xb98] sm:$0xff]
      %v563 = vld [vmem:[%s1 + $0xba0] sm:$0xff]
      %v564 = vld [vmem:[%s1 + $0xba8] sm:$0xff]
      %v565 = vld [vmem:[%s1 + $0xbb0] sm:$0xff]
      %v566 = vld [vmem:[%s1 + $0xbb8] sm:$0xff]
      %v567 = vld [vmem:[%s1 + $0xbc0] sm:$0xff]
      %v568 = vld [vmem:[%s1 + $0xbc8] sm:$0xff]
      %v569 = vld [vmem:[%s1 + $0xbd0] sm:$0xff]
      %v570 = vld [vmem:[%s1 + $0xbd8] sm:$0xff]
      %v571 = vld [vmem:[%s1 + $0xbe0] sm:$0xff]
      %v572 = vld [vmem:[%s1 + $0xbe8] sm:$0xff]
      %v573 = vld [vmem:[%s1 + $0xbf0] sm:$0xff]
      %v574 = vld [vmem:[%s1 + $0xbf8] sm:$0xff]
      %v575 = vld [vmem:[%s2] sm:$0xff]
      %v576 = vld [vmem:[%s2 + $0x8] sm:$0xf]
      %v579 = vlaneseq
      %v580 = vshrl.u32 %v579, 7
      %v581 = vsub.s32 0, %v580
      %v582 = vrot.slane %v575, %v581
      %v583 = vlaneseq
      %v584 = vshrl.u32 %v583, 7
      %v585 = vsub.s32 1, %v584
      %v586 = vrot.slane %v575, %v585
      %v587 = vlaneseq
      %v588 = vshrl.u32 %v587, 7
      %v589 = vsub.s32 2, %v588
      %v590 = vrot.slane %v575, %v589
      %v591 = vlaneseq
      %v592 = vshrl.u32 %v591, 7
      %v593 = vsub.s32 3, %v592
      %v594 = vrot.slane %v575, %v593
      %v595 = vlaneseq
      %v596 = vshrl.u32 %v595, 7
      %v597 = vsub.s32 4, %v596
      %v598 = vrot.slane %v575, %v597
      %v599 = vlaneseq
      %v600 = vshrl.u32 %v599, 7
      %v601 = vsub.s32 5, %v600
      %v602 = vrot.slane %v575, %v601
      %v603 = vlaneseq
      %v604 = vshrl.u32 %v603, 7
      %v605 = vsub.s32 6, %v604
      %v606 = vrot.slane %v575, %v605
      %v607 = vlaneseq
      %v608 = vshrl.u32 %v607, 7
      %v609 = vsub.s32 7, %v608
      %v610 = vrot.slane %v575, %v609
      %v611 = vlaneseq
      %v612 = vshrl.u32 %v611, 7
      %v613 = vsub.s32 0, %v612
      %v614 = vrot.slane %v576, %v613
      %v615 = vlaneseq
      %v616 = vshrl.u32 %v615, 7
      %v617 = vsub.s32 1, %v616
      %v618 = vrot.slane %v576, %v617
      %v619 = vlaneseq
      %v620 = vshrl.u32 %v619, 7
      %v621 = vsub.s32 2, %v620
      %v622 = vrot.slane %v576, %v621
      %v623 = vlaneseq
      %v624 = vshrl.u32 %v623, 7
      %v625 = vsub.s32 3, %v624
      %v626 = vrot.slane %v576, %v625
      %v1023 = vunpack.c.l.b16 %v191
      %v1024 = vunpack.c.h.b16 %v191
      %v1025 = vunpack.c.l.b16 %v192
      %v1026 = vunpack.c.h.b16 %v192
      %v1027 = vunpack.c.l.b16 %v193
      %v1028 = vunpack.c.h.b16 %v193
      %v1029 = vunpack.c.l.b16 %v194
      %v1030 = vunpack.c.h.b16 %v194
      %v1031 = vunpack.c.l.b16 %v195
      %v1032 = vunpack.c.h.b16 %v195
      %v1033 = vunpack.c.l.b16 %v196
      %v1034 = vunpack.c.h.b16 %v196
      %v1035 = vunpack.c.l.b16 %v197
      %v1036 = vunpack.c.h.b16 %v197
      %v1037 = vunpack.c.l.b16 %v198
      %v1038 = vunpack.c.h.b16 %v198
      %v1039 = vunpack.c.l.b16 %v199
      %v1040 = vunpack.c.h.b16 %v199
      %v1041 = vunpack.c.l.b16 %v200
      %v1042 = vunpack.c.h.b16 %v200
      %v1043 = vunpack.c.l.b16 %v201
      %v1044 = vunpack.c.h.b16 %v201
      %v1045 = vunpack.c.l.b16 %v202
      %v1046 = vunpack.c.h.b16 %v202
      %v1047 = vunpack.c.l.b16 %v203
      %v1048 = vunpack.c.h.b16 %v203
      %v1049 = vunpack.c.l.b16 %v204
      %v1050 = vunpack.c.h.b16 %v204
      %v1051 = vunpack.c.l.b16 %v205
      %v1052 = vunpack.c.h.b16 %v205
      %v1053 = vunpack.c.l.b16 %v206
      %v1054 = vunpack.c.h.b16 %v206
      %v1055 = vunpack.c.l.b16 %v207
      %v1056 = vunpack.c.h.b16 %v207
      %v1057 = vunpack.c.l.b16 %v208
      %v1058 = vunpack.c.h.b16 %v208
      %v1059 = vunpack.c.l.b16 %v209
      %v1060 = vunpack.c.h.b16 %v209
      %v1061 = vunpack.c.l.b16 %v210
      %v1062 = vunpack.c.h.b16 %v210
      %v1063 = vunpack.c.l.b16 %v211
      %v1064 = vunpack.c.h.b16 %v211
      %v1065 = vunpack.c.l.b16 %v212
      %v1066 = vunpack.c.h.b16 %v212
      %v1067 = vunpack.c.l.b16 %v213
      %v1068 = vunpack.c.h.b16 %v213
      %v1069 = vunpack.c.l.b16 %v214
      %v1070 = vunpack.c.h.b16 %v214
      %v1071 = vunpack.c.l.b16 %v215
      %v1072 = vunpack.c.h.b16 %v215
      %v1073 = vunpack.c.l.b16 %v216
      %v1074 = vunpack.c.h.b16 %v216
      %v1075 = vunpack.c.l.b16 %v217
      %v1076 = vunpack.c.h.b16 %v217
      %v1077 = vunpack.c.l.b16 %v218
      %v1078 = vunpack.c.h.b16 %v218
      %v1079 = vunpack.c.l.b16 %v219
      %v1080 = vunpack.c.h.b16 %v219
      %v1081 = vunpack.c.l.b16 %v220
      %v1082 = vunpack.c.h.b16 %v220
      %v1083 = vunpack.c.l.b16 %v221
      %v1084 = vunpack.c.h.b16 %v221
      %v1085 = vunpack.c.l.b16 %v222
      %v1086 = vunpack.c.h.b16 %v222
      %v1087 = vunpack.c.l.b16 %v223
      %v1088 = vunpack.c.h.b16 %v223
      %v1089 = vunpack.c.l.b16 %v224
      %v1090 = vunpack.c.h.b16 %v224
      %v1091 = vunpack.c.l.b16 %v225
      %v1092 = vunpack.c.h.b16 %v225
      %v1093 = vunpack.c.l.b16 %v226
      %v1094 = vunpack.c.h.b16 %v226
      %v1095 = vunpack.c.l.b16 %v227
      %v1096 = vunpack.c.h.b16 %v227
      %v1097 = vunpack.c.l.b16 %v228
      %v1098 = vunpack.c.h.b16 %v228
      %v1099 = vunpack.c.l.b16 %v229
      %v1100 = vunpack.c.h.b16 %v229
      %v1101 = vunpack.c.l.b16 %v230
      %v1102 = vunpack.c.h.b16 %v230
      %v1103 = vunpack.c.l.b16 %v231
      %v1104 = vunpack.c.h.b16 %v231
      %v1105 = vunpack.c.l.b16 %v232
      %v1106 = vunpack.c.h.b16 %v232
      %v1107 = vunpack.c.l.b16 %v233
      %v1108 = vunpack.c.h.b16 %v233
      %v1109 = vunpack.c.l.b16 %v234
      %v1110 = vunpack.c.h.b16 %v234
      %v1111 = vunpack.c.l.b16 %v235
      %v1112 = vunpack.c.h.b16 %v235
      %v1113 = vunpack.c.l.b16 %v236
      %v1114 = vunpack.c.h.b16 %v236
      %v1115 = vunpack.c.l.b16 %v237
      %v1116 = vunpack.c.h.b16 %v237
      %v1117 = vunpack.c.l.b16 %v238
      %v1118 = vunpack.c.h.b16 %v238
      %v1119 = vunpack.c.l.b16 %v239
      %v1120 = vunpack.c.h.b16 %v239
      %v1121 = vunpack.c.l.b16 %v240
      %v1122 = vunpack.c.h.b16 %v240
      %v1123 = vunpack.c.l.b16 %v241
      %v1124 = vunpack.c.h.b16 %v241
      %v1125 = vunpack.c.l.b16 %v242
      %v1126 = vunpack.c.h.b16 %v242
      %v1127 = vunpack.c.l.b16 %v243
      %v1128 = vunpack.c.h.b16 %v243
      %v1129 = vunpack.c.l.b16 %v244
      %v1130 = vunpack.c.h.b16 %v244
      %v1131 = vunpack.c.l.b16 %v245
      %v1132 = vunpack.c.h.b16 %v245
      %v1133 = vunpack.c.l.b16 %v246
      %v1134 = vunpack.c.h.b16 %v246
      %v1135 = vunpack.c.l.b16 %v247
      %v1136 = vunpack.c.h.b16 %v247
      %v1137 = vunpack.c.l.b16 %v248
      %v1138 = vunpack.c.h.b16 %v248
      %v1139 = vunpack.c.l.b16 %v249
      %v1140 = vunpack.c.h.b16 %v249
      %v1141 = vunpack.c.l.b16 %v250
      %v1142 = vunpack.c.h.b16 %v250
      %v1143 = vunpack.c.l.b16 %v251
      %v1144 = vunpack.c.h.b16 %v251
      %v1145 = vunpack.c.l.b16 %v252
      %v1146 = vunpack.c.h.b16 %v252
      %v1147 = vunpack.c.l.b16 %v253
      %v1148 = vunpack.c.h.b16 %v253
      %v1149 = vunpack.c.l.b16 %v254
      %v1150 = vunpack.c.h.b16 %v254
      %v1151 = vunpack.c.l.b16 %v255
      %v1152 = vunpack.c.h.b16 %v255
      %v1153 = vunpack.c.l.b16 %v256
      %v1154 = vunpack.c.h.b16 %v256
      %v1155 = vunpack.c.l.b16 %v257
      %v1156 = vunpack.c.h.b16 %v257
      %v1157 = vunpack.c.l.b16 %v258
      %v1158 = vunpack.c.h.b16 %v258
      %v1159 = vunpack.c.l.b16 %v259
      %v1160 = vunpack.c.h.b16 %v259
      %v1161 = vunpack.c.l.b16 %v260
      %v1162 = vunpack.c.h.b16 %v260
      %v1163 = vunpack.c.l.b16 %v261
      %v1164 = vunpack.c.h.b16 %v261
      %v1165 = vunpack.c.l.b16 %v262
      %v1166 = vunpack.c.h.b16 %v262
      %v1167 = vunpack.c.l.b16 %v263
      %v1168 = vunpack.c.h.b16 %v263
      %v1169 = vunpack.c.l.b16 %v264
      %v1170 = vunpack.c.h.b16 %v264
      %v1171 = vunpack.c.l.b16 %v265
      %v1172 = vunpack.c.h.b16 %v265
      %v1173 = vunpack.c.l.b16 %v266
      %v1174 = vunpack.c.h.b16 %v266
      %v1175 = vunpack.c.l.b16 %v267
      %v1176 = vunpack.c.h.b16 %v267
      %v1177 = vunpack.c.l.b16 %v268
      %v1178 = vunpack.c.h.b16 %v268
      %v1179 = vunpack.c.l.b16 %v269
      %v1180 = vunpack.c.h.b16 %v269
      %v1181 = vunpack.c.l.b16 %v270
      %v1182 = vunpack.c.h.b16 %v270
      %v1183 = vunpack.c.l.b16 %v271
      %v1184 = vunpack.c.h.b16 %v271
      %v1185 = vunpack.c.l.b16 %v272
      %v1186 = vunpack.c.h.b16 %v272
      %v1187 = vunpack.c.l.b16 %v273
      %v1188 = vunpack.c.h.b16 %v273
      %v1189 = vunpack.c.l.b16 %v274
      %v1190 = vunpack.c.h.b16 %v274
      %v1191 = vunpack.c.l.b16 %v275
      %v1192 = vunpack.c.h.b16 %v275
      %v1193 = vunpack.c.l.b16 %v276
      %v1194 = vunpack.c.h.b16 %v276
      %v1195 = vunpack.c.l.b16 %v277
      %v1196 = vunpack.c.h.b16 %v277
      %v1197 = vunpack.c.l.b16 %v278
      %v1198 = vunpack.c.h.b16 %v278
      %v1199 = vunpack.c.l.b16 %v279
      %v1200 = vunpack.c.h.b16 %v279
      %v1201 = vunpack.c.l.b16 %v280
      %v1202 = vunpack.c.h.b16 %v280
      %v1203 = vunpack.c.l.b16 %v281
      %v1204 = vunpack.c.h.b16 %v281
      %v1205 = vunpack.c.l.b16 %v282
      %v1206 = vunpack.c.h.b16 %v282
      %v1207 = vunpack.c.l.b16 %v283
      %v1208 = vunpack.c.h.b16 %v283
      %v1209 = vunpack.c.l.b16 %v284
      %v1210 = vunpack.c.h.b16 %v284
      %v1211 = vunpack.c.l.b16 %v285
      %v1212 = vunpack.c.h.b16 %v285
      %v1213 = vunpack.c.l.b16 %v286
      %v1214 = vunpack.c.h.b16 %v286
      %v1215 = vunpack.c.l.b16 %v287
      %v1216 = vunpack.c.h.b16 %v287
      %v1217 = vunpack.c.l.b16 %v288
      %v1218 = vunpack.c.h.b16 %v288
      %v1219 = vunpack.c.l.b16 %v289
      %v1220 = vunpack.c.h.b16 %v289
      %v1221 = vunpack.c.l.b16 %v290
      %v1222 = vunpack.c.h.b16 %v290
      %v1223 = vunpack.c.l.b16 %v291
      %v1224 = vunpack.c.h.b16 %v291
      %v1225 = vunpack.c.l.b16 %v292
      %v1226 = vunpack.c.h.b16 %v292
      %v1227 = vunpack.c.l.b16 %v293
      %v1228 = vunpack.c.h.b16 %v293
      %v1229 = vunpack.c.l.b16 %v294
      %v1230 = vunpack.c.h.b16 %v294
      %v1231 = vunpack.c.l.b16 %v295
      %v1232 = vunpack.c.h.b16 %v295
      %v1233 = vunpack.c.l.b16 %v296
      %v1234 = vunpack.c.h.b16 %v296
      %v1235 = vunpack.c.l.b16 %v297
      %v1236 = vunpack.c.h.b16 %v297
      %v1237 = vunpack.c.l.b16 %v298
      %v1238 = vunpack.c.h.b16 %v298
      %v1239 = vunpack.c.l.b16 %v299
      %v1240 = vunpack.c.h.b16 %v299
      %v1241 = vunpack.c.l.b16 %v300
      %v1242 = vunpack.c.h.b16 %v300
      %v1243 = vunpack.c.l.b16 %v301
      %v1244 = vunpack.c.h.b16 %v301
      %v1245 = vunpack.c.l.b16 %v302
      %v1246 = vunpack.c.h.b16 %v302
      %v1247 = vunpack.c.l.b16 %v303
      %v1248 = vunpack.c.h.b16 %v303
      %v1249 = vunpack.c.l.b16 %v304
      %v1250 = vunpack.c.h.b16 %v304
      %v1251 = vunpack.c.l.b16 %v305
      %v1252 = vunpack.c.h.b16 %v305
      %v1253 = vunpack.c.l.b16 %v306
      %v1254 = vunpack.c.h.b16 %v306
      %v1255 = vunpack.c.l.b16 %v307
      %v1256 = vunpack.c.h.b16 %v307
      %v1257 = vunpack.c.l.b16 %v308
      %v1258 = vunpack.c.h.b16 %v308
      %v1259 = vunpack.c.l.b16 %v309
      %v1260 = vunpack.c.h.b16 %v309
      %v1261 = vunpack.c.l.b16 %v310
      %v1262 = vunpack.c.h.b16 %v310
      %v1263 = vunpack.c.l.b16 %v311
      %v1264 = vunpack.c.h.b16 %v311
      %v1265 = vunpack.c.l.b16 %v312
      %v1266 = vunpack.c.h.b16 %v312
      %v1267 = vunpack.c.l.b16 %v313
      %v1268 = vunpack.c.h.b16 %v313
      %v1269 = vunpack.c.l.b16 %v314
      %v1270 = vunpack.c.h.b16 %v314
      %v1271 = vunpack.c.l.b16 %v315
      %v1272 = vunpack.c.h.b16 %v315
      %v1273 = vunpack.c.l.b16 %v316
      %v1274 = vunpack.c.h.b16 %v316
      %v1275 = vunpack.c.l.b16 %v317
      %v1276 = vunpack.c.h.b16 %v317
      %v1277 = vunpack.c.l.b16 %v318
      %v1278 = vunpack.c.h.b16 %v318
      %v1279 = vunpack.c.l.b16 %v319
      %v1280 = vunpack.c.h.b16 %v319
      %v1281 = vunpack.c.l.b16 %v320
      %v1282 = vunpack.c.h.b16 %v320
      %v1283 = vunpack.c.l.b16 %v321
      %v1284 = vunpack.c.h.b16 %v321
      %v1285 = vunpack.c.l.b16 %v322
      %v1286 = vunpack.c.h.b16 %v322
      %v1287 = vunpack.c.l.b16 %v323
      %v1288 = vunpack.c.h.b16 %v323
      %v1289 = vunpack.c.l.b16 %v324
      %v1290 = vunpack.c.h.b16 %v324
      %v1291 = vunpack.c.l.b16 %v325
      %v1292 = vunpack.c.h.b16 %v325
      %v1293 = vunpack.c.l.b16 %v326
      %v1294 = vunpack.c.h.b16 %v326
      %v1295 = vunpack.c.l.b16 %v327
      %v1296 = vunpack.c.h.b16 %v327
      %v1297 = vunpack.c.l.b16 %v328
      %v1298 = vunpack.c.h.b16 %v328
      %v1299 = vunpack.c.l.b16 %v329
      %v1300 = vunpack.c.h.b16 %v329
      %v1301 = vunpack.c.l.b16 %v330
      %v1302 = vunpack.c.h.b16 %v330
      %v1303 = vunpack.c.l.b16 %v331
      %v1304 = vunpack.c.h.b16 %v331
      %v1305 = vunpack.c.l.b16 %v332
      %v1306 = vunpack.c.h.b16 %v332
      %v1307 = vunpack.c.l.b16 %v333
      %v1308 = vunpack.c.h.b16 %v333
      %v1309 = vunpack.c.l.b16 %v334
      %v1310 = vunpack.c.h.b16 %v334
      %v1311 = vunpack.c.l.b16 %v335
      %v1312 = vunpack.c.h.b16 %v335
      %v1313 = vunpack.c.l.b16 %v336
      %v1314 = vunpack.c.h.b16 %v336
      %v1315 = vunpack.c.l.b16 %v337
      %v1316 = vunpack.c.h.b16 %v337
      %v1317 = vunpack.c.l.b16 %v338
      %v1318 = vunpack.c.h.b16 %v338
      %v1319 = vunpack.c.l.b16 %v339
      %v1320 = vunpack.c.h.b16 %v339
      %v1321 = vunpack.c.l.b16 %v340
      %v1322 = vunpack.c.h.b16 %v340
      %v1323 = vunpack.c.l.b16 %v341
      %v1324 = vunpack.c.h.b16 %v341
      %v1325 = vunpack.c.l.b16 %v342
      %v1326 = vunpack.c.h.b16 %v342
      %v1327 = vunpack.c.l.b16 %v343
      %v1328 = vunpack.c.h.b16 %v343
      %v1329 = vunpack.c.l.b16 %v344
      %v1330 = vunpack.c.h.b16 %v344
      %v1331 = vunpack.c.l.b16 %v345
      %v1332 = vunpack.c.h.b16 %v345
      %v1333 = vunpack.c.l.b16 %v346
      %v1334 = vunpack.c.h.b16 %v346
      %v1335 = vunpack.c.l.b16 %v347
      %v1336 = vunpack.c.h.b16 %v347
      %v1337 = vunpack.c.l.b16 %v348
      %v1338 = vunpack.c.h.b16 %v348
      %v1339 = vunpack.c.l.b16 %v349
      %v1340 = vunpack.c.h.b16 %v349
      %v1341 = vunpack.c.l.b16 %v350
      %v1342 = vunpack.c.h.b16 %v350
      %v1343 = vunpack.c.l.b16 %v351
      %v1344 = vunpack.c.h.b16 %v351
      %v1345 = vunpack.c.l.b16 %v352
      %v1346 = vunpack.c.h.b16 %v352
      %v1347 = vunpack.c.l.b16 %v353
      %v1348 = vunpack.c.h.b16 %v353
      %v1349 = vunpack.c.l.b16 %v354
      %v1350 = vunpack.c.h.b16 %v354
      %v1351 = vunpack.c.l.b16 %v355
      %v1352 = vunpack.c.h.b16 %v355
      %v1353 = vunpack.c.l.b16 %v356
      %v1354 = vunpack.c.h.b16 %v356
      %v1355 = vunpack.c.l.b16 %v357
      %v1356 = vunpack.c.h.b16 %v357
      %v1357 = vunpack.c.l.b16 %v358
      %v1358 = vunpack.c.h.b16 %v358
      %v1359 = vunpack.c.l.b16 %v359
      %v1360 = vunpack.c.h.b16 %v359
      %v1361 = vunpack.c.l.b16 %v360
      %v1362 = vunpack.c.h.b16 %v360
      %v1363 = vunpack.c.l.b16 %v361
      %v1364 = vunpack.c.h.b16 %v361
      %v1365 = vunpack.c.l.b16 %v362
      %v1366 = vunpack.c.h.b16 %v362
      %v1367 = vunpack.c.l.b16 %v363
      %v1368 = vunpack.c.h.b16 %v363
      %v1369 = vunpack.c.l.b16 %v364
      %v1370 = vunpack.c.h.b16 %v364
      %v1371 = vunpack.c.l.b16 %v365
      %v1372 = vunpack.c.h.b16 %v365
      %v1373 = vunpack.c.l.b16 %v366
      %v1374 = vunpack.c.h.b16 %v366
      %v1375 = vunpack.c.l.b16 %v367
      %v1376 = vunpack.c.h.b16 %v367
      %v1377 = vunpack.c.l.b16 %v368
      %v1378 = vunpack.c.h.b16 %v368
      %v1379 = vunpack.c.l.b16 %v369
      %v1380 = vunpack.c.h.b16 %v369
      %v1381 = vunpack.c.l.b16 %v370
      %v1382 = vunpack.c.h.b16 %v370
      %v1383 = vunpack.c.l.b16 %v371
      %v1384 = vunpack.c.h.b16 %v371
      %v1385 = vunpack.c.l.b16 %v372
      %v1386 = vunpack.c.h.b16 %v372
      %v1387 = vunpack.c.l.b16 %v373
      %v1388 = vunpack.c.h.b16 %v373
      %v1389 = vunpack.c.l.b16 %v374
      %v1390 = vunpack.c.h.b16 %v374
      %v1391 = vunpack.c.l.b16 %v375
      %v1392 = vunpack.c.h.b16 %v375
      %v1393 = vunpack.c.l.b16 %v376
      %v1394 = vunpack.c.h.b16 %v376
      %v1395 = vunpack.c.l.b16 %v377
      %v1396 = vunpack.c.h.b16 %v377
      %v1397 = vunpack.c.l.b16 %v378
      %v1398 = vunpack.c.h.b16 %v378
      %v1399 = vunpack.c.l.b16 %v379
      %v1400 = vunpack.c.h.b16 %v379
      %v1401 = vunpack.c.l.b16 %v380
      %v1402 = vunpack.c.h.b16 %v380
      %v1403 = vunpack.c.l.b16 %v381
      %v1404 = vunpack.c.h.b16 %v381
      %v1405 = vunpack.c.l.b16 %v382
      %v1406 = vunpack.c.h.b16 %v382
      %v1407 = vunpack.c.l.b16 %v383
      %v1408 = vunpack.c.h.b16 %v383
      %v1409 = vunpack.c.l.b16 %v384
      %v1410 = vunpack.c.h.b16 %v384
      %v1411 = vunpack.c.l.b16 %v385
      %v1412 = vunpack.c.h.b16 %v385
      %v1413 = vunpack.c.l.b16 %v386
      %v1414 = vunpack.c.h.b16 %v386
      %v1415 = vunpack.c.l.b16 %v387
      %v1416 = vunpack.c.h.b16 %v387
      %v1417 = vunpack.c.l.b16 %v388
      %v1418 = vunpack.c.h.b16 %v388
      %v1419 = vunpack.c.l.b16 %v389
      %v1420 = vunpack.c.h.b16 %v389
      %v1421 = vunpack.c.l.b16 %v390
      %v1422 = vunpack.c.h.b16 %v390
      %v1423 = vunpack.c.l.b16 %v391
      %v1424 = vunpack.c.h.b16 %v391
      %v1425 = vunpack.c.l.b16 %v392
      %v1426 = vunpack.c.h.b16 %v392
      %v1427 = vunpack.c.l.b16 %v393
      %v1428 = vunpack.c.h.b16 %v393
      %v1429 = vunpack.c.l.b16 %v394
      %v1430 = vunpack.c.h.b16 %v394
      %v1431 = vunpack.c.l.b16 %v395
      %v1432 = vunpack.c.h.b16 %v395
      %v1433 = vunpack.c.l.b16 %v396
      %v1434 = vunpack.c.h.b16 %v396
      %v1435 = vunpack.c.l.b16 %v397
      %v1436 = vunpack.c.h.b16 %v397
      %v1437 = vunpack.c.l.b16 %v398
      %v1438 = vunpack.c.h.b16 %v398
      %v1439 = vunpack.c.l.b16 %v399
      %v1440 = vunpack.c.h.b16 %v399
      %v1441 = vunpack.c.l.b16 %v400
      %v1442 = vunpack.c.h.b16 %v400
      %v1443 = vunpack.c.l.b16 %v401
      %v1444 = vunpack.c.h.b16 %v401
      %v1445 = vunpack.c.l.b16 %v402
      %v1446 = vunpack.c.h.b16 %v402
      %v1447 = vunpack.c.l.b16 %v403
      %v1448 = vunpack.c.h.b16 %v403
      %v1449 = vunpack.c.l.b16 %v404
      %v1450 = vunpack.c.h.b16 %v404
      %v1451 = vunpack.c.l.b16 %v405
      %v1452 = vunpack.c.h.b16 %v405
      %v1453 = vunpack.c.l.b16 %v406
      %v1454 = vunpack.c.h.b16 %v406
      %v1455 = vunpack.c.l.b16 %v407
      %v1456 = vunpack.c.h.b16 %v407
      %v1457 = vunpack.c.l.b16 %v408
      %v1458 = vunpack.c.h.b16 %v408
      %v1459 = vunpack.c.l.b16 %v409
      %v1460 = vunpack.c.h.b16 %v409
      %v1461 = vunpack.c.l.b16 %v410
      %v1462 = vunpack.c.h.b16 %v410
      %v1463 = vunpack.c.l.b16 %v411
      %v1464 = vunpack.c.h.b16 %v411
      %v1465 = vunpack.c.l.b16 %v412
      %v1466 = vunpack.c.h.b16 %v412
      %v1467 = vunpack.c.l.b16 %v413
      %v1468 = vunpack.c.h.b16 %v413
      %v1469 = vunpack.c.l.b16 %v414
      %v1470 = vunpack.c.h.b16 %v414
      %v1471 = vunpack.c.l.b16 %v415
      %v1472 = vunpack.c.h.b16 %v415
      %v1473 = vunpack.c.l.b16 %v416
      %v1474 = vunpack.c.h.b16 %v416
      %v1475 = vunpack.c.l.b16 %v417
      %v1476 = vunpack.c.h.b16 %v417
      %v1477 = vunpack.c.l.b16 %v418
      %v1478 = vunpack.c.h.b16 %v418
      %v1479 = vunpack.c.l.b16 %v419
      %v1480 = vunpack.c.h.b16 %v419
      %v1481 = vunpack.c.l.b16 %v420
      %v1482 = vunpack.c.h.b16 %v420
      %v1483 = vunpack.c.l.b16 %v421
      %v1484 = vunpack.c.h.b16 %v421
      %v1485 = vunpack.c.l.b16 %v422
      %v1486 = vunpack.c.h.b16 %v422
      %v1487 = vunpack.c.l.b16 %v423
      %v1488 = vunpack.c.h.b16 %v423
      %v1489 = vunpack.c.l.b16 %v424
      %v1490 = vunpack.c.h.b16 %v424
      %v1491 = vunpack.c.l.b16 %v425
      %v1492 = vunpack.c.h.b16 %v425
      %v1493 = vunpack.c.l.b16 %v426
      %v1494 = vunpack.c.h.b16 %v426
      %v1495 = vunpack.c.l.b16 %v427
      %v1496 = vunpack.c.h.b16 %v427
      %v1497 = vunpack.c.l.b16 %v428
      %v1498 = vunpack.c.h.b16 %v428
      %v1499 = vunpack.c.l.b16 %v429
      %v1500 = vunpack.c.h.b16 %v429
      %v1501 = vunpack.c.l.b16 %v430
      %v1502 = vunpack.c.h.b16 %v430
      %v1503 = vunpack.c.l.b16 %v431
      %v1504 = vunpack.c.h.b16 %v431
      %v1505 = vunpack.c.l.b16 %v432
      %v1506 = vunpack.c.h.b16 %v432
      %v1507 = vunpack.c.l.b16 %v433
      %v1508 = vunpack.c.h.b16 %v433
      %v1509 = vunpack.c.l.b16 %v434
      %v1510 = vunpack.c.h.b16 %v434
      %v1511 = vunpack.c.l.b16 %v435
      %v1512 = vunpack.c.h.b16 %v435
      %v1513 = vunpack.c.l.b16 %v436
      %v1514 = vunpack.c.h.b16 %v436
      %v1515 = vunpack.c.l.b16 %v437
      %v1516 = vunpack.c.h.b16 %v437
      %v1517 = vunpack.c.l.b16 %v438
      %v1518 = vunpack.c.h.b16 %v438
      %v1519 = vunpack.c.l.b16 %v439
      %v1520 = vunpack.c.h.b16 %v439
      %v1521 = vunpack.c.l.b16 %v440
      %v1522 = vunpack.c.h.b16 %v440
      %v1523 = vunpack.c.l.b16 %v441
      %v1524 = vunpack.c.h.b16 %v441
      %v1525 = vunpack.c.l.b16 %v442
      %v1526 = vunpack.c.h.b16 %v442
      %v1527 = vunpack.c.l.b16 %v443
      %v1528 = vunpack.c.h.b16 %v443
      %v1529 = vunpack.c.l.b16 %v444
      %v1530 = vunpack.c.h.b16 %v444
      %v1531 = vunpack.c.l.b16 %v445
      %v1532 = vunpack.c.h.b16 %v445
      %v1533 = vunpack.c.l.b16 %v446
      %v1534 = vunpack.c.h.b16 %v446
      %v1535 = vunpack.c.l.b16 %v447
      %v1536 = vunpack.c.h.b16 %v447
      %v1537 = vunpack.c.l.b16 %v448
      %v1538 = vunpack.c.h.b16 %v448
      %v1539 = vunpack.c.l.b16 %v449
      %v1540 = vunpack.c.h.b16 %v449
      %v1541 = vunpack.c.l.b16 %v450
      %v1542 = vunpack.c.h.b16 %v450
      %v1543 = vunpack.c.l.b16 %v451
      %v1544 = vunpack.c.h.b16 %v451
      %v1545 = vunpack.c.l.b16 %v452
      %v1546 = vunpack.c.h.b16 %v452
      %v1547 = vunpack.c.l.b16 %v453
      %v1548 = vunpack.c.h.b16 %v453
      %v1549 = vunpack.c.l.b16 %v454
      %v1550 = vunpack.c.h.b16 %v454
      %v1551 = vunpack.c.l.b16 %v455
      %v1552 = vunpack.c.h.b16 %v455
      %v1553 = vunpack.c.l.b16 %v456
      %v1554 = vunpack.c.h.b16 %v456
      %v1555 = vunpack.c.l.b16 %v457
      %v1556 = vunpack.c.h.b16 %v457
      %v1557 = vunpack.c.l.b16 %v458
      %v1558 = vunpack.c.h.b16 %v458
      %v1559 = vunpack.c.l.b16 %v459
      %v1560 = vunpack.c.h.b16 %v459
      %v1561 = vunpack.c.l.b16 %v460
      %v1562 = vunpack.c.h.b16 %v460
      %v1563 = vunpack.c.l.b16 %v461
      %v1564 = vunpack.c.h.b16 %v461
      %v1565 = vunpack.c.l.b16 %v462
      %v1566 = vunpack.c.h.b16 %v462
      %v1567 = vunpack.c.l.b16 %v463
      %v1568 = vunpack.c.h.b16 %v463
      %v1569 = vunpack.c.l.b16 %v464
      %v1570 = vunpack.c.h.b16 %v464
      %v1571 = vunpack.c.l.b16 %v465
      %v1572 = vunpack.c.h.b16 %v465
      %v1573 = vunpack.c.l.b16 %v466
      %v1574 = vunpack.c.h.b16 %v466
      %v1575 = vunpack.c.l.b16 %v467
      %v1576 = vunpack.c.h.b16 %v467
      %v1577 = vunpack.c.l.b16 %v468
      %v1578 = vunpack.c.h.b16 %v468
      %v1579 = vunpack.c.l.b16 %v469
      %v1580 = vunpack.c.h.b16 %v469
      %v1581 = vunpack.c.l.b16 %v470
      %v1582 = vunpack.c.h.b16 %v470
      %v1583 = vunpack.c.l.b16 %v471
      %v1584 = vunpack.c.h.b16 %v471
      %v1585 = vunpack.c.l.b16 %v472
      %v1586 = vunpack.c.h.b16 %v472
      %v1587 = vunpack.c.l.b16 %v473
      %v1588 = vunpack.c.h.b16 %v473
      %v1589 = vunpack.c.l.b16 %v474
      %v1590 = vunpack.c.h.b16 %v474
      %v1591 = vunpack.c.l.b16 %v475
      %v1592 = vunpack.c.h.b16 %v475
      %v1593 = vunpack.c.l.b16 %v476
      %v1594 = vunpack.c.h.b16 %v476
      %v1595 = vunpack.c.l.b16 %v477
      %v1596 = vunpack.c.h.b16 %v477
      %v1597 = vunpack.c.l.b16 %v478
      %v1598 = vunpack.c.h.b16 %v478
      %v1599 = vunpack.c.l.b16 %v479
      %v1600 = vunpack.c.h.b16 %v479
      %v1601 = vunpack.c.l.b16 %v480
      %v1602 = vunpack.c.h.b16 %v480
      %v1603 = vunpack.c.l.b16 %v481
      %v1604 = vunpack.c.h.b16 %v481
      %v1605 = vunpack.c.l.b16 %v482
      %v1606 = vunpack.c.h.b16 %v482
      %v1607 = vunpack.c.l.b16 %v483
      %v1608 = vunpack.c.h.b16 %v483
      %v1609 = vunpack.c.l.b16 %v484
      %v1610 = vunpack.c.h.b16 %v484
      %v1611 = vunpack.c.l.b16 %v485
      %v1612 = vunpack.c.h.b16 %v485
      %v1613 = vunpack.c.l.b16 %v486
      %v1614 = vunpack.c.h.b16 %v486
      %v1615 = vunpack.c.l.b16 %v487
      %v1616 = vunpack.c.h.b16 %v487
      %v1617 = vunpack.c.l.b16 %v488
      %v1618 = vunpack.c.h.b16 %v488
      %v1619 = vunpack.c.l.b16 %v489
      %v1620 = vunpack.c.h.b16 %v489
      %v1621 = vunpack.c.l.b16 %v490
      %v1622 = vunpack.c.h.b16 %v490
      %v1623 = vunpack.c.l.b16 %v491
      %v1624 = vunpack.c.h.b16 %v491
      %v1625 = vunpack.c.l.b16 %v492
      %v1626 = vunpack.c.h.b16 %v492
      %v1627 = vunpack.c.l.b16 %v493
      %v1628 = vunpack.c.h.b16 %v493
      %v1629 = vunpack.c.l.b16 %v494
      %v1630 = vunpack.c.h.b16 %v494
      %v1631 = vunpack.c.l.b16 %v495
      %v1632 = vunpack.c.h.b16 %v495
      %v1633 = vunpack.c.l.b16 %v496
      %v1634 = vunpack.c.h.b16 %v496
      %v1635 = vunpack.c.l.b16 %v497
      %v1636 = vunpack.c.h.b16 %v497
      %v1637 = vunpack.c.l.b16 %v498
      %v1638 = vunpack.c.h.b16 %v498
      %v1639 = vunpack.c.l.b16 %v499
      %v1640 = vunpack.c.h.b16 %v499
      %v1641 = vunpack.c.l.b16 %v500
      %v1642 = vunpack.c.h.b16 %v500
      %v1643 = vunpack.c.l.b16 %v501
      %v1644 = vunpack.c.h.b16 %v501
      %v1645 = vunpack.c.l.b16 %v502
      %v1646 = vunpack.c.h.b16 %v502
      %v1647 = vunpack.c.l.b16 %v503
      %v1648 = vunpack.c.h.b16 %v503
      %v1649 = vunpack.c.l.b16 %v504
      %v1650 = vunpack.c.h.b16 %v504
      %v1651 = vunpack.c.l.b16 %v505
      %v1652 = vunpack.c.h.b16 %v505
      %v1653 = vunpack.c.l.b16 %v506
      %v1654 = vunpack.c.h.b16 %v506
      %v1655 = vunpack.c.l.b16 %v507
      %v1656 = vunpack.c.h.b16 %v507
      %v1657 = vunpack.c.l.b16 %v508
      %v1658 = vunpack.c.h.b16 %v508
      %v1659 = vunpack.c.l.b16 %v509
      %v1660 = vunpack.c.h.b16 %v509
      %v1661 = vunpack.c.l.b16 %v510
      %v1662 = vunpack.c.h.b16 %v510
      %v1663 = vunpack.c.l.b16 %v511
      %v1664 = vunpack.c.h.b16 %v511
      %v1665 = vunpack.c.l.b16 %v512
      %v1666 = vunpack.c.h.b16 %v512
      %v1667 = vunpack.c.l.b16 %v513
      %v1668 = vunpack.c.h.b16 %v513
      %v1669 = vunpack.c.l.b16 %v514
      %v1670 = vunpack.c.h.b16 %v514
      %v1671 = vunpack.c.l.b16 %v515
      %v1672 = vunpack.c.h.b16 %v515
      %v1673 = vunpack.c.l.b16 %v516
      %v1674 = vunpack.c.h.b16 %v516
      %v1675 = vunpack.c.l.b16 %v517
      %v1676 = vunpack.c.h.b16 %v517
      %v1677 = vunpack.c.l.b16 %v518
      %v1678 = vunpack.c.h.b16 %v518
      %v1679 = vunpack.c.l.b16 %v519
      %v1680 = vunpack.c.h.b16 %v519
      %v1681 = vunpack.c.l.b16 %v520
      %v1682 = vunpack.c.h.b16 %v520
      %v1683 = vunpack.c.l.b16 %v521
      %v1684 = vunpack.c.h.b16 %v521
      %v1685 = vunpack.c.l.b16 %v522
      %v1686 = vunpack.c.h.b16 %v522
      %v1687 = vunpack.c.l.b16 %v523
      %v1688 = vunpack.c.h.b16 %v523
      %v1689 = vunpack.c.l.b16 %v524
      %v1690 = vunpack.c.h.b16 %v524
      %v1691 = vunpack.c.l.b16 %v525
      %v1692 = vunpack.c.h.b16 %v525
      %v1693 = vunpack.c.l.b16 %v526
      %v1694 = vunpack.c.h.b16 %v526
      %v1695 = vunpack.c.l.b16 %v527
      %v1696 = vunpack.c.h.b16 %v527
      %v1697 = vunpack.c.l.b16 %v528
      %v1698 = vunpack.c.h.b16 %v528
      %v1699 = vunpack.c.l.b16 %v529
      %v1700 = vunpack.c.h.b16 %v529
      %v1701 = vunpack.c.l.b16 %v530
      %v1702 = vunpack.c.h.b16 %v530
      %v1703 = vunpack.c.l.b16 %v531
      %v1704 = vunpack.c.h.b16 %v531
      %v1705 = vunpack.c.l.b16 %v532
      %v1706 = vunpack.c.h.b16 %v532
      %v1707 = vunpack.c.l.b16 %v533
      %v1708 = vunpack.c.h.b16 %v533
      %v1709 = vunpack.c.l.b16 %v534
      %v1710 = vunpack.c.h.b16 %v534
      %v1711 = vunpack.c.l.b16 %v535
      %v1712 = vunpack.c.h.b16 %v535
      %v1713 = vunpack.c.l.b16 %v536
      %v1714 = vunpack.c.h.b16 %v536
      %v1715 = vunpack.c.l.b16 %v537
      %v1716 = vunpack.c.h.b16 %v537
      %v1717 = vunpack.c.l.b16 %v538
      %v1718 = vunpack.c.h.b16 %v538
      %v1719 = vunpack.c.l.b16 %v539
      %v1720 = vunpack.c.h.b16 %v539
      %v1721 = vunpack.c.l.b16 %v540
      %v1722 = vunpack.c.h.b16 %v540
      %v1723 = vunpack.c.l.b16 %v541
      %v1724 = vunpack.c.h.b16 %v541
      %v1725 = vunpack.c.l.b16 %v542
      %v1726 = vunpack.c.h.b16 %v542
      %v1727 = vunpack.c.l.b16 %v543
      %v1728 = vunpack.c.h.b16 %v543
      %v1729 = vunpack.c.l.b16 %v544
      %v1730 = vunpack.c.h.b16 %v544
      %v1731 = vunpack.c.l.b16 %v545
      %v1732 = vunpack.c.h.b16 %v545
      %v1733 = vunpack.c.l.b16 %v546
      %v1734 = vunpack.c.h.b16 %v546
      %v1735 = vunpack.c.l.b16 %v547
      %v1736 = vunpack.c.h.b16 %v547
      %v1737 = vunpack.c.l.b16 %v548
      %v1738 = vunpack.c.h.b16 %v548
      %v1739 = vunpack.c.l.b16 %v549
      %v1740 = vunpack.c.h.b16 %v549
      %v1741 = vunpack.c.l.b16 %v550
      %v1742 = vunpack.c.h.b16 %v550
      %v1743 = vunpack.c.l.b16 %v551
      %v1744 = vunpack.c.h.b16 %v551
      %v1745 = vunpack.c.l.b16 %v552
      %v1746 = vunpack.c.h.b16 %v552
      %v1747 = vunpack.c.l.b16 %v553
      %v1748 = vunpack.c.h.b16 %v553
      %v1749 = vunpack.c.l.b16 %v554
      %v1750 = vunpack.c.h.b16 %v554
      %v1751 = vunpack.c.l.b16 %v555
      %v1752 = vunpack.c.h.b16 %v555
      %v1753 = vunpack.c.l.b16 %v556
      %v1754 = vunpack.c.h.b16 %v556
      %v1755 = vunpack.c.l.b16 %v557
      %v1756 = vunpack.c.h.b16 %v557
      %v1757 = vunpack.c.l.b16 %v558
      %v1758 = vunpack.c.h.b16 %v558
      %v1759 = vunpack.c.l.b16 %v559
      %v1760 = vunpack.c.h.b16 %v559
      %v1761 = vunpack.c.l.b16 %v560
      %v1762 = vunpack.c.h.b16 %v560
      %v1763 = vunpack.c.l.b16 %v561
      %v1764 = vunpack.c.h.b16 %v561
      %v1765 = vunpack.c.l.b16 %v562
      %v1766 = vunpack.c.h.b16 %v562
      %v1767 = vunpack.c.l.b16 %v563
      %v1768 = vunpack.c.h.b16 %v563
      %v1769 = vunpack.c.l.b16 %v564
      %v1770 = vunpack.c.h.b16 %v564
      %v1771 = vunpack.c.l.b16 %v565
      %v1772 = vunpack.c.h.b16 %v565
      %v1773 = vunpack.c.l.b16 %v566
      %v1774 = vunpack.c.h.b16 %v566
      %v1775 = vunpack.c.l.b16 %v567
      %v1776 = vunpack.c.h.b16 %v567
      %v1777 = vunpack.c.l.b16 %v568
      %v1778 = vunpack.c.h.b16 %v568
      %v1779 = vunpack.c.l.b16 %v569
      %v1780 = vunpack.c.h.b16 %v569
      %v1781 = vunpack.c.l.b16 %v570
      %v1782 = vunpack.c.h.b16 %v570
      %v1783 = vunpack.c.l.b16 %v571
      %v1784 = vunpack.c.h.b16 %v571
      %v1785 = vunpack.c.l.b16 %v572
      %v1786 = vunpack.c.h.b16 %v572
      %v1787 = vunpack.c.l.b16 %v573
      %v1788 = vunpack.c.h.b16 %v573
      %v1789 = vunpack.c.l.b16 %v574
      %v1790 = vunpack.c.h.b16 %v574
      %v1791 = vpack.c.b16 %v1035, %v1023
      %v1792 = vpack.c.b16 %v1036, %v1024
      %v1793 = vpack.c.b16 %v1037, %v1025
      %v1794 = vpack.c.b16 %v1038, %v1026
      %v1795 = vpack.c.b16 %v1039, %v1027
      %v1796 = vpack.c.b16 %v1040, %v1028
      %v1797 = vpack.c.b16 %v1041, %v1029
      %v1798 = vpack.c.b16 %v1042, %v1030
      %v1799 = vpack.c.b16 %v1043, %v1031
      %v1800 = vpack.c.b16 %v1044, %v1032
      %v1801 = vpack.c.b16 %v1045, %v1033
      %v1802 = vpack.c.b16 %v1046, %v1034
      %v1803 = vpack.c.b16 %v1059, %v1047
      %v1804 = vpack.c.b16 %v1060, %v1048
      %v1805 = vpack.c.b16 %v1061, %v1049
      %v1806 = vpack.c.b16 %v1062, %v1050
      %v1807 = vpack.c.b16 %v1063, %v1051
      %v1808 = vpack.c.b16 %v1064, %v1052
      %v1809 = vpack.c.b16 %v1065, %v1053
      %v1810 = vpack.c.b16 %v1066, %v1054
      %v1811 = vpack.c.b16 %v1067, %v1055
      %v1812 = vpack.c.b16 %v1068, %v1056
      %v1813 = vpack.c.b16 %v1069, %v1057
      %v1814 = vpack.c.b16 %v1070, %v1058
      %v1815 = vpack.c.b16 %v1083, %v1071
      %v1816 = vpack.c.b16 %v1084, %v1072
      %v1817 = vpack.c.b16 %v1085, %v1073
      %v1818 = vpack.c.b16 %v1086, %v1074
      %v1819 = vpack.c.b16 %v1087, %v1075
      %v1820 = vpack.c.b16 %v1088, %v1076
      %v1821 = vpack.c.b16 %v1089, %v1077
      %v1822 = vpack.c.b16 %v1090, %v1078
      %v1823 = vpack.c.b16 %v1091, %v1079
      %v1824 = vpack.c.b16 %v1092, %v1080
      %v1825 = vpack.c.b16 %v1093, %v1081
      %v1826 = vpack.c.b16 %v1094, %v1082
      %v1827 = vpack.c.b16 %v1107, %v1095
      %v1828 = vpack.c.b16 %v1108, %v1096
      %v1829 = vpack.c.b16 %v1109, %v1097
      %v1830 = vpack.c.b16 %v1110, %v1098
      %v1831 = vpack.c.b16 %v1111, %v1099
      %v1832 = vpack.c.b16 %v1112, %v1100
      %v1833 = vpack.c.b16 %v1113, %v1101
      %v1834 = vpack.c.b16 %v1114, %v1102
      %v1835 = vpack.c.b16 %v1115, %v1103
      %v1836 = vpack.c.b16 %v1116, %v1104
      %v1837 = vpack.c.b16 %v1117, %v1105
      %v1838 = vpack.c.b16 %v1118, %v1106
      %v1839 = vpack.c.b16 %v1131, %v1119
      %v1840 = vpack.c.b16 %v1132, %v1120
      %v1841 = vpack.c.b16 %v1133, %v1121
      %v1842 = vpack.c.b16 %v1134, %v1122
      %v1843 = vpack.c.b16 %v1135, %v1123
      %v1844 = vpack.c.b16 %v1136, %v1124
      %v1845 = vpack.c.b16 %v1137, %v1125
      %v1846 = vpack.c.b16 %v1138, %v1126
      %v1847 = vpack.c.b16 %v1139, %v1127
      %v1848 = vpack.c.b16 %v1140, %v1128
      %v1849 = vpack.c.b16 %v1141, %v1129
      %v1850 = vpack.c.b16 %v1142, %v1130
      %v1851 = vpack.c.b16 %v1155, %v1143
      %v1852 = vpack.c.b16 %v1156, %v1144
      %v1853 = vpack.c.b16 %v1157, %v1145
      %v1854 = vpack.c.b16 %v1158, %v1146
      %v1855 = vpack.c.b16 %v1159, %v1147
      %v1856 = vpack.c.b16 %v1160, %v1148
      %v1857 = vpack.c.b16 %v1161, %v1149
      %v1858 = vpack.c.b16 %v1162, %v1150
      %v1859 = vpack.c.b16 %v1163, %v1151
      %v1860 = vpack.c.b16 %v1164, %v1152
      %v1861 = vpack.c.b16 %v1165, %v1153
      %v1862 = vpack.c.b16 %v1166, %v1154
      %v1863 = vpack.c.b16 %v1179, %v1167
      %v1864 = vpack.c.b16 %v1180, %v1168
      %v1865 = vpack.c.b16 %v1181, %v1169
      %v1866 = vpack.c.b16 %v1182, %v1170
      %v1867 = vpack.c.b16 %v1183, %v1171
      %v1868 = vpack.c.b16 %v1184, %v1172
      %v1869 = vpack.c.b16 %v1185, %v1173
      %v1870 = vpack.c.b16 %v1186, %v1174
      %v1871 = vpack.c.b16 %v1187, %v1175
      %v1872 = vpack.c.b16 %v1188, %v1176
      %v1873 = vpack.c.b16 %v1189, %v1177
      %v1874 = vpack.c.b16 %v1190, %v1178
      %v1875 = vpack.c.b16 %v1203, %v1191
      %v1876 = vpack.c.b16 %v1204, %v1192
      %v1877 = vpack.c.b16 %v1205, %v1193
      %v1878 = vpack.c.b16 %v1206, %v1194
      %v1879 = vpack.c.b16 %v1207, %v1195
      %v1880 = vpack.c.b16 %v1208, %v1196
      %v1881 = vpack.c.b16 %v1209, %v1197
      %v1882 = vpack.c.b16 %v1210, %v1198
      %v1883 = vpack.c.b16 %v1211, %v1199
      %v1884 = vpack.c.b16 %v1212, %v1200
      %v1885 = vpack.c.b16 %v1213, %v1201
      %v1886 = vpack.c.b16 %v1214, %v1202
      %v1887 = vpack.c.b16 %v1227, %v1215
      %v1888 = vpack.c.b16 %v1228, %v1216
      %v1889 = vpack.c.b16 %v1229, %v1217
      %v1890 = vpack.c.b16 %v1230, %v1218
      %v1891 = vpack.c.b16 %v1231, %v1219
      %v1892 = vpack.c.b16 %v1232, %v1220
      %v1893 = vpack.c.b16 %v1233, %v1221
      %v1894 = vpack.c.b16 %v1234, %v1222
      %v1895 = vpack.c.b16 %v1235, %v1223
      %v1896 = vpack.c.b16 %v1236, %v1224
      %v1897 = vpack.c.b16 %v1237, %v1225
      %v1898 = vpack.c.b16 %v1238, %v1226
      %v1899 = vpack.c.b16 %v1251, %v1239
      %v1900 = vpack.c.b16 %v1252, %v1240
      %v1901 = vpack.c.b16 %v1253, %v1241
      %v1902 = vpack.c.b16 %v1254, %v1242
      %v1903 = vpack.c.b16 %v1255, %v1243
      %v1904 = vpack.c.b16 %v1256, %v1244
      %v1905 = vpack.c.b16 %v1257, %v1245
      %v1906 = vpack.c.b16 %v1258, %v1246
      %v1907 = vpack.c.b16 %v1259, %v1247
      %v1908 = vpack.c.b16 %v1260, %v1248
      %v1909 = vpack.c.b16 %v1261, %v1249
      %v1910 = vpack.c.b16 %v1262, %v1250
      %v1911 = vpack.c.b16 %v1275, %v1263
      %v1912 = vpack.c.b16 %v1276, %v1264
      %v1913 = vpack.c.b16 %v1277, %v1265
      %v1914 = vpack.c.b16 %v1278, %v1266
      %v1915 = vpack.c.b16 %v1279, %v1267
      %v1916 = vpack.c.b16 %v1280, %v1268
      %v1917 = vpack.c.b16 %v1281, %v1269
      %v1918 = vpack.c.b16 %v1282, %v1270
      %v1919 = vpack.c.b16 %v1283, %v1271
      %v1920 = vpack.c.b16 %v1284, %v1272
      %v1921 = vpack.c.b16 %v1285, %v1273
      %v1922 = vpack.c.b16 %v1286, %v1274
      %v1923 = vpack.c.b16 %v1299, %v1287
      %v1924 = vpack.c.b16 %v1300, %v1288
      %v1925 = vpack.c.b16 %v1301, %v1289
      %v1926 = vpack.c.b16 %v1302, %v1290
      %v1927 = vpack.c.b16 %v1303, %v1291
      %v1928 = vpack.c.b16 %v1304, %v1292
      %v1929 = vpack.c.b16 %v1305, %v1293
      %v1930 = vpack.c.b16 %v1306, %v1294
      %v1931 = vpack.c.b16 %v1307, %v1295
      %v1932 = vpack.c.b16 %v1308, %v1296
      %v1933 = vpack.c.b16 %v1309, %v1297
      %v1934 = vpack.c.b16 %v1310, %v1298
      %v1935 = vpack.c.b16 %v1323, %v1311
      %v1936 = vpack.c.b16 %v1324, %v1312
      %v1937 = vpack.c.b16 %v1325, %v1313
      %v1938 = vpack.c.b16 %v1326, %v1314
      %v1939 = vpack.c.b16 %v1327, %v1315
      %v1940 = vpack.c.b16 %v1328, %v1316
      %v1941 = vpack.c.b16 %v1329, %v1317
      %v1942 = vpack.c.b16 %v1330, %v1318
      %v1943 = vpack.c.b16 %v1331, %v1319
      %v1944 = vpack.c.b16 %v1332, %v1320
      %v1945 = vpack.c.b16 %v1333, %v1321
      %v1946 = vpack.c.b16 %v1334, %v1322
      %v1947 = vpack.c.b16 %v1347, %v1335
      %v1948 = vpack.c.b16 %v1348, %v1336
      %v1949 = vpack.c.b16 %v1349, %v1337
      %v1950 = vpack.c.b16 %v1350, %v1338
      %v1951 = vpack.c.b16 %v1351, %v1339
      %v1952 = vpack.c.b16 %v1352, %v1340
      %v1953 = vpack.c.b16 %v1353, %v1341
      %v1954 = vpack.c.b16 %v1354, %v1342
      %v1955 = vpack.c.b16 %v1355, %v1343
      %v1956 = vpack.c.b16 %v1356, %v1344
      %v1957 = vpack.c.b16 %v1357, %v1345
      %v1958 = vpack.c.b16 %v1358, %v1346
      %v1959 = vpack.c.b16 %v1371, %v1359
      %v1960 = vpack.c.b16 %v1372, %v1360
      %v1961 = vpack.c.b16 %v1373, %v1361
      %v1962 = vpack.c.b16 %v1374, %v1362
      %v1963 = vpack.c.b16 %v1375, %v1363
      %v1964 = vpack.c.b16 %v1376, %v1364
      %v1965 = vpack.c.b16 %v1377, %v1365
      %v1966 = vpack.c.b16 %v1378, %v1366
      %v1967 = vpack.c.b16 %v1379, %v1367
      %v1968 = vpack.c.b16 %v1380, %v1368
      %v1969 = vpack.c.b16 %v1381, %v1369
      %v1970 = vpack.c.b16 %v1382, %v1370
      %v1971 = vpack.c.b16 %v1395, %v1383
      %v1972 = vpack.c.b16 %v1396, %v1384
      %v1973 = vpack.c.b16 %v1397, %v1385
      %v1974 = vpack.c.b16 %v1398, %v1386
      %v1975 = vpack.c.b16 %v1399, %v1387
      %v1976 = vpack.c.b16 %v1400, %v1388
      %v1977 = vpack.c.b16 %v1401, %v1389
      %v1978 = vpack.c.b16 %v1402, %v1390
      %v1979 = vpack.c.b16 %v1403, %v1391
      %v1980 = vpack.c.b16 %v1404, %v1392
      %v1981 = vpack.c.b16 %v1405, %v1393
      %v1982 = vpack.c.b16 %v1406, %v1394
      %v1983 = vpack.c.b16 %v1419, %v1407
      %v1984 = vpack.c.b16 %v1420, %v1408
      %v1985 = vpack.c.b16 %v1421, %v1409
      %v1986 = vpack.c.b16 %v1422, %v1410
      %v1987 = vpack.c.b16 %v1423, %v1411
      %v1988 = vpack.c.b16 %v1424, %v1412
      %v1989 = vpack.c.b16 %v1425, %v1413
      %v1990 = vpack.c.b16 %v1426, %v1414
      %v1991 = vpack.c.b16 %v1427, %v1415
      %v1992 = vpack.c.b16 %v1428, %v1416
      %v1993 = vpack.c.b16 %v1429, %v1417
      %v1994 = vpack.c.b16 %v1430, %v1418
      %v1995 = vpack.c.b16 %v1443, %v1431
      %v1996 = vpack.c.b16 %v1444, %v1432
      %v1997 = vpack.c.b16 %v1445, %v1433
      %v1998 = vpack.c.b16 %v1446, %v1434
      %v1999 = vpack.c.b16 %v1447, %v1435
      %v2000 = vpack.c.b16 %v1448, %v1436
      %v2001 = vpack.c.b16 %v1449, %v1437
      %v2002 = vpack.c.b16 %v1450, %v1438
      %v2003 = vpack.c.b16 %v1451, %v1439
      %v2004 = vpack.c.b16 %v1452, %v1440
      %v2005 = vpack.c.b16 %v1453, %v1441
      %v2006 = vpack.c.b16 %v1454, %v1442
      %v2007 = vpack.c.b16 %v1467, %v1455
      %v2008 = vpack.c.b16 %v1468, %v1456
      %v2009 = vpack.c.b16 %v1469, %v1457
      %v2010 = vpack.c.b16 %v1470, %v1458
      %v2011 = vpack.c.b16 %v1471, %v1459
      %v2012 = vpack.c.b16 %v1472, %v1460
      %v2013 = vpack.c.b16 %v1473, %v1461
      %v2014 = vpack.c.b16 %v1474, %v1462
      %v2015 = vpack.c.b16 %v1475, %v1463
      %v2016 = vpack.c.b16 %v1476, %v1464
      %v2017 = vpack.c.b16 %v1477, %v1465
      %v2018 = vpack.c.b16 %v1478, %v1466
      %v2019 = vpack.c.b16 %v1491, %v1479
      %v2020 = vpack.c.b16 %v1492, %v1480
      %v2021 = vpack.c.b16 %v1493, %v1481
      %v2022 = vpack.c.b16 %v1494, %v1482
      %v2023 = vpack.c.b16 %v1495, %v1483
      %v2024 = vpack.c.b16 %v1496, %v1484
      %v2025 = vpack.c.b16 %v1497, %v1485
      %v2026 = vpack.c.b16 %v1498, %v1486
      %v2027 = vpack.c.b16 %v1499, %v1487
      %v2028 = vpack.c.b16 %v1500, %v1488
      %v2029 = vpack.c.b16 %v1501, %v1489
      %v2030 = vpack.c.b16 %v1502, %v1490
      %v2031 = vpack.c.b16 %v1515, %v1503
      %v2032 = vpack.c.b16 %v1516, %v1504
      %v2033 = vpack.c.b16 %v1517, %v1505
      %v2034 = vpack.c.b16 %v1518, %v1506
      %v2035 = vpack.c.b16 %v1519, %v1507
      %v2036 = vpack.c.b16 %v1520, %v1508
      %v2037 = vpack.c.b16 %v1521, %v1509
      %v2038 = vpack.c.b16 %v1522, %v1510
      %v2039 = vpack.c.b16 %v1523, %v1511
      %v2040 = vpack.c.b16 %v1524, %v1512
      %v2041 = vpack.c.b16 %v1525, %v1513
      %v2042 = vpack.c.b16 %v1526, %v1514
      %v2043 = vpack.c.b16 %v1539, %v1527
      %v2044 = vpack.c.b16 %v1540, %v1528
      %v2045 = vpack.c.b16 %v1541, %v1529
      %v2046 = vpack.c.b16 %v1542, %v1530
      %v2047 = vpack.c.b16 %v1543, %v1531
      %v2048 = vpack.c.b16 %v1544, %v1532
      %v2049 = vpack.c.b16 %v1545, %v1533
      %v2050 = vpack.c.b16 %v1546, %v1534
      %v2051 = vpack.c.b16 %v1547, %v1535
      %v2052 = vpack.c.b16 %v1548, %v1536
      %v2053 = vpack.c.b16 %v1549, %v1537
      %v2054 = vpack.c.b16 %v1550, %v1538
      %v2055 = vpack.c.b16 %v1563, %v1551
      %v2056 = vpack.c.b16 %v1564, %v1552
      %v2057 = vpack.c.b16 %v1565, %v1553
      %v2058 = vpack.c.b16 %v1566, %v1554
      %v2059 = vpack.c.b16 %v1567, %v1555
      %v2060 = vpack.c.b16 %v1568, %v1556
      %v2061 = vpack.c.b16 %v1569, %v1557
      %v2062 = vpack.c.b16 %v1570, %v1558
      %v2063 = vpack.c.b16 %v1571, %v1559
      %v2064 = vpack.c.b16 %v1572, %v1560
      %v2065 = vpack.c.b16 %v1573, %v1561
      %v2066 = vpack.c.b16 %v1574, %v1562
      %v2067 = vpack.c.b16 %v1587, %v1575
      %v2068 = vpack.c.b16 %v1588, %v1576
      %v2069 = vpack.c.b16 %v1589, %v1577
      %v2070 = vpack.c.b16 %v1590, %v1578
      %v2071 = vpack.c.b16 %v1591, %v1579
      %v2072 = vpack.c.b16 %v1592, %v1580
      %v2073 = vpack.c.b16 %v1593, %v1581
      %v2074 = vpack.c.b16 %v1594, %v1582
      %v2075 = vpack.c.b16 %v1595, %v1583
      %v2076 = vpack.c.b16 %v1596, %v1584
      %v2077 = vpack.c.b16 %v1597, %v1585
      %v2078 = vpack.c.b16 %v1598, %v1586
      %v2079 = vpack.c.b16 %v1611, %v1599
      %v2080 = vpack.c.b16 %v1612, %v1600
      %v2081 = vpack.c.b16 %v1613, %v1601
      %v2082 = vpack.c.b16 %v1614, %v1602
      %v2083 = vpack.c.b16 %v1615, %v1603
      %v2084 = vpack.c.b16 %v1616, %v1604
      %v2085 = vpack.c.b16 %v1617, %v1605
      %v2086 = vpack.c.b16 %v1618, %v1606
      %v2087 = vpack.c.b16 %v1619, %v1607
      %v2088 = vpack.c.b16 %v1620, %v1608
      %v2089 = vpack.c.b16 %v1621, %v1609
      %v2090 = vpack.c.b16 %v1622, %v1610
      %v2091 = vpack.c.b16 %v1635, %v1623
      %v2092 = vpack.c.b16 %v1636, %v1624
      %v2093 = vpack.c.b16 %v1637, %v1625
      %v2094 = vpack.c.b16 %v1638, %v1626
      %v2095 = vpack.c.b16 %v1639, %v1627
      %v2096 = vpack.c.b16 %v1640, %v1628
      %v2097 = vpack.c.b16 %v1641, %v1629
      %v2098 = vpack.c.b16 %v1642, %v1630
      %v2099 = vpack.c.b16 %v1643, %v1631
      %v2100 = vpack.c.b16 %v1644, %v1632
      %v2101 = vpack.c.b16 %v1645, %v1633
      %v2102 = vpack.c.b16 %v1646, %v1634
      %v2103 = vpack.c.b16 %v1659, %v1647
      %v2104 = vpack.c.b16 %v1660, %v1648
      %v2105 = vpack.c.b16 %v1661, %v1649
      %v2106 = vpack.c.b16 %v1662, %v1650
      %v2107 = vpack.c.b16 %v1663, %v1651
      %v2108 = vpack.c.b16 %v1664, %v1652
      %v2109 = vpack.c.b16 %v1665, %v1653
      %v2110 = vpack.c.b16 %v1666, %v1654
      %v2111 = vpack.c.b16 %v1667, %v1655
      %v2112 = vpack.c.b16 %v1668, %v1656
      %v2113 = vpack.c.b16 %v1669, %v1657
      %v2114 = vpack.c.b16 %v1670, %v1658
      %v2115 = vpack.c.b16 %v1683, %v1671
      %v2116 = vpack.c.b16 %v1684, %v1672
      %v2117 = vpack.c.b16 %v1685, %v1673
      %v2118 = vpack.c.b16 %v1686, %v1674
      %v2119 = vpack.c.b16 %v1687, %v1675
      %v2120 = vpack.c.b16 %v1688, %v1676
      %v2121 = vpack.c.b16 %v1689, %v1677
      %v2122 = vpack.c.b16 %v1690, %v1678
      %v2123 = vpack.c.b16 %v1691, %v1679
      %v2124 = vpack.c.b16 %v1692, %v1680
      %v2125 = vpack.c.b16 %v1693, %v1681
      %v2126 = vpack.c.b16 %v1694, %v1682
      %v2127 = vpack.c.b16 %v1707, %v1695
      %v2128 = vpack.c.b16 %v1708, %v1696
      %v2129 = vpack.c.b16 %v1709, %v1697
      %v2130 = vpack.c.b16 %v1710, %v1698
      %v2131 = vpack.c.b16 %v1711, %v1699
      %v2132 = vpack.c.b16 %v1712, %v1700
      %v2133 = vpack.c.b16 %v1713, %v1701
      %v2134 = vpack.c.b16 %v1714, %v1702
      %v2135 = vpack.c.b16 %v1715, %v1703
      %v2136 = vpack.c.b16 %v1716, %v1704
      %v2137 = vpack.c.b16 %v1717, %v1705
      %v2138 = vpack.c.b16 %v1718, %v1706
      %v2139 = vpack.c.b16 %v1731, %v1719
      %v2140 = vpack.c.b16 %v1732, %v1720
      %v2141 = vpack.c.b16 %v1733, %v1721
      %v2142 = vpack.c.b16 %v1734, %v1722
      %v2143 = vpack.c.b16 %v1735, %v1723
      %v2144 = vpack.c.b16 %v1736, %v1724
      %v2145 = vpack.c.b16 %v1737, %v1725
      %v2146 = vpack.c.b16 %v1738, %v1726
      %v2147 = vpack.c.b16 %v1739, %v1727
      %v2148 = vpack.c.b16 %v1740, %v1728
      %v2149 = vpack.c.b16 %v1741, %v1729
      %v2150 = vpack.c.b16 %v1742, %v1730
      %v2151 = vpack.c.b16 %v1755, %v1743
      %v2152 = vpack.c.b16 %v1756, %v1744
      %v2153 = vpack.c.b16 %v1757, %v1745
      %v2154 = vpack.c.b16 %v1758, %v1746
      %v2155 = vpack.c.b16 %v1759, %v1747
      %v2156 = vpack.c.b16 %v1760, %v1748
      %v2157 = vpack.c.b16 %v1761, %v1749
      %v2158 = vpack.c.b16 %v1762, %v1750
      %v2159 = vpack.c.b16 %v1763, %v1751
      %v2160 = vpack.c.b16 %v1764, %v1752
      %v2161 = vpack.c.b16 %v1765, %v1753
      %v2162 = vpack.c.b16 %v1766, %v1754
      %v2163 = vpack.c.b16 %v1779, %v1767
      %v2164 = vpack.c.b16 %v1780, %v1768
      %v2165 = vpack.c.b16 %v1781, %v1769
      %v2166 = vpack.c.b16 %v1782, %v1770
      %v2167 = vpack.c.b16 %v1783, %v1771
      %v2168 = vpack.c.b16 %v1784, %v1772
      %v2169 = vpack.c.b16 %v1785, %v1773
      %v2170 = vpack.c.b16 %v1786, %v1774
      %v2171 = vpack.c.b16 %v1787, %v1775
      %v2172 = vpack.c.b16 %v1788, %v1776
      %v2173 = vpack.c.b16 %v1789, %v1777
      %v2174 = vpack.c.b16 %v1790, %v1778
      %2559 = vmatprep.subr.bf16.mxu0 %v1876
      %2560 = vmatpush1.bf16.msra.mxu0 %v1875
      %2561 = vmatprep.subr.bf16.mxu0 %v1864
      %2562 = vmatpush1.bf16.msra.mxu0 %v1863
      %2563 = vmatprep.subr.bf16.mxu0 %v1852
      %2564 = vmatpush1.bf16.msra.mxu0 %v1851
      %2565 = vmatprep.subr.bf16.mxu0 %v1840
      %2566 = vmatpush1.bf16.msra.mxu0 %v1839
      %2567 = vmatprep.subr.bf16.mxu0 %v1828
      %2568 = vmatpush1.bf16.msra.mxu0 %v1827
      %2569 = vmatprep.subr.bf16.mxu0 %v1816
      %2570 = vmatpush1.bf16.msra.mxu0 %v1815
      %2571 = vmatprep.subr.bf16.mxu0 %v1804
      %2572 = vmatpush1.bf16.msra.mxu0 %v1803
      %2573 = vmatprep.subr.bf16.mxu0 %v1792
      %2574 = vmatpush1.bf16.msra.mxu0 %v1791
      %2575 = vmatprep.subr.bf16.mxu0 %v1972
      %2576 = vmatpush2.bf16.msra.mxu0 %v1971
      %2577 = vmatprep.subr.bf16.mxu0 %v1960
      %2578 = vmatpush2.bf16.msra.mxu0 %v1959
      %2579 = vmatprep.subr.bf16.mxu0 %v1948
      %2580 = vmatpush2.bf16.msra.mxu0 %v1947
      %2581 = vmatprep.subr.bf16.mxu0 %v1936
      %2582 = vmatpush2.bf16.msra.mxu0 %v1935
      %2583 = vmatprep.subr.bf16.mxu0 %v1924
      %2584 = vmatpush2.bf16.msra.mxu0 %v1923
      %2585 = vmatprep.subr.bf16.mxu0 %v1912
      %2586 = vmatpush2.bf16.msra.mxu0 %v1911
      %2587 = vmatprep.subr.bf16.mxu0 %v1900
      %2588 = vmatpush2.bf16.msra.mxu0 %v1899
      %2589 = vmatprep.subr.bf16.mxu0 %v1888
      %2590 = vmatpush2.bf16.msra.mxu0 %v1887
      %2591 = vmatprep.mubr.bf16.mxu0 %v188
      %2592 = vmatmul.mubr.bf16.gmra.mxu0 %v187
      %v2593 = vpop.f32.mrf.mxu0
      %v2594 = vadd.f32 %v582, %v2593
      %v2595 = vpop.f32.mrf.mxu0
      %v2596 = vadd.f32 %v586, %v2595
      %v2597 = vpop.f32.mrf.mxu0
      %v2598 = vadd.f32 %v582, %v2597
      %v2599 = vpop.f32.mrf.mxu0
      %v2600 = vadd.f32 %v586, %v2599
      %2601 = vdwg.mxu0
      %2602 = vmatprep.subr.bf16.mxu0 %v2068
      %2603 = vmatpush1.bf16.msra.mxu0 %v2067
      %2604 = vmatprep.subr.bf16.mxu0 %v2056
      %2605 = vmatpush1.bf16.msra.mxu0 %v2055
      %2606 = vmatprep.subr.bf16.mxu0 %v2044
      %2607 = vmatpush1.bf16.msra.mxu0 %v2043
      %2608 = vmatprep.subr.bf16.mxu0 %v2032
      %2609 = vmatpush1.bf16.msra.mxu0 %v2031
      %2610 = vmatprep.subr.bf16.mxu0 %v2020
      %2611 = vmatpush1.bf16.msra.mxu0 %v2019
      %2612 = vmatprep.subr.bf16.mxu0 %v2008
      %2613 = vmatpush1.bf16.msra.mxu0 %v2007
      %2614 = vmatprep.subr.bf16.mxu0 %v1996
      %2615 = vmatpush1.bf16.msra.mxu0 %v1995
      %2616 = vmatprep.subr.bf16.mxu0 %v1984
      %2617 = vmatpush1.bf16.msra.mxu0 %v1983
      %2618 = vmatprep.subr.bf16.mxu0 %v2164
      %2619 = vmatpush2.bf16.msra.mxu0 %v2163
      %2620 = vmatprep.subr.bf16.mxu0 %v2152
      %2621 = vmatpush2.bf16.msra.mxu0 %v2151
      %2622 = vmatprep.subr.bf16.mxu0 %v2140
      %2623 = vmatpush2.bf16.msra.mxu0 %v2139
      %2624 = vmatprep.subr.bf16.mxu0 %v2128
      %2625 = vmatpush2.bf16.msra.mxu0 %v2127
      %2626 = vmatprep.subr.bf16.mxu0 %v2116
      %2627 = vmatpush2.bf16.msra.mxu0 %v2115
      %2628 = vmatprep.subr.bf16.mxu0 %v2104
      %2629 = vmatpush2.bf16.msra.mxu0 %v2103
      %2630 = vmatprep.subr.bf16.mxu0 %v2092
      %2631 = vmatpush2.bf16.msra.mxu0 %v2091
      %2632 = vmatprep.subr.bf16.mxu0 %v2080
      %2633 = vmatpush2.bf16.msra.mxu0 %v2079
      %2634 = vmatprep.mubr.bf16.mxu0 %v190
      %2635 = vmatmul.mubr.bf16.gmra.mxu0 %v189
      %v2636 = vpop.f32.mrf.mxu0
      %v2637 = vadd.f32 %v2594, %v2636
      %v2638 = vpop.f32.mrf.mxu0
      %v2639 = vadd.f32 %v2596, %v2638
      %v2640 = vpop.f32.mrf.mxu0
      %v2641 = vadd.f32 %v2598, %v2640
      %v2642 = vpop.f32.mrf.mxu0
      %v2643 = vadd.f32 %v2600, %v2642
      %2644 = vdwg.mxu0
      %2645 = vmatprep.subr.bf16.mxu0 %v1878
      %2646 = vmatpush1.bf16.msra.mxu0 %v1877
      %2647 = vmatprep.subr.bf16.mxu0 %v1866
      %2648 = vmatpush1.bf16.msra.mxu0 %v1865
      %2649 = vmatprep.subr.bf16.mxu0 %v1854
      %2650 = vmatpush1.bf16.msra.mxu0 %v1853
      %2651 = vmatprep.subr.bf16.mxu0 %v1842
      %2652 = vmatpush1.bf16.msra.mxu0 %v1841
      %2653 = vmatprep.subr.bf16.mxu0 %v1830
      %2654 = vmatpush1.bf16.msra.mxu0 %v1829
      %2655 = vmatprep.subr.bf16.mxu0 %v1818
      %2656 = vmatpush1.bf16.msra.mxu0 %v1817
      %2657 = vmatprep.subr.bf16.mxu0 %v1806
      %2658 = vmatpush1.bf16.msra.mxu0 %v1805
      %2659 = vmatprep.subr.bf16.mxu0 %v1794
      %2660 = vmatpush1.bf16.msra.mxu0 %v1793
      %2661 = vmatprep.subr.bf16.mxu0 %v1974
      %2662 = vmatpush2.bf16.msra.mxu0 %v1973
      %2663 = vmatprep.subr.bf16.mxu0 %v1962
      %2664 = vmatpush2.bf16.msra.mxu0 %v1961
      %2665 = vmatprep.subr.bf16.mxu0 %v1950
      %2666 = vmatpush2.bf16.msra.mxu0 %v1949
      %2667 = vmatprep.subr.bf16.mxu0 %v1938
      %2668 = vmatpush2.bf16.msra.mxu0 %v1937
      %2669 = vmatprep.subr.bf16.mxu0 %v1926
      %2670 = vmatpush2.bf16.msra.mxu0 %v1925
      %2671 = vmatprep.subr.bf16.mxu0 %v1914
      %2672 = vmatpush2.bf16.msra.mxu0 %v1913
      %2673 = vmatprep.subr.bf16.mxu0 %v1902
      %2674 = vmatpush2.bf16.msra.mxu0 %v1901
      %2675 = vmatprep.subr.bf16.mxu0 %v1890
      %2676 = vmatpush2.bf16.msra.mxu0 %v1889
      %2677 = vmatprep.mubr.bf16.mxu0 %v188
      %2678 = vmatmul.mubr.bf16.gmra.mxu0 %v187
      %v2679 = vpop.f32.mrf.mxu0
      %v2680 = vadd.f32 %v590, %v2679
      %v2681 = vpop.f32.mrf.mxu0
      %v2682 = vadd.f32 %v594, %v2681
      %v2683 = vpop.f32.mrf.mxu0
      %v2684 = vadd.f32 %v590, %v2683
      %v2685 = vpop.f32.mrf.mxu0
      %v2686 = vadd.f32 %v594, %v2685
      %2687 = vdwg.mxu0
      %2688 = vmatprep.subr.bf16.mxu0 %v2070
      %2689 = vmatpush1.bf16.msra.mxu0 %v2069
      %2690 = vmatprep.subr.bf16.mxu0 %v2058
      %2691 = vmatpush1.bf16.msra.mxu0 %v2057
      %2692 = vmatprep.subr.bf16.mxu0 %v2046
      %2693 = vmatpush1.bf16.msra.mxu0 %v2045
      %2694 = vmatprep.subr.bf16.mxu0 %v2034
      %2695 = vmatpush1.bf16.msra.mxu0 %v2033
      %2696 = vmatprep.subr.bf16.mxu0 %v2022
      %2697 = vmatpush1.bf16.msra.mxu0 %v2021
      %2698 = vmatprep.subr.bf16.mxu0 %v2010
      %2699 = vmatpush1.bf16.msra.mxu0 %v2009
      %2700 = vmatprep.subr.bf16.mxu0 %v1998
      %2701 = vmatpush1.bf16.msra.mxu0 %v1997
      %2702 = vmatprep.subr.bf16.mxu0 %v1986
      %2703 = vmatpush1.bf16.msra.mxu0 %v1985
      %2704 = vmatprep.subr.bf16.mxu0 %v2166
      %2705 = vmatpush2.bf16.msra.mxu0 %v2165
      %2706 = vmatprep.subr.bf16.mxu0 %v2154
      %2707 = vmatpush2.bf16.msra.mxu0 %v2153
      %2708 = vmatprep.subr.bf16.mxu0 %v2142
      %2709 = vmatpush2.bf16.msra.mxu0 %v2141
      %2710 = vmatprep.subr.bf16.mxu0 %v2130
      %2711 = vmatpush2.bf16.msra.mxu0 %v2129
      %2712 = vmatprep.subr.bf16.mxu0 %v2118
      %2713 = vmatpush2.bf16.msra.mxu0 %v2117
      %2714 = vmatprep.subr.bf16.mxu0 %v2106
      %2715 = vmatpush2.bf16.msra.mxu0 %v2105
      %2716 = vmatprep.subr.bf16.mxu0 %v2094
      %2717 = vmatpush2.bf16.msra.mxu0 %v2093
      %2718 = vmatprep.subr.bf16.mxu0 %v2082
      %2719 = vmatpush2.bf16.msra.mxu0 %v2081
      %2720 = vmatprep.mubr.bf16.mxu0 %v190
      %2721 = vmatmul.mubr.bf16.gmra.mxu0 %v189
      %v2722 = vpop.f32.mrf.mxu0
      %v2723 = vadd.f32 %v2680, %v2722
      %v2724 = vpop.f32.mrf.mxu0
      %v2725 = vadd.f32 %v2682, %v2724
      %v2726 = vpop.f32.mrf.mxu0
      %v2727 = vadd.f32 %v2684, %v2726
      %v2728 = vpop.f32.mrf.mxu0
      %v2729 = vadd.f32 %v2686, %v2728
      %2730 = vdwg.mxu0
      %2731 = vmatprep.subr.bf16.mxu0 %v1880
      %2732 = vmatpush1.bf16.msra.mxu0 %v1879
      %2733 = vmatprep.subr.bf16.mxu0 %v1868
      %2734 = vmatpush1.bf16.msra.mxu0 %v1867
      %2735 = vmatprep.subr.bf16.mxu0 %v1856
      %2736 = vmatpush1.bf16.msra.mxu0 %v1855
      %2737 = vmatprep.subr.bf16.mxu0 %v1844
      %2738 = vmatpush1.bf16.msra.mxu0 %v1843
      %2739 = vmatprep.subr.bf16.mxu0 %v1832
      %2740 = vmatpush1.bf16.msra.mxu0 %v1831
      %2741 = vmatprep.subr.bf16.mxu0 %v1820
      %2742 = vmatpush1.bf16.msra.mxu0 %v1819
      %2743 = vmatprep.subr.bf16.mxu0 %v1808
      %2744 = vmatpush1.bf16.msra.mxu0 %v1807
      %2745 = vmatprep.subr.bf16.mxu0 %v1796
      %2746 = vmatpush1.bf16.msra.mxu0 %v1795
      %2747 = vmatprep.subr.bf16.mxu0 %v1976
      %2748 = vmatpush2.bf16.msra.mxu0 %v1975
      %2749 = vmatprep.subr.bf16.mxu0 %v1964
      %2750 = vmatpush2.bf16.msra.mxu0 %v1963
      %2751 = vmatprep.subr.bf16.mxu0 %v1952
      %2752 = vmatpush2.bf16.msra.mxu0 %v1951
      %2753 = vmatprep.subr.bf16.mxu0 %v1940
      %2754 = vmatpush2.bf16.msra.mxu0 %v1939
      %2755 = vmatprep.subr.bf16.mxu0 %v1928
      %2756 = vmatpush2.bf16.msra.mxu0 %v1927
      %2757 = vmatprep.subr.bf16.mxu0 %v1916
      %2758 = vmatpush2.bf16.msra.mxu0 %v1915
      %2759 = vmatprep.subr.bf16.mxu0 %v1904
      %2760 = vmatpush2.bf16.msra.mxu0 %v1903
      %2761 = vmatprep.subr.bf16.mxu0 %v1892
      %2762 = vmatpush2.bf16.msra.mxu0 %v1891
      %2763 = vmatprep.mubr.bf16.mxu0 %v188
      %2764 = vmatmul.mubr.bf16.gmra.mxu0 %v187
      %v2765 = vpop.f32.mrf.mxu0
      %v2766 = vadd.f32 %v598, %v2765
      %v2767 = vpop.f32.mrf.mxu0
      %v2768 = vadd.f32 %v602, %v2767
      %v2769 = vpop.f32.mrf.mxu0
      %v2770 = vadd.f32 %v598, %v2769
      %v2771 = vpop.f32.mrf.mxu0
      %v2772 = vadd.f32 %v602, %v2771
      %2773 = vdwg.mxu0
      %2774 = vmatprep.subr.bf16.mxu0 %v2072
      %2775 = vmatpush1.bf16.msra.mxu0 %v2071
      %2776 = vmatprep.subr.bf16.mxu0 %v2060
      %2777 = vmatpush1.bf16.msra.mxu0 %v2059
      %2778 = vmatprep.subr.bf16.mxu0 %v2048
      %2779 = vmatpush1.bf16.msra.mxu0 %v2047
      %2780 = vmatprep.subr.bf16.mxu0 %v2036
      %2781 = vmatpush1.bf16.msra.mxu0 %v2035
      %2782 = vmatprep.subr.bf16.mxu0 %v2024
      %2783 = vmatpush1.bf16.msra.mxu0 %v2023
      %2784 = vmatprep.subr.bf16.mxu0 %v2012
      %2785 = vmatpush1.bf16.msra.mxu0 %v2011
      %2786 = vmatprep.subr.bf16.mxu0 %v2000
      %2787 = vmatpush1.bf16.msra.mxu0 %v1999
      %2788 = vmatprep.subr.bf16.mxu0 %v1988
      %2789 = vmatpush1.bf16.msra.mxu0 %v1987
      %2790 = vmatprep.subr.bf16.mxu0 %v2168
      %2791 = vmatpush2.bf16.msra.mxu0 %v2167
      %2792 = vmatprep.subr.bf16.mxu0 %v2156
      %2793 = vmatpush2.bf16.msra.mxu0 %v2155
      %2794 = vmatprep.subr.bf16.mxu0 %v2144
      %2795 = vmatpush2.bf16.msra.mxu0 %v2143
      %2796 = vmatprep.subr.bf16.mxu0 %v2132
      %2797 = vmatpush2.bf16.msra.mxu0 %v2131
      %2798 = vmatprep.subr.bf16.mxu0 %v2120
      %2799 = vmatpush2.bf16.msra.mxu0 %v2119
      %2800 = vmatprep.subr.bf16.mxu0 %v2108
      %2801 = vmatpush2.bf16.msra.mxu0 %v2107
      %2802 = vmatprep.subr.bf16.mxu0 %v2096
      %2803 = vmatpush2.bf16.msra.mxu0 %v2095
      %2804 = vmatprep.subr.bf16.mxu0 %v2084
      %2805 = vmatpush2.bf16.msra.mxu0 %v2083
      %2806 = vmatprep.mubr.bf16.mxu0 %v190
      %2807 = vmatmul.mubr.bf16.gmra.mxu0 %v189
      %v2808 = vpop.f32.mrf.mxu0
      %v2809 = vadd.f32 %v2766, %v2808
      %v2810 = vpop.f32.mrf.mxu0
      %v2811 = vadd.f32 %v2768, %v2810
      %v2812 = vpop.f32.mrf.mxu0
      %v2813 = vadd.f32 %v2770, %v2812
      %v2814 = vpop.f32.mrf.mxu0
      %v2815 = vadd.f32 %v2772, %v2814
      %2816 = vdwg.mxu0
      %2817 = vmatprep.subr.bf16.mxu0 %v1882
      %2818 = vmatpush1.bf16.msra.mxu0 %v1881
      %2819 = vmatprep.subr.bf16.mxu0 %v1870
      %2820 = vmatpush1.bf16.msra.mxu0 %v1869
      %2821 = vmatprep.subr.bf16.mxu0 %v1858
      %2822 = vmatpush1.bf16.msra.mxu0 %v1857
      %2823 = vmatprep.subr.bf16.mxu0 %v1846
      %2824 = vmatpush1.bf16.msra.mxu0 %v1845
      %2825 = vmatprep.subr.bf16.mxu0 %v1834
      %2826 = vmatpush1.bf16.msra.mxu0 %v1833
      %2827 = vmatprep.subr.bf16.mxu0 %v1822
      %2828 = vmatpush1.bf16.msra.mxu0 %v1821
      %2829 = vmatprep.subr.bf16.mxu0 %v1810
      %2830 = vmatpush1.bf16.msra.mxu0 %v1809
      %2831 = vmatprep.subr.bf16.mxu0 %v1798
      %2832 = vmatpush1.bf16.msra.mxu0 %v1797
      %2833 = vmatprep.subr.bf16.mxu0 %v1978
      %2834 = vmatpush2.bf16.msra.mxu0 %v1977
      %2835 = vmatprep.subr.bf16.mxu0 %v1966
      %2836 = vmatpush2.bf16.msra.mxu0 %v1965
      %2837 = vmatprep.subr.bf16.mxu0 %v1954
      %2838 = vmatpush2.bf16.msra.mxu0 %v1953
      %2839 = vmatprep.subr.bf16.mxu0 %v1942
      %2840 = vmatpush2.bf16.msra.mxu0 %v1941
      %2841 = vmatprep.subr.bf16.mxu0 %v1930
      %2842 = vmatpush2.bf16.msra.mxu0 %v1929
      %2843 = vmatprep.subr.bf16.mxu0 %v1918
      %2844 = vmatpush2.bf16.msra.mxu0 %v1917
      %2845 = vmatprep.subr.bf16.mxu0 %v1906
      %2846 = vmatpush2.bf16.msra.mxu0 %v1905
      %2847 = vmatprep.subr.bf16.mxu0 %v1894
      %2848 = vmatpush2.bf16.msra.mxu0 %v1893
      %2849 = vmatprep.mubr.bf16.mxu0 %v188
      %2850 = vmatmul.mubr.bf16.gmra.mxu0 %v187
      %v2851 = vpop.f32.mrf.mxu0
      %v2852 = vadd.f32 %v606, %v2851
      %v2853 = vpop.f32.mrf.mxu0
      %v2854 = vadd.f32 %v610, %v2853
      %v2855 = vpop.f32.mrf.mxu0
      %v2856 = vadd.f32 %v606, %v2855
      %v2857 = vpop.f32.mrf.mxu0
      %v2858 = vadd.f32 %v610, %v2857
      %2859 = vdwg.mxu0
      %2860 = vmatprep.subr.bf16.mxu0 %v2074
      %2861 = vmatpush1.bf16.msra.mxu0 %v2073
      %2862 = vmatprep.subr.bf16.mxu0 %v2062
      %2863 = vmatpush1.bf16.msra.mxu0 %v2061
      %2864 = vmatprep.subr.bf16.mxu0 %v2050
      %2865 = vmatpush1.bf16.msra.mxu0 %v2049
      %2866 = vmatprep.subr.bf16.mxu0 %v2038
      %2867 = vmatpush1.bf16.msra.mxu0 %v2037
      %2868 = vmatprep.subr.bf16.mxu0 %v2026
      %2869 = vmatpush1.bf16.msra.mxu0 %v2025
      %2870 = vmatprep.subr.bf16.mxu0 %v2014
      %2871 = vmatpush1.bf16.msra.mxu0 %v2013
      %2872 = vmatprep.subr.bf16.mxu0 %v2002
      %2873 = vmatpush1.bf16.msra.mxu0 %v2001
      %2874 = vmatprep.subr.bf16.mxu0 %v1990
      %2875 = vmatpush1.bf16.msra.mxu0 %v1989
      %2876 = vmatprep.subr.bf16.mxu0 %v2170
      %2877 = vmatpush2.bf16.msra.mxu0 %v2169
      %2878 = vmatprep.subr.bf16.mxu0 %v2158
      %2879 = vmatpush2.bf16.msra.mxu0 %v2157
      %2880 = vmatprep.subr.bf16.mxu0 %v2146
      %2881 = vmatpush2.bf16.msra.mxu0 %v2145
      %2882 = vmatprep.subr.bf16.mxu0 %v2134
      %2883 = vmatpush2.bf16.msra.mxu0 %v2133
      %2884 = vmatprep.subr.bf16.mxu0 %v2122
      %2885 = vmatpush2.bf16.msra.mxu0 %v2121
      %2886 = vmatprep.subr.bf16.mxu0 %v2110
      %2887 = vmatpush2.bf16.msra.mxu0 %v2109
      %2888 = vmatprep.subr.bf16.mxu0 %v2098
      %2889 = vmatpush2.bf16.msra.mxu0 %v2097
      %2890 = vmatprep.subr.bf16.mxu0 %v2086
      %2891 = vmatpush2.bf16.msra.mxu0 %v2085
      %2892 = vmatprep.mubr.bf16.mxu0 %v190
      %2893 = vmatmul.mubr.bf16.gmra.mxu0 %v189
      %v2894 = vpop.f32.mrf.mxu0
      %v2895 = vadd.f32 %v2852, %v2894
      %v2896 = vpop.f32.mrf.mxu0
      %v2897 = vadd.f32 %v2854, %v2896
      %v2898 = vpop.f32.mrf.mxu0
      %v2899 = vadd.f32 %v2856, %v2898
      %v2900 = vpop.f32.mrf.mxu0
      %v2901 = vadd.f32 %v2858, %v2900
      %2902 = vdwg.mxu0
      %2903 = vmatprep.subr.bf16.mxu0 %v1884
      %2904 = vmatpush1.bf16.msra.mxu0 %v1883
      %2905 = vmatprep.subr.bf16.mxu0 %v1872
      %2906 = vmatpush1.bf16.msra.mxu0 %v1871
      %2907 = vmatprep.subr.bf16.mxu0 %v1860
      %2908 = vmatpush1.bf16.msra.mxu0 %v1859
      %2909 = vmatprep.subr.bf16.mxu0 %v1848
      %2910 = vmatpush1.bf16.msra.mxu0 %v1847
      %2911 = vmatprep.subr.bf16.mxu0 %v1836
      %2912 = vmatpush1.bf16.msra.mxu0 %v1835
      %2913 = vmatprep.subr.bf16.mxu0 %v1824
      %2914 = vmatpush1.bf16.msra.mxu0 %v1823
      %2915 = vmatprep.subr.bf16.mxu0 %v1812
      %2916 = vmatpush1.bf16.msra.mxu0 %v1811
      %2917 = vmatprep.subr.bf16.mxu0 %v1800
      %2918 = vmatpush1.bf16.msra.mxu0 %v1799
      %2919 = vmatprep.subr.bf16.mxu0 %v1980
      %2920 = vmatpush2.bf16.msra.mxu0 %v1979
      %2921 = vmatprep.subr.bf16.mxu0 %v1968
      %2922 = vmatpush2.bf16.msra.mxu0 %v1967
      %2923 = vmatprep.subr.bf16.mxu0 %v1956
      %2924 = vmatpush2.bf16.msra.mxu0 %v1955
      %2925 = vmatprep.subr.bf16.mxu0 %v1944
      %2926 = vmatpush2.bf16.msra.mxu0 %v1943
      %2927 = vmatprep.subr.bf16.mxu0 %v1932
      %2928 = vmatpush2.bf16.msra.mxu0 %v1931
      %2929 = vmatprep.subr.bf16.mxu0 %v1920
      %2930 = vmatpush2.bf16.msra.mxu0 %v1919
      %2931 = vmatprep.subr.bf16.mxu0 %v1908
      %2932 = vmatpush2.bf16.msra.mxu0 %v1907
      %2933 = vmatprep.subr.bf16.mxu0 %v1896
      %2934 = vmatpush2.bf16.msra.mxu0 %v1895
      %2935 = vmatprep.mubr.bf16.mxu0 %v188
      %2936 = vmatmul.mubr.bf16.gmra.mxu0 %v187
      %v2937 = vpop.f32.mrf.mxu0
      %v2938 = vadd.f32 %v614, %v2937
      %v2939 = vpop.f32.mrf.mxu0
      %v2940 = vadd.f32 %v618, %v2939
      %v2941 = vpop.f32.mrf.mxu0
      %v2942 = vadd.f32 %v614, %v2941
      %v2943 = vpop.f32.mrf.mxu0
      %v2944 = vadd.f32 %v618, %v2943
      %2945 = vdwg.mxu0
      %2946 = vmatprep.subr.bf16.mxu0 %v2076
      %2947 = vmatpush1.bf16.msra.mxu0 %v2075
      %2948 = vmatprep.subr.bf16.mxu0 %v2064
      %2949 = vmatpush1.bf16.msra.mxu0 %v2063
      %2950 = vmatprep.subr.bf16.mxu0 %v2052
      %2951 = vmatpush1.bf16.msra.mxu0 %v2051
      %2952 = vmatprep.subr.bf16.mxu0 %v2040
      %2953 = vmatpush1.bf16.msra.mxu0 %v2039
      %2954 = vmatprep.subr.bf16.mxu0 %v2028
      %2955 = vmatpush1.bf16.msra.mxu0 %v2027
      %2956 = vmatprep.subr.bf16.mxu0 %v2016
      %2957 = vmatpush1.bf16.msra.mxu0 %v2015
      %2958 = vmatprep.subr.bf16.mxu0 %v2004
      %2959 = vmatpush1.bf16.msra.mxu0 %v2003
      %2960 = vmatprep.subr.bf16.mxu0 %v1992
      %2961 = vmatpush1.bf16.msra.mxu0 %v1991
      %2962 = vmatprep.subr.bf16.mxu0 %v2172
      %2963 = vmatpush2.bf16.msra.mxu0 %v2171
      %2964 = vmatprep.subr.bf16.mxu0 %v2160
      %2965 = vmatpush2.bf16.msra.mxu0 %v2159
      %2966 = vmatprep.subr.bf16.mxu0 %v2148
      %2967 = vmatpush2.bf16.msra.mxu0 %v2147
      %2968 = vmatprep.subr.bf16.mxu0 %v2136
      %2969 = vmatpush2.bf16.msra.mxu0 %v2135
      %2970 = vmatprep.subr.bf16.mxu0 %v2124
      %2971 = vmatpush2.bf16.msra.mxu0 %v2123
      %2972 = vmatprep.subr.bf16.mxu0 %v2112
      %2973 = vmatpush2.bf16.msra.mxu0 %v2111
      %2974 = vmatprep.subr.bf16.mxu0 %v2100
      %2975 = vmatpush2.bf16.msra.mxu0 %v2099
      %2976 = vmatprep.subr.bf16.mxu0 %v2088
      %2977 = vmatpush2.bf16.msra.mxu0 %v2087
      %2978 = vmatprep.mubr.bf16.mxu0 %v190
      %2979 = vmatmul.mubr.bf16.gmra.mxu0 %v189
      %v2980 = vpop.f32.mrf.mxu0
      %v2981 = vadd.f32 %v2938, %v2980
      %v2982 = vpop.f32.mrf.mxu0
      %v2983 = vadd.f32 %v2940, %v2982
      %v2984 = vpop.f32.mrf.mxu0
      %v2985 = vadd.f32 %v2942, %v2984
      %v2986 = vpop.f32.mrf.mxu0
      %v2987 = vadd.f32 %v2944, %v2986
      %2988 = vdwg.mxu0
      %2989 = vmatprep.subr.bf16.mxu0 %v1886
      %2990 = vmatpush1.bf16.msra.mxu0 %v1885
      %2991 = vmatprep.subr.bf16.mxu0 %v1874
      %2992 = vmatpush1.bf16.msra.mxu0 %v1873
      %2993 = vmatprep.subr.bf16.mxu0 %v1862
      %2994 = vmatpush1.bf16.msra.mxu0 %v1861
      %2995 = vmatprep.subr.bf16.mxu0 %v1850
      %2996 = vmatpush1.bf16.msra.mxu0 %v1849
      %2997 = vmatprep.subr.bf16.mxu0 %v1838
      %2998 = vmatpush1.bf16.msra.mxu0 %v1837
      %2999 = vmatprep.subr.bf16.mxu0 %v1826
      %3000 = vmatpush1.bf16.msra.mxu0 %v1825
      %3001 = vmatprep.subr.bf16.mxu0 %v1814
      %3002 = vmatpush1.bf16.msra.mxu0 %v1813
      %3003 = vmatprep.subr.bf16.mxu0 %v1802
      %3004 = vmatpush1.bf16.msra.mxu0 %v1801
      %3005 = vmatprep.subr.bf16.mxu0 %v1982
      %3006 = vmatpush2.bf16.msra.mxu0 %v1981
      %3007 = vmatprep.subr.bf16.mxu0 %v1970
      %3008 = vmatpush2.bf16.msra.mxu0 %v1969
      %3009 = vmatprep.subr.bf16.mxu0 %v1958
      %3010 = vmatpush2.bf16.msra.mxu0 %v1957
      %3011 = vmatprep.subr.bf16.mxu0 %v1946
      %3012 = vmatpush2.bf16.msra.mxu0 %v1945
      %3013 = vmatprep.subr.bf16.mxu0 %v1934
      %3014 = vmatpush2.bf16.msra.mxu0 %v1933
      %3015 = vmatprep.subr.bf16.mxu0 %v1922
      %3016 = vmatpush2.bf16.msra.mxu0 %v1921
      %3017 = vmatprep.subr.bf16.mxu0 %v1910
      %3018 = vmatpush2.bf16.msra.mxu0 %v1909
      %3019 = vmatprep.subr.bf16.mxu0 %v1898
      %3020 = vmatpush2.bf16.msra.mxu0 %v1897
      %3021 = vmatprep.mubr.bf16.mxu0 %v188
      %3022 = vmatmul.mubr.bf16.gmra.mxu0 %v187
      %v3023 = vpop.f32.mrf.mxu0
      %v3024 = vadd.f32 %v622, %v3023
      %v3025 = vpop.f32.mrf.mxu0
      %v3026 = vadd.f32 %v626, %v3025
      %v3027 = vpop.f32.mrf.mxu0
      %v3028 = vadd.f32 %v622, %v3027
      %v3029 = vpop.f32.mrf.mxu0
      %v3030 = vadd.f32 %v626, %v3029
      %3031 = vdwg.mxu0
      %3032 = vmatprep.subr.bf16.mxu0 %v2078
      %3033 = vmatpush1.bf16.msra.mxu0 %v2077
      %3034 = vmatprep.subr.bf16.mxu0 %v2066
      %3035 = vmatpush1.bf16.msra.mxu0 %v2065
      %3036 = vmatprep.subr.bf16.mxu0 %v2054
      %3037 = vmatpush1.bf16.msra.mxu0 %v2053
      %3038 = vmatprep.subr.bf16.mxu0 %v2042
      %3039 = vmatpush1.bf16.msra.mxu0 %v2041
      %3040 = vmatprep.subr.bf16.mxu0 %v2030
      %3041 = vmatpush1.bf16.msra.mxu0 %v2029
      %3042 = vmatprep.subr.bf16.mxu0 %v2018
      %3043 = vmatpush1.bf16.msra.mxu0 %v2017
      %3044 = vmatprep.subr.bf16.mxu0 %v2006
      %3045 = vmatpush1.bf16.msra.mxu0 %v2005
      %3046 = vmatprep.subr.bf16.mxu0 %v1994
      %3047 = vmatpush1.bf16.msra.mxu0 %v1993
      %3048 = vmatprep.subr.bf16.mxu0 %v2174
      %3049 = vmatpush2.bf16.msra.mxu0 %v2173
      %3050 = vmatprep.subr.bf16.mxu0 %v2162
      %3051 = vmatpush2.bf16.msra.mxu0 %v2161
      %3052 = vmatprep.subr.bf16.mxu0 %v2150
      %3053 = vmatpush2.bf16.msra.mxu0 %v2149
      %3054 = vmatprep.subr.bf16.mxu0 %v2138
      %3055 = vmatpush2.bf16.msra.mxu0 %v2137
      %3056 = vmatprep.subr.bf16.mxu0 %v2126
      %3057 = vmatpush2.bf16.msra.mxu0 %v2125
      %3058 = vmatprep.subr.bf16.mxu0 %v2114
      %3059 = vmatpush2.bf16.msra.mxu0 %v2113
      %3060 = vmatprep.subr.bf16.mxu0 %v2102
      %3061 = vmatpush2.bf16.msra.mxu0 %v2101
      %3062 = vmatprep.subr.bf16.mxu0 %v2090
      %3063 = vmatpush2.bf16.msra.mxu0 %v2089
      %3064 = vmatprep.mubr.bf16.mxu0 %v190
      %3065 = vmatmul.mubr.bf16.gmra.mxu0 %v189
      %v3066 = vpop.f32.mrf.mxu0
      %v3067 = vadd.f32 %v3024, %v3066
      %v3068 = vpop.f32.mrf.mxu0
      %v3069 = vadd.f32 %v3026, %v3068
      %v3070 = vpop.f32.mrf.mxu0
      %v3071 = vadd.f32 %v3028, %v3070
      %v3072 = vpop.f32.mrf.mxu0
      %v3073 = vadd.f32 %v3030, %v3072
      %3074 = vdwg.mxu0
      %v3075 = vpack.c.bf16 %v2641, %v2637
      %v3076 = vpack.c.bf16 %v2643, %v2639
      %v3077 = vpack.c.bf16 %v2727, %v2723
      %v3078 = vpack.c.bf16 %v2729, %v2725
      %v3079 = vpack.c.bf16 %v2813, %v2809
      %v3080 = vpack.c.bf16 %v2815, %v2811
      %v3081 = vpack.c.bf16 %v2899, %v2895
      %v3082 = vpack.c.bf16 %v2901, %v2897
      %v3083 = vpack.c.bf16 %v2985, %v2981
      %v3084 = vpack.c.bf16 %v2987, %v2983
      %v3085 = vpack.c.bf16 %v3071, %v3067
      %v3086 = vpack.c.bf16 %v3073, %v3069
      %v3099 = vunpack.c.l.b16 %v3075
      %v3100 = vunpack.c.l.b16 %v3076
      %v3101 = vunpack.c.l.b16 %v3077
      %v3102 = vunpack.c.l.b16 %v3078
      %v3103 = vunpack.c.l.b16 %v3079
      %v3104 = vunpack.c.l.b16 %v3080
      %v3105 = vunpack.c.l.b16 %v3081
      %v3106 = vunpack.c.l.b16 %v3082
      %v3107 = vunpack.c.l.b16 %v3083
      %v3108 = vunpack.c.l.b16 %v3084
      %v3109 = vunpack.c.l.b16 %v3085
      %v3110 = vunpack.c.l.b16 %v3086
      %v3111 = vunpack.c.h.b16 %v3075
      %v3112 = vunpack.c.h.b16 %v3076
      %v3113 = vunpack.c.h.b16 %v3077
      %v3114 = vunpack.c.h.b16 %v3078
      %v3115 = vunpack.c.h.b16 %v3079
      %v3116 = vunpack.c.h.b16 %v3080
      %v3117 = vunpack.c.h.b16 %v3081
      %v3118 = vunpack.c.h.b16 %v3082
      %v3119 = vunpack.c.h.b16 %v3083
      %v3120 = vunpack.c.h.b16 %v3084
      %v3121 = vunpack.c.h.b16 %v3085
      %v3122 = vunpack.c.h.b16 %v3086
      %v3123 = vpack.c.b16 %v3100, %v3099
      %v3124 = vpack.c.b16 %v3102, %v3101
      %v3125 = vpack.c.b16 %v3104, %v3103
      %v3126 = vpack.c.b16 %v3106, %v3105
      %v3127 = vpack.c.b16 %v3108, %v3107
      %v3128 = vpack.c.b16 %v3110, %v3109
      %v3129 = vpack.c.b16 %v3112, %v3111
      %v3130 = vpack.c.b16 %v3114, %v3113
      %v3131 = vpack.c.b16 %v3116, %v3115
      %v3132 = vpack.c.b16 %v3118, %v3117
      %v3133 = vpack.c.b16 %v3120, %v3119
      %v3134 = vpack.c.b16 %v3122, %v3121
      %3147 = vst [vmem:[%s177] sm:$0xff] %v3123
      %3148 = vst [vmem:[%s177 + $0x8] sm:$0xff] %v3124
      %3149 = vst [vmem:[%s177 + $0x10] sm:$0xff] %v3125
      %3150 = vst [vmem:[%s177 + $0x18] sm:$0xff] %v3126
      %3151 = vst [vmem:[%s177 + $0x20] sm:$0xff] %v3127
      %3152 = vst [vmem:[%s177 + $0x28] sm:$0xff] %v3128
      %3153 = vst [vmem:[%s177 + $0x30] sm:$0xff] %v3129
      %3154 = vst [vmem:[%s177 + $0x38] sm:$0xff] %v3130
      %3155 = vst [vmem:[%s177 + $0x40] sm:$0xff] %v3131
      %3156 = vst [vmem:[%s177 + $0x48] sm:$0xff] %v3132
      %3157 = vst [vmem:[%s177 + $0x50] sm:$0xff] %v3133
      %3158 = vst [vmem:[%s177 + $0x58] sm:$0xff] %v3134
      %s3159 = smul.u32 2, %s14
      %p3160 = scmp.lt.s32.totalorder %s3159, 3
      %s3161 = scalar_select %p3160, %s3159, 3
      %s3162 = smul.addr %s3161, 12
      %s3163 = smul.addr %s3162, 4
      %s3164 = scalar_lea.vmem %s3, %s3163
      // Predicated region
      $region33: #{_mha_self_forward.3} parent=31 // pred_check
        %p3165 = pneg %p100
      $region34: #{_mha_self_forward.3} parent=31 // pred_check_branch
        %3167 = sbr.rel (%p3165) target = $region36
      $region35: #{_mha_self_forward.3} parent=31 // pred_region
        %s3168 = smul.u32 2, %s14
      $region36: #{_mha_self_forward.3} parent=31 // pred_fallthru
        _
    $region32: #{_mha_self_forward.3} parent=5 // pred_fallthru
      _
    %p3169 = scmp.le.s32.totalorder 2, %s9
    // Predicated region
    $region37: #{_mha_self_forward.3} parent=5 // pred_check
      %p3170 = pneg %p3169
    $region38: #{_mha_self_forward.3} parent=5 // pred_check_branch
      %3172 = sbr.rel (%p3170) target = $region40
    $region39: #{_mha_self_forward.3} parent=5 // pred_region
      %s3173 = ssub.s32 %s9, 2
      // Predicated region
      $region41: #{_mha_self_forward.3} parent=39 // pred_check
        %p3174 = pneg %p106
      $region42: #{_mha_self_forward.3} parent=39 // pred_check_branch
        %3176 = sbr.rel (%p3174) target = $region44
      $region43: #{_mha_self_forward.3} parent=39 // pred_region
        %s3177 = smul.u32 2, %s15
        %p3178 = scmp.lt.s32.totalorder %s3177, 3
        %s3179 = scalar_select %p3178, %s3177, 3
        %s3180 = smul.addr %s3179, 12
        %s3181 = smul.addr %s3180, 4
        %s3182 = scalar_lea.vmem %s3, %s3181
      $region44: #{_mha_self_forward.3} parent=39 // pred_fallthru
        _
    $region40: #{_mha_self_forward.3} parent=5 // pred_fallthru
      _
  $region6: #{_mha_self_forward.3} parent=0 // loop_footer
    %s13 = sadd.s32 1, %s9
  $region7: #{_mha_self_forward.3} parent=0 // loop_footer_branch
    %8 = sbr.rel target = $region3
  $region8: #{_mha_self_forward.3} parent=0 // loop_exit
    _

</llo_original>
